<compile_context>
chip_gen: v7x
topology: tpu7x:2x2x1
jax: 0.10.0
libtpu: 0.0.40
codegen_flags: <defaults>
</compile_context>

<pallas_src>
import functools
import math

import jax
import jax.numpy as jnp
from jax import lax
from jax.experimental import pallas as pl
from jax.experimental.pallas import tpu as pltpu


def _make_divisible(v, divisor, min_value=None):
    if min_value is None:
        min_value = divisor
    new_v = max(min_value, int(v + divisor / 2) // divisor * divisor)
    if new_v < 0.9 * v:
        new_v += divisor
    return new_v


def _default_compute_dtype():
    """bf16 depthwise path on chips with a bf16 VPU (v6e / v7x); f32 otherwise (v5e)."""
    try:
        kind = jax.devices()[0].device_kind.lower()
    except Exception:
        return jnp.float32
    if any(tag in kind for tag in ("v6", "v7", "7x", "trillium")):
        return jnp.bfloat16
    return jnp.float32


def _pick_block_batch(n, cap=16):
    """Largest divisor of n that is <= cap and keeps >= 2 grid steps (v7x megacore)."""
    if n <= 1:
        return max(n, 1)
    target = max(1, min(cap, n // 2))
    for bt in range(target, 0, -1):
        if n % bt == 0:
            return bt
    return 1


# ------------------------- fused Pallas kernel -------------------------

def _sgblock_kernel(x_ref, w1_ref, b1_ref, wf_ref, bf_ref, w4_ref, b4_ref,
                    o_ref, *, width, block_batch):
    """Whole SGBlock for a batch of `block_batch` images, lane-dense (C, H*W) layout.

    x_ref : (Bt, Cin, P)   input (also the residual), f32
    w1_ref: (9, Cin, P)    dw3x3 #1 weights, BN + edge-mask folded, compute dtype
    b1_ref: (Cin, 1)       BN1 bias, f32
    wf_ref: (Cout, Cin)    folded pointwise weight (wp1 @ wp2)^T, compute dtype
    bf_ref: (Cout, 1)      folded pointwise bias b2 @ wp2 + b3, f32
    w4_ref: (9, Cout, P)   dw3x3 #2 weights, BN + edge-mask folded, compute dtype
    b4_ref: (Cout, 1)      BN4 bias, f32
    o_ref : (Bt, Cout, P)  output, f32
    """
    P = x_ref.shape[-1]
    cdtype = w1_ref.dtype

    def dw3x3(t, w_ref, b_ref):
        # 9-tap depthwise conv; zero-padding masks are pre-folded into w_ref, so each
        # tap is one lane roll (XLU slot) + one multiply-add (VPU slot).
        acc = t * w_ref[4]                                   # center tap: no roll
        for tap in (0, 1, 2, 3, 5, 6, 7, 8):
            dy, dx = tap // 3 - 1, tap % 3 - 1
            s = dy * width + dx                              # flattened spatial shift
            acc = acc + pltpu.roll(t, (-s) % P, axis=1) * w_ref[tap]
        return acc.astype(jnp.float32) + b_ref[...]          # bias add in f32

    def body(b, carry):
        x_f32 = x_ref[b]                                     # (Cin, P) residual, f32
        # dw3x3 + BN1 + ReLU6
        t = jnp.clip(dw3x3(x_f32.astype(cdtype), w1_ref, b1_ref), 0.0, 6.0)
        # 1x1 (inp->hidden)+BN2 and 1x1 (hidden->oup)+BN3 folded into one MXU matmul, + ReLU6
        v = jnp.dot(wf_ref[...], t.astype(cdtype),
                    preferred_element_type=jnp.float32) + bf_ref[...]
        v = jnp.clip(v, 0.0, 6.0)
        # dw3x3 + BN4, then residual add (identity=True) in f32
        o_ref[b] = dw3x3(v.astype(cdtype), w4_ref, b4_ref) + x_f32
        return carry

    lax.fori_loop(0, block_batch, body, 0, unroll=block_batch <= 4)


# ------------------------- wrapper -------------------------

def sgblock_forward(x_nchw, p, *, compute_dtype=None, block_batch=None):
    N, Cin, H, W = x_nchw.shape
    P = H * W
    Cout = p['w4'].shape[-1]

    if compute_dtype is None:
        compute_dtype = _default_compute_dtype()
    if block_batch is None:
        block_batch = _pick_block_batch(N)
    Bt = block_batch
    assert N % Bt == 0, "block_batch must divide N"

    # Free view: NCHW -> (N, C, H*W); no transpose, no pad in HBM.
    x2 = x_nchw.reshape(N, Cin, P).astype(jnp.float32)

    # Per-tap zero-padding validity masks for the 3x3 convs, folded directly into the
    # depthwise weights (lane-dense, so the kernel needs no broadcasts and no mask mul).
    yy = jnp.arange(H)[:, None]
    xx = jnp.arange(W)[None, :]
    mlist = []
    for dy in (-1, 0, 1):
        for dx in (-1, 0, 1):
            valid = ((yy + dy >= 0) & (yy + dy < H) &
                     (xx + dx >= 0) & (xx + dx < W))
            mlist.append(valid.astype(jnp.float32).reshape(1, P))
    masks = jnp.stack(mlist, axis=0)                                   # (9, 1, P)

    w1_k = (p['w1'].reshape(9, Cin)[:, :, None] * masks).astype(compute_dtype)   # (9, Cin, P)
    w4_k = (p['w4'].reshape(9, Cout)[:, :, None] * masks).astype(compute_dtype)  # (9, Cout, P)
    b1_k = p['b1'].reshape(Cin, 1)                                     # f32
    b4_k = p['b4'].reshape(Cout, 1)
    wf_k = (p['wp1'] @ p['wp2']).T.astype(compute_dtype)               # (Cout, Cin)
    bf_k = (p['b2'] @ p['wp2'] + p['b3']).reshape(Cout, 1)             # f32

    kernel = functools.partial(_sgblock_kernel, width=W, block_batch=Bt)
    out2 = pl.pallas_call(
        kernel,
        out_shape=jax.ShapeDtypeStruct((N, Cout, P), jnp.float32),
        grid=(N // Bt,),
        in_specs=[
            pl.BlockSpec((Bt, Cin, P), lambda b: (b, 0, 0)),
            pl.BlockSpec((9, Cin, P), lambda b: (0, 0, 0)),
            pl.BlockSpec((Cin, 1), lambda b: (0, 0)),
            pl.BlockSpec((Cout, Cin), lambda b: (0, 0)),
            pl.BlockSpec((Cout, 1), lambda b: (0, 0)),
            pl.BlockSpec((9, Cout, P), lambda b: (0, 0, 0)),
            pl.BlockSpec((Cout, 1), lambda b: (0, 0)),
        ],
        out_specs=pl.BlockSpec((Bt, Cout, P), lambda b: (b, 0, 0)),
        compiler_params=pltpu.CompilerParams(dimension_semantics=("parallel",)),
    )(x2, w1_k, b1_k, wf_k, bf_k, w4_k, b4_k)

    return out2.reshape(N, Cout, H, W)                                 # free view back to NCHW


# ------------------------- parameter init (deterministic, synthetic) -------------------------

def init_params(key, inp, oup, expand_ratio):
    hidden = inp // expand_ratio
    if hidden < oup / 6.0:
        hidden = math.ceil(oup / 6.0)
        hidden = _make_divisible(hidden, 16)
    eps = 1e-5
    ks = jax.random.split(key, 8)

    def bn(k, c):
        k1, k2, k3, k4 = jax.random.split(k, 4)
        gamma = jax.random.uniform(k1, (c,), jnp.float32, 0.5, 1.5)
        beta = 0.1 * jax.random.normal(k2, (c,), jnp.float32)
        mean = 0.1 * jax.random.normal(k3, (c,), jnp.float32)
        var = jax.random.uniform(k4, (c,), jnp.float32, 0.5, 1.5)
        scale = gamma / jnp.sqrt(var + eps)
        bias = beta - mean * scale
        return scale, bias

    dw1 = 0.2 * jax.random.normal(ks[0], (3, 3, inp), jnp.float32)
    pw1 = 0.2 * jax.random.normal(ks[1], (inp, hidden), jnp.float32)
    pw2 = 0.2 * jax.random.normal(ks[2], (hidden, oup), jnp.float32)
    dw2 = 0.2 * jax.random.normal(ks[3], (3, 3, oup), jnp.float32)
    s1, b1 = bn(ks[4], inp)
    s2, b2 = bn(ks[5], hidden)
    s3, b3 = bn(ks[6], oup)
    s4, b4 = bn(ks[7], oup)

    params = dict(
        w1=dw1 * s1[None, None, :], b1=b1[None, :],     # dw3x3 + BN1 folded
        wp1=pw1 * s2[None, :], b2=b2[None, :],          # 1x1 inp->hidden + BN2
        wp2=pw2 * s3[None, :], b3=b3[None, :],          # 1x1 hidden->oup + BN3
        w4=dw2 * s4[None, None, :], b4=b4[None, :],     # dw3x3 + BN4 folded
    )
    return params, hidden


# ------------------------- pure-JAX reference (for correctness check) -------------------------

def reference_forward(x_nchw, p):
    x = jnp.transpose(x_nchw, (0, 2, 3, 1)).astype(jnp.float32)

    def dw(xin, w, b):
        rhs = w.reshape(3, 3, 1, w.shape[-1])
        y = lax.conv_general_dilated(
            xin, rhs, window_strides=(1, 1), padding=((1, 1), (1, 1)),
            dimension_numbers=('NHWC', 'HWIO', 'NHWC'),
            feature_group_count=w.shape[-1])
        return y + b.reshape(1, 1, 1, -1)

    t = jnp.clip(dw(x, p['w1'], p['b1']), 0.0, 6.0)
    u = jnp.einsum('nhwc,cd->nhwd', t, p['wp1']) + p['b2'].reshape(1, 1, 1, -1)
    v = jnp.clip(jnp.einsum('nhwc,cd->nhwd', u, p['wp2'])
                 + p['b3'].reshape(1, 1, 1, -1), 0.0, 6.0)
    out = dw(v, p['w4'], p['b4']) + x
    return jnp.transpose(out, (0, 3, 1, 2))


if __name__ == "__main__":
    inp = oup = 32
    expand_ratio = 6          # -> identity (residual) branch, hidden_dim = 16
    N, H, W = 8, 16, 16       # small, but enough images to exercise the batched grid

    key = jax.random.PRNGKey(0)
    kx, kp = jax.random.split(key)
    params, hidden = init_params(kp, inp, oup, expand_ratio)

    # PyTorch-style NCHW input
    x = jax.random.normal(kx, (N, inp, H, W), jnp.float32)
    ref = reference_forward(x, params)

    # 1) Strict structural check: force the f32 compute path (matches PyTorch eval math).
    fwd_f32 = jax.jit(functools.partial(sgblock_forward, compute_dtype=jnp.float32))
    out_f32 = jax.block_until_ready(fwd_f32(x, params))
    assert out_f32.shape == (N, oup, H, W)
    err_f32 = float(jnp.max(jnp.abs(out_f32 - ref)))
    assert jnp.allclose(out_f32, ref, atol=1e-3, rtol=1e-3), f"f32 path max abs err {err_f32}"

    # 2) Fast path (bf16 depthwise/matmul on v6e/v7x, f32 on v5e); looser tolerance is
    #    only needed for bf16 rounding -- the f32 check above already pins the structure.
    fwd = jax.jit(sgblock_forward)
    out = jax.block_until_ready(fwd(x, params))
    assert out.shape == (N, oup, H, W)
    if _default_compute_dtype() == jnp.float32:
        atol, rtol = 1e-3, 1e-3
    else:
        atol, rtol = 2.5e-1, 5e-2
    err = float(jnp.max(jnp.abs(out - ref)))
    assert jnp.allclose(out, ref, atol=atol, rtol=rtol), f"fast path max abs err {err}"

    print("KERNEL_OK")
</pallas_src>

<mosaic_0001>
module attributes {stable_mosaic.version = 11 : i64} {
  func.func @_sgblock_kernel(%arg0: i32, %arg1: memref<4x32x256xf32, #tpu.memory_space<vmem>>, %arg2: memref<9x32x256xf32, #tpu.memory_space<vmem>>, %arg3: memref<32x1xf32, #tpu.memory_space<vmem>>, %arg4: memref<32x32xf32, #tpu.memory_space<vmem>>, %arg5: memref<32x1xf32, #tpu.memory_space<vmem>>, %arg6: memref<9x32x256xf32, #tpu.memory_space<vmem>>, %arg7: memref<32x1xf32, #tpu.memory_space<vmem>>, %arg8: memref<4x32x256xf32, #tpu.memory_space<vmem>>) attributes {dimension_semantics = [#tpu.dimension_semantics<parallel>], iteration_bounds = array<i64: 2>, scalar_prefetch = 0 : i64, scratch_operands = 0 : i64, tpu.core_type = #tpu.core_type<tc>, window_params = [{transform_indices = @transform_0, window_bounds = array<i64: 4, 32, 256>}, {pipeline_mode = #tpu.pipeline_mode<synchronous>, transform_indices = @transform_1, window_bounds = array<i64: 9, 32, 256>}, {pipeline_mode = #tpu.pipeline_mode<synchronous>, transform_indices = @transform_2, window_bounds = array<i64: 32, 1>}, {pipeline_mode = #tpu.pipeline_mode<synchronous>, transform_indices = @transform_3, window_bounds = array<i64: 32, 32>}, {pipeline_mode = #tpu.pipeline_mode<synchronous>, transform_indices = @transform_4, window_bounds = array<i64: 32, 1>}, {pipeline_mode = #tpu.pipeline_mode<synchronous>, transform_indices = @transform_5, window_bounds = array<i64: 9, 32, 256>}, {pipeline_mode = #tpu.pipeline_mode<synchronous>, transform_indices = @transform_6, window_bounds = array<i64: 32, 1>}, {transform_indices = @transform_7, window_bounds = array<i64: 4, 32, 256>}]} {
    %c0_i32 = arith.constant 0 : i32
    %0 = arith.index_cast %c0_i32 : i32 to index
    %c0 = arith.constant 0 : index
    %c0_0 = arith.constant 0 : index
    %1 = vector.load %arg1[%0, %c0, %c0_0] : memref<4x32x256xf32, #tpu.memory_space<vmem>>, vector<1x32x256xf32>
    %2 = vector.shape_cast %1 : vector<1x32x256xf32> to vector<32x256xf32>
    %c4 = arith.constant 4 : index
    %c0_1 = arith.constant 0 : index
    %c0_2 = arith.constant 0 : index
    %3 = vector.load %arg2[%c4, %c0_1, %c0_2] : memref<9x32x256xf32, #tpu.memory_space<vmem>>, vector<1x32x256xf32>
    %4 = vector.shape_cast %3 : vector<1x32x256xf32> to vector<32x256xf32>
    %5 = arith.mulf %2, %4 : vector<32x256xf32>
    %c17_i32 = arith.constant 17 : i32
    %6 = tpu.dynamic_rotate %2 by %c17_i32 dim 1 : vector<32x256xf32>, i32 -> vector<32x256xf32>
    %c0_3 = arith.constant 0 : index
    %c0_4 = arith.constant 0 : index
    %c0_5 = arith.constant 0 : index
    %7 = vector.load %arg2[%c0_3, %c0_4, %c0_5] : memref<9x32x256xf32, #tpu.memory_space<vmem>>, vector<1x32x256xf32>
    %8 = vector.shape_cast %7 : vector<1x32x256xf32> to vector<32x256xf32>
    %9 = arith.mulf %6, %8 : vector<32x256xf32>
    %10 = arith.addf %5, %9 : vector<32x256xf32>
    %c16_i32 = arith.constant 16 : i32
    %11 = tpu.dynamic_rotate %2 by %c16_i32 dim 1 : vector<32x256xf32>, i32 -> vector<32x256xf32>
    %c1 = arith.constant 1 : index
    %c0_6 = arith.constant 0 : index
    %c0_7 = arith.constant 0 : index
    %12 = vector.load %arg2[%c1, %c0_6, %c0_7] : memref<9x32x256xf32, #tpu.memory_space<vmem>>, vector<1x32x256xf32>
    %13 = vector.shape_cast %12 : vector<1x32x256xf32> to vector<32x256xf32>
    %14 = arith.mulf %11, %13 : vector<32x256xf32>
    %15 = arith.addf %10, %14 : vector<32x256xf32>
    %c15_i32 = arith.constant 15 : i32
    %16 = tpu.dynamic_rotate %2 by %c15_i32 dim 1 : vector<32x256xf32>, i32 -> vector<32x256xf32>
    %c2 = arith.constant 2 : index
    %c0_8 = arith.constant 0 : index
    %c0_9 = arith.constant 0 : index
    %17 = vector.load %arg2[%c2, %c0_8, %c0_9] : memref<9x32x256xf32, #tpu.memory_space<vmem>>, vector<1x32x256xf32>
    %18 = vector.shape_cast %17 : vector<1x32x256xf32> to vector<32x256xf32>
    %19 = arith.mulf %16, %18 : vector<32x256xf32>
    %20 = arith.addf %15, %19 : vector<32x256xf32>
    %c1_i32 = arith.constant 1 : i32
    %21 = tpu.dynamic_rotate %2 by %c1_i32 dim 1 : vector<32x256xf32>, i32 -> vector<32x256xf32>
    %c3 = arith.constant 3 : index
    %c0_10 = arith.constant 0 : index
    %c0_11 = arith.constant 0 : index
    %22 = vector.load %arg2[%c3, %c0_10, %c0_11] : memref<9x32x256xf32, #tpu.memory_space<vmem>>, vector<1x32x256xf32>
    %23 = vector.shape_cast %22 : vector<1x32x256xf32> to vector<32x256xf32>
    %24 = arith.mulf %21, %23 : vector<32x256xf32>
    %25 = arith.addf %20, %24 : vector<32x256xf32>
    %c255_i32 = arith.constant 255 : i32
    %26 = tpu.dynamic_rotate %2 by %c255_i32 dim 1 : vector<32x256xf32>, i32 -> vector<32x256xf32>
    %c5 = arith.constant 5 : index
    %c0_12 = arith.constant 0 : index
    %c0_13 = arith.constant 0 : index
    %27 = vector.load %arg2[%c5, %c0_12, %c0_13] : memref<9x32x256xf32, #tpu.memory_space<vmem>>, vector<1x32x256xf32>
    %28 = vector.shape_cast %27 : vector<1x32x256xf32> to vector<32x256xf32>
    %29 = arith.mulf %26, %28 : vector<32x256xf32>
    %30 = arith.addf %25, %29 : vector<32x256xf32>
    %c241_i32 = arith.constant 241 : i32
    %31 = tpu.dynamic_rotate %2 by %c241_i32 dim 1 : vector<32x256xf32>, i32 -> vector<32x256xf32>
    %c6 = arith.constant 6 : index
    %c0_14 = arith.constant 0 : index
    %c0_15 = arith.constant 0 : index
    %32 = vector.load %arg2[%c6, %c0_14, %c0_15] : memref<9x32x256xf32, #tpu.memory_space<vmem>>, vector<1x32x256xf32>
    %33 = vector.shape_cast %32 : vector<1x32x256xf32> to vector<32x256xf32>
    %34 = arith.mulf %31, %33 : vector<32x256xf32>
    %35 = arith.addf %30, %34 : vector<32x256xf32>
    %c240_i32 = arith.constant 240 : i32
    %36 = tpu.dynamic_rotate %2 by %c240_i32 dim 1 : vector<32x256xf32>, i32 -> vector<32x256xf32>
    %c7 = arith.constant 7 : index
    %c0_16 = arith.constant 0 : index
    %c0_17 = arith.constant 0 : index
    %37 = vector.load %arg2[%c7, %c0_16, %c0_17] : memref<9x32x256xf32, #tpu.memory_space<vmem>>, vector<1x32x256xf32>
    %38 = vector.shape_cast %37 : vector<1x32x256xf32> to vector<32x256xf32>
    %39 = arith.mulf %36, %38 : vector<32x256xf32>
    %40 = arith.addf %35, %39 : vector<32x256xf32>
    %c239_i32 = arith.constant 239 : i32
    %41 = tpu.dynamic_rotate %2 by %c239_i32 dim 1 : vector<32x256xf32>, i32 -> vector<32x256xf32>
    %c8 = arith.constant 8 : index
    %c0_18 = arith.constant 0 : index
    %c0_19 = arith.constant 0 : index
    %42 = vector.load %arg2[%c8, %c0_18, %c0_19] : memref<9x32x256xf32, #tpu.memory_space<vmem>>, vector<1x32x256xf32>
    %43 = vector.shape_cast %42 : vector<1x32x256xf32> to vector<32x256xf32>
    %44 = arith.mulf %41, %43 : vector<32x256xf32>
    %45 = arith.addf %40, %44 : vector<32x256xf32>
    %c0_20 = arith.constant 0 : index
    %c0_21 = arith.constant 0 : index
    %46 = vector.load %arg3[%c0_20, %c0_21] : memref<32x1xf32, #tpu.memory_space<vmem>>, vector<32x1xf32>
    %47 = vector.broadcast %46 : vector<32x1xf32> to vector<32x256xf32>
    %48 = arith.addf %45, %47 : vector<32x256xf32>
    %cst = arith.constant 0.000000e+00 : f32
    %cst_22 = arith.constant 6.000000e+00 : f32
    %49 = vector.broadcast %cst : f32 to vector<32x256xf32>
    %50 = arith.maximumf %49, %48 : vector<32x256xf32>
    %51 = vector.broadcast %cst_22 : f32 to vector<32x256xf32>
    %52 = arith.minimumf %51, %50 : vector<32x256xf32>
    %c0_23 = arith.constant 0 : index
    %c0_24 = arith.constant 0 : index
    %53 = vector.load %arg4[%c0_23, %c0_24] : memref<32x32xf32, #tpu.memory_space<vmem>>, vector<32x32xf32>
    %cst_25 = arith.constant dense<0.000000e+00> : vector<32x256xf32>
    %54 = tpu.matmul %53, %52, %cst_25 {dimension_numbers = #tpu.dot_dimension_numbers<[1], [0], [0], [1], [0, 0, 1, 1], [], []>} : vector<32x32xf32>, vector<32x256xf32>, vector<32x256xf32> -> vector<32x256xf32>
    %c0_26 = arith.constant 0 : index
    %c0_27 = arith.constant 0 : index
    %55 = vector.load %arg5[%c0_26, %c0_27] : memref<32x1xf32, #tpu.memory_space<vmem>>, vector<32x1xf32>
    %56 = vector.broadcast %55 : vector<32x1xf32> to vector<32x256xf32>
    %57 = arith.addf %54, %56 : vector<32x256xf32>
    %cst_28 = arith.constant 0.000000e+00 : f32
    %cst_29 = arith.constant 6.000000e+00 : f32
    %58 = vector.broadcast %cst_28 : f32 to vector<32x256xf32>
    %59 = arith.maximumf %58, %57 : vector<32x256xf32>
    %60 = vector.broadcast %cst_29 : f32 to vector<32x256xf32>
    %61 = arith.minimumf %60, %59 : vector<32x256xf32>
    %c4_30 = arith.constant 4 : index
    %c0_31 = arith.constant 0 : index
    %c0_32 = arith.constant 0 : index
    %62 = vector.load %arg6[%c4_30, %c0_31, %c0_32] : memref<9x32x256xf32, #tpu.memory_space<vmem>>, vector<1x32x256xf32>
    %63 = vector.shape_cast %62 : vector<1x32x256xf32> to vector<32x256xf32>
    %64 = arith.mulf %61, %63 : vector<32x256xf32>
    %c17_i32_33 = arith.constant 17 : i32
    %65 = tpu.dynamic_rotate %61 by %c17_i32_33 dim 1 : vector<32x256xf32>, i32 -> vector<32x256xf32>
    %c0_34 = arith.constant 0 : index
    %c0_35 = arith.constant 0 : index
    %c0_36 = arith.constant 0 : index
    %66 = vector.load %arg6[%c0_34, %c0_35, %c0_36] : memref<9x32x256xf32, #tpu.memory_space<vmem>>, vector<1x32x256xf32>
    %67 = vector.shape_cast %66 : vector<1x32x256xf32> to vector<32x256xf32>
    %68 = arith.mulf %65, %67 : vector<32x256xf32>
    %69 = arith.addf %64, %68 : vector<32x256xf32>
    %c16_i32_37 = arith.constant 16 : i32
    %70 = tpu.dynamic_rotate %61 by %c16_i32_37 dim 1 : vector<32x256xf32>, i32 -> vector<32x256xf32>
    %c1_38 = arith.constant 1 : index
    %c0_39 = arith.constant 0 : index
    %c0_40 = arith.constant 0 : index
    %71 = vector.load %arg6[%c1_38, %c0_39, %c0_40] : memref<9x32x256xf32, #tpu.memory_space<vmem>>, vector<1x32x256xf32>
    %72 = vector.shape_cast %71 : vector<1x32x256xf32> to vector<32x256xf32>
    %73 = arith.mulf %70, %72 : vector<32x256xf32>
    %74 = arith.addf %69, %73 : vector<32x256xf32>
    %c15_i32_41 = arith.constant 15 : i32
    %75 = tpu.dynamic_rotate %61 by %c15_i32_41 dim 1 : vector<32x256xf32>, i32 -> vector<32x256xf32>
    %c2_42 = arith.constant 2 : index
    %c0_43 = arith.constant 0 : index
    %c0_44 = arith.constant 0 : index
    %76 = vector.load %arg6[%c2_42, %c0_43, %c0_44] : memref<9x32x256xf32, #tpu.memory_space<vmem>>, vector<1x32x256xf32>
    %77 = vector.shape_cast %76 : vector<1x32x256xf32> to vector<32x256xf32>
    %78 = arith.mulf %75, %77 : vector<32x256xf32>
    %79 = arith.addf %74, %78 : vector<32x256xf32>
    %c1_i32_45 = arith.constant 1 : i32
    %80 = tpu.dynamic_rotate %61 by %c1_i32_45 dim 1 : vector<32x256xf32>, i32 -> vector<32x256xf32>
    %c3_46 = arith.constant 3 : index
    %c0_47 = arith.constant 0 : index
    %c0_48 = arith.constant 0 : index
    %81 = vector.load %arg6[%c3_46, %c0_47, %c0_48] : memref<9x32x256xf32, #tpu.memory_space<vmem>>, vector<1x32x256xf32>
    %82 = vector.shape_cast %81 : vector<1x32x256xf32> to vector<32x256xf32>
    %83 = arith.mulf %80, %82 : vector<32x256xf32>
    %84 = arith.addf %79, %83 : vector<32x256xf32>
    %c255_i32_49 = arith.constant 255 : i32
    %85 = tpu.dynamic_rotate %61 by %c255_i32_49 dim 1 : vector<32x256xf32>, i32 -> vector<32x256xf32>
    %c5_50 = arith.constant 5 : index
    %c0_51 = arith.constant 0 : index
    %c0_52 = arith.constant 0 : index
    %86 = vector.load %arg6[%c5_50, %c0_51, %c0_52] : memref<9x32x256xf32, #tpu.memory_space<vmem>>, vector<1x32x256xf32>
    %87 = vector.shape_cast %86 : vector<1x32x256xf32> to vector<32x256xf32>
    %88 = arith.mulf %85, %87 : vector<32x256xf32>
    %89 = arith.addf %84, %88 : vector<32x256xf32>
    %c241_i32_53 = arith.constant 241 : i32
    %90 = tpu.dynamic_rotate %61 by %c241_i32_53 dim 1 : vector<32x256xf32>, i32 -> vector<32x256xf32>
    %c6_54 = arith.constant 6 : index
    %c0_55 = arith.constant 0 : index
    %c0_56 = arith.constant 0 : index
    %91 = vector.load %arg6[%c6_54, %c0_55, %c0_56] : memref<9x32x256xf32, #tpu.memory_space<vmem>>, vector<1x32x256xf32>
    %92 = vector.shape_cast %91 : vector<1x32x256xf32> to vector<32x256xf32>
    %93 = arith.mulf %90, %92 : vector<32x256xf32>
    %94 = arith.addf %89, %93 : vector<32x256xf32>
    %c240_i32_57 = arith.constant 240 : i32
    %95 = tpu.dynamic_rotate %61 by %c240_i32_57 dim 1 : vector<32x256xf32>, i32 -> vector<32x256xf32>
    %c7_58 = arith.constant 7 : index
    %c0_59 = arith.constant 0 : index
    %c0_60 = arith.constant 0 : index
    %96 = vector.load %arg6[%c7_58, %c0_59, %c0_60] : memref<9x32x256xf32, #tpu.memory_space<vmem>>, vector<1x32x256xf32>
    %97 = vector.shape_cast %96 : vector<1x32x256xf32> to vector<32x256xf32>
    %98 = arith.mulf %95, %97 : vector<32x256xf32>
    %99 = arith.addf %94, %98 : vector<32x256xf32>
    %c239_i32_61 = arith.constant 239 : i32
    %100 = tpu.dynamic_rotate %61 by %c239_i32_61 dim 1 : vector<32x256xf32>, i32 -> vector<32x256xf32>
    %c8_62 = arith.constant 8 : index
    %c0_63 = arith.constant 0 : index
    %c0_64 = arith.constant 0 : index
    %101 = vector.load %arg6[%c8_62, %c0_63, %c0_64] : memref<9x32x256xf32, #tpu.memory_space<vmem>>, vector<1x32x256xf32>
    %102 = vector.shape_cast %101 : vector<1x32x256xf32> to vector<32x256xf32>
    %103 = arith.mulf %100, %102 : vector<32x256xf32>
    %104 = arith.addf %99, %103 : vector<32x256xf32>
    %c0_65 = arith.constant 0 : index
    %c0_66 = arith.constant 0 : index
    %105 = vector.load %arg7[%c0_65, %c0_66] : memref<32x1xf32, #tpu.memory_space<vmem>>, vector<32x1xf32>
    %106 = vector.broadcast %105 : vector<32x1xf32> to vector<32x256xf32>
    %107 = arith.addf %104, %106 : vector<32x256xf32>
    %108 = arith.addf %107, %2 : vector<32x256xf32>
    %109 = arith.index_cast %c0_i32 : i32 to index
    %c0_67 = arith.constant 0 : index
    %c0_68 = arith.constant 0 : index
    %110 = vector.load %arg8[%109, %c0_67, %c0_68] : memref<4x32x256xf32, #tpu.memory_space<vmem>>, vector<1x32x256xf32>
    %111 = vector.shape_cast %110 : vector<1x32x256xf32> to vector<32x256xf32>
    %112 = vector.shape_cast %108 : vector<32x256xf32> to vector<1x32x256xf32>
    tpu.vector_store %arg8[%109, %c0_67, %c0_68], %112 {strides = array<i32>} : memref<4x32x256xf32, #tpu.memory_space<vmem>>, vector<1x32x256xf32>,
    %c1_i32_69 = arith.constant 1 : i32
    %113 = arith.index_cast %c1_i32_69 : i32 to index
    %c0_70 = arith.constant 0 : index
    %c0_71 = arith.constant 0 : index
    %114 = vector.load %arg1[%113, %c0_70, %c0_71] : memref<4x32x256xf32, #tpu.memory_space<vmem>>, vector<1x32x256xf32>
    %115 = vector.shape_cast %114 : vector<1x32x256xf32> to vector<32x256xf32>
    %c4_72 = arith.constant 4 : index
    %c0_73 = arith.constant 0 : index
    %c0_74 = arith.constant 0 : index
    %116 = vector.load %arg2[%c4_72, %c0_73, %c0_74] : memref<9x32x256xf32, #tpu.memory_space<vmem>>, vector<1x32x256xf32>
    %117 = vector.shape_cast %116 : vector<1x32x256xf32> to vector<32x256xf32>
    %118 = arith.mulf %115, %117 : vector<32x256xf32>
    %c17_i32_75 = arith.constant 17 : i32
    %119 = tpu.dynamic_rotate %115 by %c17_i32_75 dim 1 : vector<32x256xf32>, i32 -> vector<32x256xf32>
    %c0_76 = arith.constant 0 : index
    %c0_77 = arith.constant 0 : index
    %c0_78 = arith.constant 0 : index
    %120 = vector.load %arg2[%c0_76, %c0_77, %c0_78] : memref<9x32x256xf32, #tpu.memory_space<vmem>>, vector<1x32x256xf32>
    %121 = vector.shape_cast %120 : vector<1x32x256xf32> to vector<32x256xf32>
    %122 = arith.mulf %119, %121 : vector<32x256xf32>
    %123 = arith.addf %118, %122 : vector<32x256xf32>
    %c16_i32_79 = arith.constant 16 : i32
    %124 = tpu.dynamic_rotate %115 by %c16_i32_79 dim 1 : vector<32x256xf32>, i32 -> vector<32x256xf32>
    %c1_80 = arith.constant 1 : index
    %c0_81 = arith.constant 0 : index
    %c0_82 = arith.constant 0 : index
    %125 = vector.load %arg2[%c1_80, %c0_81, %c0_82] : memref<9x32x256xf32, #tpu.memory_space<vmem>>, vector<1x32x256xf32>
    %126 = vector.shape_cast %125 : vector<1x32x256xf32> to vector<32x256xf32>
    %127 = arith.mulf %124, %126 : vector<32x256xf32>
    %128 = arith.addf %123, %127 : vector<32x256xf32>
    %c15_i32_83 = arith.constant 15 : i32
    %129 = tpu.dynamic_rotate %115 by %c15_i32_83 dim 1 : vector<32x256xf32>, i32 -> vector<32x256xf32>
    %c2_84 = arith.constant 2 : index
    %c0_85 = arith.constant 0 : index
    %c0_86 = arith.constant 0 : index
    %130 = vector.load %arg2[%c2_84, %c0_85, %c0_86] : memref<9x32x256xf32, #tpu.memory_space<vmem>>, vector<1x32x256xf32>
    %131 = vector.shape_cast %130 : vector<1x32x256xf32> to vector<32x256xf32>
    %132 = arith.mulf %129, %131 : vector<32x256xf32>
    %133 = arith.addf %128, %132 : vector<32x256xf32>
    %c1_i32_87 = arith.constant 1 : i32
    %134 = tpu.dynamic_rotate %115 by %c1_i32_87 dim 1 : vector<32x256xf32>, i32 -> vector<32x256xf32>
    %c3_88 = arith.constant 3 : index
    %c0_89 = arith.constant 0 : index
    %c0_90 = arith.constant 0 : index
    %135 = vector.load %arg2[%c3_88, %c0_89, %c0_90] : memref<9x32x256xf32, #tpu.memory_space<vmem>>, vector<1x32x256xf32>
    %136 = vector.shape_cast %135 : vector<1x32x256xf32> to vector<32x256xf32>
    %137 = arith.mulf %134, %136 : vector<32x256xf32>
    %138 = arith.addf %133, %137 : vector<32x256xf32>
    %c255_i32_91 = arith.constant 255 : i32
    %139 = tpu.dynamic_rotate %115 by %c255_i32_91 dim 1 : vector<32x256xf32>, i32 -> vector<32x256xf32>
    %c5_92 = arith.constant 5 : index
    %c0_93 = arith.constant 0 : index
    %c0_94 = arith.constant 0 : index
    %140 = vector.load %arg2[%c5_92, %c0_93, %c0_94] : memref<9x32x256xf32, #tpu.memory_space<vmem>>, vector<1x32x256xf32>
    %141 = vector.shape_cast %140 : vector<1x32x256xf32> to vector<32x256xf32>
    %142 = arith.mulf %139, %141 : vector<32x256xf32>
    %143 = arith.addf %138, %142 : vector<32x256xf32>
    %c241_i32_95 = arith.constant 241 : i32
    %144 = tpu.dynamic_rotate %115 by %c241_i32_95 dim 1 : vector<32x256xf32>, i32 -> vector<32x256xf32>
    %c6_96 = arith.constant 6 : index
    %c0_97 = arith.constant 0 : index
    %c0_98 = arith.constant 0 : index
    %145 = vector.load %arg2[%c6_96, %c0_97, %c0_98] : memref<9x32x256xf32, #tpu.memory_space<vmem>>, vector<1x32x256xf32>
    %146 = vector.shape_cast %145 : vector<1x32x256xf32> to vector<32x256xf32>
    %147 = arith.mulf %144, %146 : vector<32x256xf32>
    %148 = arith.addf %143, %147 : vector<32x256xf32>
    %c240_i32_99 = arith.constant 240 : i32
    %149 = tpu.dynamic_rotate %115 by %c240_i32_99 dim 1 : vector<32x256xf32>, i32 -> vector<32x256xf32>
    %c7_100 = arith.constant 7 : index
    %c0_101 = arith.constant 0 : index
    %c0_102 = arith.constant 0 : index
    %150 = vector.load %arg2[%c7_100, %c0_101, %c0_102] : memref<9x32x256xf32, #tpu.memory_space<vmem>>, vector<1x32x256xf32>
    %151 = vector.shape_cast %150 : vector<1x32x256xf32> to vector<32x256xf32>
    %152 = arith.mulf %149, %151 : vector<32x256xf32>
    %153 = arith.addf %148, %152 : vector<32x256xf32>
    %c239_i32_103 = arith.constant 239 : i32
    %154 = tpu.dynamic_rotate %115 by %c239_i32_103 dim 1 : vector<32x256xf32>, i32 -> vector<32x256xf32>
    %c8_104 = arith.constant 8 : index
    %c0_105 = arith.constant 0 : index
    %c0_106 = arith.constant 0 : index
    %155 = vector.load %arg2[%c8_104, %c0_105, %c0_106] : memref<9x32x256xf32, #tpu.memory_space<vmem>>, vector<1x32x256xf32>
    %156 = vector.shape_cast %155 : vector<1x32x256xf32> to vector<32x256xf32>
    %157 = arith.mulf %154, %156 : vector<32x256xf32>
    %158 = arith.addf %153, %157 : vector<32x256xf32>
    %c0_107 = arith.constant 0 : index
    %c0_108 = arith.constant 0 : index
    %159 = vector.load %arg3[%c0_107, %c0_108] : memref<32x1xf32, #tpu.memory_space<vmem>>, vector<32x1xf32>
    %160 = vector.broadcast %159 : vector<32x1xf32> to vector<32x256xf32>
    %161 = arith.addf %158, %160 : vector<32x256xf32>
    %cst_109 = arith.constant 0.000000e+00 : f32
    %cst_110 = arith.constant 6.000000e+00 : f32
    %162 = vector.broadcast %cst_109 : f32 to vector<32x256xf32>
    %163 = arith.maximumf %162, %161 : vector<32x256xf32>
    %164 = vector.broadcast %cst_110 : f32 to vector<32x256xf32>
    %165 = arith.minimumf %164, %163 : vector<32x256xf32>
    %c0_111 = arith.constant 0 : index
    %c0_112 = arith.constant 0 : index
    %166 = vector.load %arg4[%c0_111, %c0_112] : memref<32x32xf32, #tpu.memory_space<vmem>>, vector<32x32xf32>
    %cst_113 = arith.constant dense<0.000000e+00> : vector<32x256xf32>
    %167 = tpu.matmul %166, %165, %cst_113 {dimension_numbers = #tpu.dot_dimension_numbers<[1], [0], [0], [1], [0, 0, 1, 1], [], []>} : vector<32x32xf32>, vector<32x256xf32>, vector<32x256xf32> -> vector<32x256xf32>
    %c0_114 = arith.constant 0 : index
    %c0_115 = arith.constant 0 : index
    %168 = vector.load %arg5[%c0_114, %c0_115] : memref<32x1xf32, #tpu.memory_space<vmem>>, vector<32x1xf32>
    %169 = vector.broadcast %168 : vector<32x1xf32> to vector<32x256xf32>
    %170 = arith.addf %167, %169 : vector<32x256xf32>
    %cst_116 = arith.constant 0.000000e+00 : f32
    %cst_117 = arith.constant 6.000000e+00 : f32
    %171 = vector.broadcast %cst_116 : f32 to vector<32x256xf32>
    %172 = arith.maximumf %171, %170 : vector<32x256xf32>
    %173 = vector.broadcast %cst_117 : f32 to vector<32x256xf32>
    %174 = arith.minimumf %173, %172 : vector<32x256xf32>
    %c4_118 = arith.constant 4 : index
    %c0_119 = arith.constant 0 : index
    %c0_120 = arith.constant 0 : index
    %175 = vector.load %arg6[%c4_118, %c0_119, %c0_120] : memref<9x32x256xf32, #tpu.memory_space<vmem>>, vector<1x32x256xf32>
    %176 = vector.shape_cast %175 : vector<1x32x256xf32> to vector<32x256xf32>
    %177 = arith.mulf %174, %176 : vector<32x256xf32>
    %c17_i32_121 = arith.constant 17 : i32
    %178 = tpu.dynamic_rotate %174 by %c17_i32_121 dim 1 : vector<32x256xf32>, i32 -> vector<32x256xf32>
    %c0_122 = arith.constant 0 : index
    %c0_123 = arith.constant 0 : index
    %c0_124 = arith.constant 0 : index
    %179 = vector.load %arg6[%c0_122, %c0_123, %c0_124] : memref<9x32x256xf32, #tpu.memory_space<vmem>>, vector<1x32x256xf32>
    %180 = vector.shape_cast %179 : vector<1x32x256xf32> to vector<32x256xf32>
    %181 = arith.mulf %178, %180 : vector<32x256xf32>
    %182 = arith.addf %177, %181 : vector<32x256xf32>
    %c16_i32_125 = arith.constant 16 : i32
    %183 = tpu.dynamic_rotate %174 by %c16_i32_125 dim 1 : vector<32x256xf32>, i32 -> vector<32x256xf32>
    %c1_126 = arith.constant 1 : index
    %c0_127 = arith.constant 0 : index
    %c0_128 = arith.constant 0 : index
    %184 = vector.load %arg6[%c1_126, %c0_127, %c0_128] : memref<9x32x256xf32, #tpu.memory_space<vmem>>, vector<1x32x256xf32>
    %185 = vector.shape_cast %184 : vector<1x32x256xf32> to vector<32x256xf32>
    %186 = arith.mulf %183, %185 : vector<32x256xf32>
    %187 = arith.addf %182, %186 : vector<32x256xf32>
    %c15_i32_129 = arith.constant 15 : i32
    %188 = tpu.dynamic_rotate %174 by %c15_i32_129 dim 1 : vector<32x256xf32>, i32 -> vector<32x256xf32>
    %c2_130 = arith.constant 2 : index
    %c0_131 = arith.constant 0 : index
    %c0_132 = arith.constant 0 : index
    %189 = vector.load %arg6[%c2_130, %c0_131, %c0_132] : memref<9x32x256xf32, #tpu.memory_space<vmem>>, vector<1x32x256xf32>
    %190 = vector.shape_cast %189 : vector<1x32x256xf32> to vector<32x256xf32>
    %191 = arith.mulf %188, %190 : vector<32x256xf32>
    %192 = arith.addf %187, %191 : vector<32x256xf32>
    %c1_i32_133 = arith.constant 1 : i32
    %193 = tpu.dynamic_rotate %174 by %c1_i32_133 dim 1 : vector<32x256xf32>, i32 -> vector<32x256xf32>
    %c3_134 = arith.constant 3 : index
    %c0_135 = arith.constant 0 : index
    %c0_136 = arith.constant 0 : index
    %194 = vector.load %arg6[%c3_134, %c0_135, %c0_136] : memref<9x32x256xf32, #tpu.memory_space<vmem>>, vector<1x32x256xf32>
    %195 = vector.shape_cast %194 : vector<1x32x256xf32> to vector<32x256xf32>
    %196 = arith.mulf %193, %195 : vector<32x256xf32>
    %197 = arith.addf %192, %196 : vector<32x256xf32>
    %c255_i32_137 = arith.constant 255 : i32
    %198 = tpu.dynamic_rotate %174 by %c255_i32_137 dim 1 : vector<32x256xf32>, i32 -> vector<32x256xf32>
    %c5_138 = arith.constant 5 : index
    %c0_139 = arith.constant 0 : index
    %c0_140 = arith.constant 0 : index
    %199 = vector.load %arg6[%c5_138, %c0_139, %c0_140] : memref<9x32x256xf32, #tpu.memory_space<vmem>>, vector<1x32x256xf32>
    %200 = vector.shape_cast %199 : vector<1x32x256xf32> to vector<32x256xf32>
    %201 = arith.mulf %198, %200 : vector<32x256xf32>
    %202 = arith.addf %197, %201 : vector<32x256xf32>
    %c241_i32_141 = arith.constant 241 : i32
    %203 = tpu.dynamic_rotate %174 by %c241_i32_141 dim 1 : vector<32x256xf32>, i32 -> vector<32x256xf32>
    %c6_142 = arith.constant 6 : index
    %c0_143 = arith.constant 0 : index
    %c0_144 = arith.constant 0 : index
    %204 = vector.load %arg6[%c6_142, %c0_143, %c0_144] : memref<9x32x256xf32, #tpu.memory_space<vmem>>, vector<1x32x256xf32>
    %205 = vector.shape_cast %204 : vector<1x32x256xf32> to vector<32x256xf32>
    %206 = arith.mulf %203, %205 : vector<32x256xf32>
    %207 = arith.addf %202, %206 : vector<32x256xf32>
    %c240_i32_145 = arith.constant 240 : i32
    %208 = tpu.dynamic_rotate %174 by %c240_i32_145 dim 1 : vector<32x256xf32>, i32 -> vector<32x256xf32>
    %c7_146 = arith.constant 7 : index
    %c0_147 = arith.constant 0 : index
    %c0_148 = arith.constant 0 : index
    %209 = vector.load %arg6[%c7_146, %c0_147, %c0_148] : memref<9x32x256xf32, #tpu.memory_space<vmem>>, vector<1x32x256xf32>
    %210 = vector.shape_cast %209 : vector<1x32x256xf32> to vector<32x256xf32>
    %211 = arith.mulf %208, %210 : vector<32x256xf32>
    %212 = arith.addf %207, %211 : vector<32x256xf32>
    %c239_i32_149 = arith.constant 239 : i32
    %213 = tpu.dynamic_rotate %174 by %c239_i32_149 dim 1 : vector<32x256xf32>, i32 -> vector<32x256xf32>
    %c8_150 = arith.constant 8 : index
    %c0_151 = arith.constant 0 : index
    %c0_152 = arith.constant 0 : index
    %214 = vector.load %arg6[%c8_150, %c0_151, %c0_152] : memref<9x32x256xf32, #tpu.memory_space<vmem>>, vector<1x32x256xf32>
    %215 = vector.shape_cast %214 : vector<1x32x256xf32> to vector<32x256xf32>
    %216 = arith.mulf %213, %215 : vector<32x256xf32>
    %217 = arith.addf %212, %216 : vector<32x256xf32>
    %c0_153 = arith.constant 0 : index
    %c0_154 = arith.constant 0 : index
    %218 = vector.load %arg7[%c0_153, %c0_154] : memref<32x1xf32, #tpu.memory_space<vmem>>, vector<32x1xf32>
    %219 = vector.broadcast %218 : vector<32x1xf32> to vector<32x256xf32>
    %220 = arith.addf %217, %219 : vector<32x256xf32>
    %221 = arith.addf %220, %115 : vector<32x256xf32>
    %222 = arith.index_cast %c1_i32_69 : i32 to index
    %c0_155 = arith.constant 0 : index
    %c0_156 = arith.constant 0 : index
    %223 = vector.load %arg8[%222, %c0_155, %c0_156] : memref<4x32x256xf32, #tpu.memory_space<vmem>>, vector<1x32x256xf32>
    %224 = vector.shape_cast %223 : vector<1x32x256xf32> to vector<32x256xf32>
    %225 = vector.shape_cast %221 : vector<32x256xf32> to vector<1x32x256xf32>
    tpu.vector_store %arg8[%222, %c0_155, %c0_156], %225 {strides = array<i32>} : memref<4x32x256xf32, #tpu.memory_space<vmem>>, vector<1x32x256xf32>,
    %c2_i32 = arith.constant 2 : i32
    %226 = arith.index_cast %c2_i32 : i32 to index
    %c0_157 = arith.constant 0 : index
    %c0_158 = arith.constant 0 : index
    %227 = vector.load %arg1[%226, %c0_157, %c0_158] : memref<4x32x256xf32, #tpu.memory_space<vmem>>, vector<1x32x256xf32>
    %228 = vector.shape_cast %227 : vector<1x32x256xf32> to vector<32x256xf32>
    %c4_159 = arith.constant 4 : index
    %c0_160 = arith.constant 0 : index
    %c0_161 = arith.constant 0 : index
    %229 = vector.load %arg2[%c4_159, %c0_160, %c0_161] : memref<9x32x256xf32, #tpu.memory_space<vmem>>, vector<1x32x256xf32>
    %230 = vector.shape_cast %229 : vector<1x32x256xf32> to vector<32x256xf32>
    %231 = arith.mulf %228, %230 : vector<32x256xf32>
    %c17_i32_162 = arith.constant 17 : i32
    %232 = tpu.dynamic_rotate %228 by %c17_i32_162 dim 1 : vector<32x256xf32>, i32 -> vector<32x256xf32>
    %c0_163 = arith.constant 0 : index
    %c0_164 = arith.constant 0 : index
    %c0_165 = arith.constant 0 : index
    %233 = vector.load %arg2[%c0_163, %c0_164, %c0_165] : memref<9x32x256xf32, #tpu.memory_space<vmem>>, vector<1x32x256xf32>
    %234 = vector.shape_cast %233 : vector<1x32x256xf32> to vector<32x256xf32>
    %235 = arith.mulf %232, %234 : vector<32x256xf32>
    %236 = arith.addf %231, %235 : vector<32x256xf32>
    %c16_i32_166 = arith.constant 16 : i32
    %237 = tpu.dynamic_rotate %228 by %c16_i32_166 dim 1 : vector<32x256xf32>, i32 -> vector<32x256xf32>
    %c1_167 = arith.constant 1 : index
    %c0_168 = arith.constant 0 : index
    %c0_169 = arith.constant 0 : index
    %238 = vector.load %arg2[%c1_167, %c0_168, %c0_169] : memref<9x32x256xf32, #tpu.memory_space<vmem>>, vector<1x32x256xf32>
    %239 = vector.shape_cast %238 : vector<1x32x256xf32> to vector<32x256xf32>
    %240 = arith.mulf %237, %239 : vector<32x256xf32>
    %241 = arith.addf %236, %240 : vector<32x256xf32>
    %c15_i32_170 = arith.constant 15 : i32
    %242 = tpu.dynamic_rotate %228 by %c15_i32_170 dim 1 : vector<32x256xf32>, i32 -> vector<32x256xf32>
    %c2_171 = arith.constant 2 : index
    %c0_172 = arith.constant 0 : index
    %c0_173 = arith.constant 0 : index
    %243 = vector.load %arg2[%c2_171, %c0_172, %c0_173] : memref<9x32x256xf32, #tpu.memory_space<vmem>>, vector<1x32x256xf32>
    %244 = vector.shape_cast %243 : vector<1x32x256xf32> to vector<32x256xf32>
    %245 = arith.mulf %242, %244 : vector<32x256xf32>
    %246 = arith.addf %241, %245 : vector<32x256xf32>
    %c1_i32_174 = arith.constant 1 : i32
    %247 = tpu.dynamic_rotate %228 by %c1_i32_174 dim 1 : vector<32x256xf32>, i32 -> vector<32x256xf32>
    %c3_175 = arith.constant 3 : index
    %c0_176 = arith.constant 0 : index
    %c0_177 = arith.constant 0 : index
    %248 = vector.load %arg2[%c3_175, %c0_176, %c0_177] : memref<9x32x256xf32, #tpu.memory_space<vmem>>, vector<1x32x256xf32>
    %249 = vector.shape_cast %248 : vector<1x32x256xf32> to vector<32x256xf32>
    %250 = arith.mulf %247, %249 : vector<32x256xf32>
    %251 = arith.addf %246, %250 : vector<32x256xf32>
    %c255_i32_178 = arith.constant 255 : i32
    %252 = tpu.dynamic_rotate %228 by %c255_i32_178 dim 1 : vector<32x256xf32>, i32 -> vector<32x256xf32>
    %c5_179 = arith.constant 5 : index
    %c0_180 = arith.constant 0 : index
    %c0_181 = arith.constant 0 : index
    %253 = vector.load %arg2[%c5_179, %c0_180, %c0_181] : memref<9x32x256xf32, #tpu.memory_space<vmem>>, vector<1x32x256xf32>
    %254 = vector.shape_cast %253 : vector<1x32x256xf32> to vector<32x256xf32>
    %255 = arith.mulf %252, %254 : vector<32x256xf32>
    %256 = arith.addf %251, %255 : vector<32x256xf32>
    %c241_i32_182 = arith.constant 241 : i32
    %257 = tpu.dynamic_rotate %228 by %c241_i32_182 dim 1 : vector<32x256xf32>, i32 -> vector<32x256xf32>
    %c6_183 = arith.constant 6 : index
    %c0_184 = arith.constant 0 : index
    %c0_185 = arith.constant 0 : index
    %258 = vector.load %arg2[%c6_183, %c0_184, %c0_185] : memref<9x32x256xf32, #tpu.memory_space<vmem>>, vector<1x32x256xf32>
    %259 = vector.shape_cast %258 : vector<1x32x256xf32> to vector<32x256xf32>
    %260 = arith.mulf %257, %259 : vector<32x256xf32>
    %261 = arith.addf %256, %260 : vector<32x256xf32>
    %c240_i32_186 = arith.constant 240 : i32
    %262 = tpu.dynamic_rotate %228 by %c240_i32_186 dim 1 : vector<32x256xf32>, i32 -> vector<32x256xf32>
    %c7_187 = arith.constant 7 : index
    %c0_188 = arith.constant 0 : index
    %c0_189 = arith.constant 0 : index
    %263 = vector.load %arg2[%c7_187, %c0_188, %c0_189] : memref<9x32x256xf32, #tpu.memory_space<vmem>>, vector<1x32x256xf32>
    %264 = vector.shape_cast %263 : vector<1x32x256xf32> to vector<32x256xf32>
    %265 = arith.mulf %262, %264 : vector<32x256xf32>
    %266 = arith.addf %261, %265 : vector<32x256xf32>
    %c239_i32_190 = arith.constant 239 : i32
    %267 = tpu.dynamic_rotate %228 by %c239_i32_190 dim 1 : vector<32x256xf32>, i32 -> vector<32x256xf32>
    %c8_191 = arith.constant 8 : index
    %c0_192 = arith.constant 0 : index
    %c0_193 = arith.constant 0 : index
    %268 = vector.load %arg2[%c8_191, %c0_192, %c0_193] : memref<9x32x256xf32, #tpu.memory_space<vmem>>, vector<1x32x256xf32>
    %269 = vector.shape_cast %268 : vector<1x32x256xf32> to vector<32x256xf32>
    %270 = arith.mulf %267, %269 : vector<32x256xf32>
    %271 = arith.addf %266, %270 : vector<32x256xf32>
    %c0_194 = arith.constant 0 : index
    %c0_195 = arith.constant 0 : index
    %272 = vector.load %arg3[%c0_194, %c0_195] : memref<32x1xf32, #tpu.memory_space<vmem>>, vector<32x1xf32>
    %273 = vector.broadcast %272 : vector<32x1xf32> to vector<32x256xf32>
    %274 = arith.addf %271, %273 : vector<32x256xf32>
    %cst_196 = arith.constant 0.000000e+00 : f32
    %cst_197 = arith.constant 6.000000e+00 : f32
    %275 = vector.broadcast %cst_196 : f32 to vector<32x256xf32>
    %276 = arith.maximumf %275, %274 : vector<32x256xf32>
    %277 = vector.broadcast %cst_197 : f32 to vector<32x256xf32>
    %278 = arith.minimumf %277, %276 : vector<32x256xf32>
    %c0_198 = arith.constant 0 : index
    %c0_199 = arith.constant 0 : index
    %279 = vector.load %arg4[%c0_198, %c0_199] : memref<32x32xf32, #tpu.memory_space<vmem>>, vector<32x32xf32>
    %cst_200 = arith.constant dense<0.000000e+00> : vector<32x256xf32>
    %280 = tpu.matmul %279, %278, %cst_200 {dimension_numbers = #tpu.dot_dimension_numbers<[1], [0], [0], [1], [0, 0, 1, 1], [], []>} : vector<32x32xf32>, vector<32x256xf32>, vector<32x256xf32> -> vector<32x256xf32>
    %c0_201 = arith.constant 0 : index
    %c0_202 = arith.constant 0 : index
    %281 = vector.load %arg5[%c0_201, %c0_202] : memref<32x1xf32, #tpu.memory_space<vmem>>, vector<32x1xf32>
    %282 = vector.broadcast %281 : vector<32x1xf32> to vector<32x256xf32>
    %283 = arith.addf %280, %282 : vector<32x256xf32>
    %cst_203 = arith.constant 0.000000e+00 : f32
    %cst_204 = arith.constant 6.000000e+00 : f32
    %284 = vector.broadcast %cst_203 : f32 to vector<32x256xf32>
    %285 = arith.maximumf %284, %283 : vector<32x256xf32>
    %286 = vector.broadcast %cst_204 : f32 to vector<32x256xf32>
    %287 = arith.minimumf %286, %285 : vector<32x256xf32>
    %c4_205 = arith.constant 4 : index
    %c0_206 = arith.constant 0 : index
    %c0_207 = arith.constant 0 : index
    %288 = vector.load %arg6[%c4_205, %c0_206, %c0_207] : memref<9x32x256xf32, #tpu.memory_space<vmem>>, vector<1x32x256xf32>
    %289 = vector.shape_cast %288 : vector<1x32x256xf32> to vector<32x256xf32>
    %290 = arith.mulf %287, %289 : vector<32x256xf32>
    %c17_i32_208 = arith.constant 17 : i32
    %291 = tpu.dynamic_rotate %287 by %c17_i32_208 dim 1 : vector<32x256xf32>, i32 -> vector<32x256xf32>
    %c0_209 = arith.constant 0 : index
    %c0_210 = arith.constant 0 : index
    %c0_211 = arith.constant 0 : index
    %292 = vector.load %arg6[%c0_209, %c0_210, %c0_211] : memref<9x32x256xf32, #tpu.memory_space<vmem>>, vector<1x32x256xf32>
    %293 = vector.shape_cast %292 : vector<1x32x256xf32> to vector<32x256xf32>
    %294 = arith.mulf %291, %293 : vector<32x256xf32>
    %295 = arith.addf %290, %294 : vector<32x256xf32>
    %c16_i32_212 = arith.constant 16 : i32
    %296 = tpu.dynamic_rotate %287 by %c16_i32_212 dim 1 : vector<32x256xf32>, i32 -> vector<32x256xf32>
    %c1_213 = arith.constant 1 : index
    %c0_214 = arith.constant 0 : index
    %c0_215 = arith.constant 0 : index
    %297 = vector.load %arg6[%c1_213, %c0_214, %c0_215] : memref<9x32x256xf32, #tpu.memory_space<vmem>>, vector<1x32x256xf32>
    %298 = vector.shape_cast %297 : vector<1x32x256xf32> to vector<32x256xf32>
    %299 = arith.mulf %296, %298 : vector<32x256xf32>
    %300 = arith.addf %295, %299 : vector<32x256xf32>
    %c15_i32_216 = arith.constant 15 : i32
    %301 = tpu.dynamic_rotate %287 by %c15_i32_216 dim 1 : vector<32x256xf32>, i32 -> vector<32x256xf32>
    %c2_217 = arith.constant 2 : index
    %c0_218 = arith.constant 0 : index
    %c0_219 = arith.constant 0 : index
    %302 = vector.load %arg6[%c2_217, %c0_218, %c0_219] : memref<9x32x256xf32, #tpu.memory_space<vmem>>, vector<1x32x256xf32>
    %303 = vector.shape_cast %302 : vector<1x32x256xf32> to vector<32x256xf32>
    %304 = arith.mulf %301, %303 : vector<32x256xf32>
    %305 = arith.addf %300, %304 : vector<32x256xf32>
    %c1_i32_220 = arith.constant 1 : i32
    %306 = tpu.dynamic_rotate %287 by %c1_i32_220 dim 1 : vector<32x256xf32>, i32 -> vector<32x256xf32>
    %c3_221 = arith.constant 3 : index
    %c0_222 = arith.constant 0 : index
    %c0_223 = arith.constant 0 : index
    %307 = vector.load %arg6[%c3_221, %c0_222, %c0_223] : memref<9x32x256xf32, #tpu.memory_space<vmem>>, vector<1x32x256xf32>
    %308 = vector.shape_cast %307 : vector<1x32x256xf32> to vector<32x256xf32>
    %309 = arith.mulf %306, %308 : vector<32x256xf32>
    %310 = arith.addf %305, %309 : vector<32x256xf32>
    %c255_i32_224 = arith.constant 255 : i32
    %311 = tpu.dynamic_rotate %287 by %c255_i32_224 dim 1 : vector<32x256xf32>, i32 -> vector<32x256xf32>
    %c5_225 = arith.constant 5 : index
    %c0_226 = arith.constant 0 : index
    %c0_227 = arith.constant 0 : index
    %312 = vector.load %arg6[%c5_225, %c0_226, %c0_227] : memref<9x32x256xf32, #tpu.memory_space<vmem>>, vector<1x32x256xf32>
    %313 = vector.shape_cast %312 : vector<1x32x256xf32> to vector<32x256xf32>
    %314 = arith.mulf %311, %313 : vector<32x256xf32>
    %315 = arith.addf %310, %314 : vector<32x256xf32>
    %c241_i32_228 = arith.constant 241 : i32
    %316 = tpu.dynamic_rotate %287 by %c241_i32_228 dim 1 : vector<32x256xf32>, i32 -> vector<32x256xf32>
    %c6_229 = arith.constant 6 : index
    %c0_230 = arith.constant 0 : index
    %c0_231 = arith.constant 0 : index
    %317 = vector.load %arg6[%c6_229, %c0_230, %c0_231] : memref<9x32x256xf32, #tpu.memory_space<vmem>>, vector<1x32x256xf32>
    %318 = vector.shape_cast %317 : vector<1x32x256xf32> to vector<32x256xf32>
    %319 = arith.mulf %316, %318 : vector<32x256xf32>
    %320 = arith.addf %315, %319 : vector<32x256xf32>
    %c240_i32_232 = arith.constant 240 : i32
    %321 = tpu.dynamic_rotate %287 by %c240_i32_232 dim 1 : vector<32x256xf32>, i32 -> vector<32x256xf32>
    %c7_233 = arith.constant 7 : index
    %c0_234 = arith.constant 0 : index
    %c0_235 = arith.constant 0 : index
    %322 = vector.load %arg6[%c7_233, %c0_234, %c0_235] : memref<9x32x256xf32, #tpu.memory_space<vmem>>, vector<1x32x256xf32>
    %323 = vector.shape_cast %322 : vector<1x32x256xf32> to vector<32x256xf32>
    %324 = arith.mulf %321, %323 : vector<32x256xf32>
    %325 = arith.addf %320, %324 : vector<32x256xf32>
    %c239_i32_236 = arith.constant 239 : i32
    %326 = tpu.dynamic_rotate %287 by %c239_i32_236 dim 1 : vector<32x256xf32>, i32 -> vector<32x256xf32>
    %c8_237 = arith.constant 8 : index
    %c0_238 = arith.constant 0 : index
    %c0_239 = arith.constant 0 : index
    %327 = vector.load %arg6[%c8_237, %c0_238, %c0_239] : memref<9x32x256xf32, #tpu.memory_space<vmem>>, vector<1x32x256xf32>
    %328 = vector.shape_cast %327 : vector<1x32x256xf32> to vector<32x256xf32>
    %329 = arith.mulf %326, %328 : vector<32x256xf32>
    %330 = arith.addf %325, %329 : vector<32x256xf32>
    %c0_240 = arith.constant 0 : index
    %c0_241 = arith.constant 0 : index
    %331 = vector.load %arg7[%c0_240, %c0_241] : memref<32x1xf32, #tpu.memory_space<vmem>>, vector<32x1xf32>
    %332 = vector.broadcast %331 : vector<32x1xf32> to vector<32x256xf32>
    %333 = arith.addf %330, %332 : vector<32x256xf32>
    %334 = arith.addf %333, %228 : vector<32x256xf32>
    %335 = arith.index_cast %c2_i32 : i32 to index
    %c0_242 = arith.constant 0 : index
    %c0_243 = arith.constant 0 : index
    %336 = vector.load %arg8[%335, %c0_242, %c0_243] : memref<4x32x256xf32, #tpu.memory_space<vmem>>, vector<1x32x256xf32>
    %337 = vector.shape_cast %336 : vector<1x32x256xf32> to vector<32x256xf32>
    %338 = vector.shape_cast %334 : vector<32x256xf32> to vector<1x32x256xf32>
    tpu.vector_store %arg8[%335, %c0_242, %c0_243], %338 {strides = array<i32>} : memref<4x32x256xf32, #tpu.memory_space<vmem>>, vector<1x32x256xf32>,
    %c3_i32 = arith.constant 3 : i32
    %339 = arith.index_cast %c3_i32 : i32 to index
    %c0_244 = arith.constant 0 : index
    %c0_245 = arith.constant 0 : index
    %340 = vector.load %arg1[%339, %c0_244, %c0_245] : memref<4x32x256xf32, #tpu.memory_space<vmem>>, vector<1x32x256xf32>
    %341 = vector.shape_cast %340 : vector<1x32x256xf32> to vector<32x256xf32>
    %c4_246 = arith.constant 4 : index
    %c0_247 = arith.constant 0 : index
    %c0_248 = arith.constant 0 : index
    %342 = vector.load %arg2[%c4_246, %c0_247, %c0_248] : memref<9x32x256xf32, #tpu.memory_space<vmem>>, vector<1x32x256xf32>
    %343 = vector.shape_cast %342 : vector<1x32x256xf32> to vector<32x256xf32>
    %344 = arith.mulf %341, %343 : vector<32x256xf32>
    %c17_i32_249 = arith.constant 17 : i32
    %345 = tpu.dynamic_rotate %341 by %c17_i32_249 dim 1 : vector<32x256xf32>, i32 -> vector<32x256xf32>
    %c0_250 = arith.constant 0 : index
    %c0_251 = arith.constant 0 : index
    %c0_252 = arith.constant 0 : index
    %346 = vector.load %arg2[%c0_250, %c0_251, %c0_252] : memref<9x32x256xf32, #tpu.memory_space<vmem>>, vector<1x32x256xf32>
    %347 = vector.shape_cast %346 : vector<1x32x256xf32> to vector<32x256xf32>
    %348 = arith.mulf %345, %347 : vector<32x256xf32>
    %349 = arith.addf %344, %348 : vector<32x256xf32>
    %c16_i32_253 = arith.constant 16 : i32
    %350 = tpu.dynamic_rotate %341 by %c16_i32_253 dim 1 : vector<32x256xf32>, i32 -> vector<32x256xf32>
    %c1_254 = arith.constant 1 : index
    %c0_255 = arith.constant 0 : index
    %c0_256 = arith.constant 0 : index
    %351 = vector.load %arg2[%c1_254, %c0_255, %c0_256] : memref<9x32x256xf32, #tpu.memory_space<vmem>>, vector<1x32x256xf32>
    %352 = vector.shape_cast %351 : vector<1x32x256xf32> to vector<32x256xf32>
    %353 = arith.mulf %350, %352 : vector<32x256xf32>
    %354 = arith.addf %349, %353 : vector<32x256xf32>
    %c15_i32_257 = arith.constant 15 : i32
    %355 = tpu.dynamic_rotate %341 by %c15_i32_257 dim 1 : vector<32x256xf32>, i32 -> vector<32x256xf32>
    %c2_258 = arith.constant 2 : index
    %c0_259 = arith.constant 0 : index
    %c0_260 = arith.constant 0 : index
    %356 = vector.load %arg2[%c2_258, %c0_259, %c0_260] : memref<9x32x256xf32, #tpu.memory_space<vmem>>, vector<1x32x256xf32>
    %357 = vector.shape_cast %356 : vector<1x32x256xf32> to vector<32x256xf32>
    %358 = arith.mulf %355, %357 : vector<32x256xf32>
    %359 = arith.addf %354, %358 : vector<32x256xf32>
    %c1_i32_261 = arith.constant 1 : i32
    %360 = tpu.dynamic_rotate %341 by %c1_i32_261 dim 1 : vector<32x256xf32>, i32 -> vector<32x256xf32>
    %c3_262 = arith.constant 3 : index
    %c0_263 = arith.constant 0 : index
    %c0_264 = arith.constant 0 : index
    %361 = vector.load %arg2[%c3_262, %c0_263, %c0_264] : memref<9x32x256xf32, #tpu.memory_space<vmem>>, vector<1x32x256xf32>
    %362 = vector.shape_cast %361 : vector<1x32x256xf32> to vector<32x256xf32>
    %363 = arith.mulf %360, %362 : vector<32x256xf32>
    %364 = arith.addf %359, %363 : vector<32x256xf32>
    %c255_i32_265 = arith.constant 255 : i32
    %365 = tpu.dynamic_rotate %341 by %c255_i32_265 dim 1 : vector<32x256xf32>, i32 -> vector<32x256xf32>
    %c5_266 = arith.constant 5 : index
    %c0_267 = arith.constant 0 : index
    %c0_268 = arith.constant 0 : index
    %366 = vector.load %arg2[%c5_266, %c0_267, %c0_268] : memref<9x32x256xf32, #tpu.memory_space<vmem>>, vector<1x32x256xf32>
    %367 = vector.shape_cast %366 : vector<1x32x256xf32> to vector<32x256xf32>
    %368 = arith.mulf %365, %367 : vector<32x256xf32>
    %369 = arith.addf %364, %368 : vector<32x256xf32>
    %c241_i32_269 = arith.constant 241 : i32
    %370 = tpu.dynamic_rotate %341 by %c241_i32_269 dim 1 : vector<32x256xf32>, i32 -> vector<32x256xf32>
    %c6_270 = arith.constant 6 : index
    %c0_271 = arith.constant 0 : index
    %c0_272 = arith.constant 0 : index
    %371 = vector.load %arg2[%c6_270, %c0_271, %c0_272] : memref<9x32x256xf32, #tpu.memory_space<vmem>>, vector<1x32x256xf32>
    %372 = vector.shape_cast %371 : vector<1x32x256xf32> to vector<32x256xf32>
    %373 = arith.mulf %370, %372 : vector<32x256xf32>
    %374 = arith.addf %369, %373 : vector<32x256xf32>
    %c240_i32_273 = arith.constant 240 : i32
    %375 = tpu.dynamic_rotate %341 by %c240_i32_273 dim 1 : vector<32x256xf32>, i32 -> vector<32x256xf32>
    %c7_274 = arith.constant 7 : index
    %c0_275 = arith.constant 0 : index
    %c0_276 = arith.constant 0 : index
    %376 = vector.load %arg2[%c7_274, %c0_275, %c0_276] : memref<9x32x256xf32, #tpu.memory_space<vmem>>, vector<1x32x256xf32>
    %377 = vector.shape_cast %376 : vector<1x32x256xf32> to vector<32x256xf32>
    %378 = arith.mulf %375, %377 : vector<32x256xf32>
    %379 = arith.addf %374, %378 : vector<32x256xf32>
    %c239_i32_277 = arith.constant 239 : i32
    %380 = tpu.dynamic_rotate %341 by %c239_i32_277 dim 1 : vector<32x256xf32>, i32 -> vector<32x256xf32>
    %c8_278 = arith.constant 8 : index
    %c0_279 = arith.constant 0 : index
    %c0_280 = arith.constant 0 : index
    %381 = vector.load %arg2[%c8_278, %c0_279, %c0_280] : memref<9x32x256xf32, #tpu.memory_space<vmem>>, vector<1x32x256xf32>
    %382 = vector.shape_cast %381 : vector<1x32x256xf32> to vector<32x256xf32>
    %383 = arith.mulf %380, %382 : vector<32x256xf32>
    %384 = arith.addf %379, %383 : vector<32x256xf32>
    %c0_281 = arith.constant 0 : index
    %c0_282 = arith.constant 0 : index
    %385 = vector.load %arg3[%c0_281, %c0_282] : memref<32x1xf32, #tpu.memory_space<vmem>>, vector<32x1xf32>
    %386 = vector.broadcast %385 : vector<32x1xf32> to vector<32x256xf32>
    %387 = arith.addf %384, %386 : vector<32x256xf32>
    %cst_283 = arith.constant 0.000000e+00 : f32
    %cst_284 = arith.constant 6.000000e+00 : f32
    %388 = vector.broadcast %cst_283 : f32 to vector<32x256xf32>
    %389 = arith.maximumf %388, %387 : vector<32x256xf32>
    %390 = vector.broadcast %cst_284 : f32 to vector<32x256xf32>
    %391 = arith.minimumf %390, %389 : vector<32x256xf32>
    %c0_285 = arith.constant 0 : index
    %c0_286 = arith.constant 0 : index
    %392 = vector.load %arg4[%c0_285, %c0_286] : memref<32x32xf32, #tpu.memory_space<vmem>>, vector<32x32xf32>
    %cst_287 = arith.constant dense<0.000000e+00> : vector<32x256xf32>
    %393 = tpu.matmul %392, %391, %cst_287 {dimension_numbers = #tpu.dot_dimension_numbers<[1], [0], [0], [1], [0, 0, 1, 1], [], []>} : vector<32x32xf32>, vector<32x256xf32>, vector<32x256xf32> -> vector<32x256xf32>
    %c0_288 = arith.constant 0 : index
    %c0_289 = arith.constant 0 : index
    %394 = vector.load %arg5[%c0_288, %c0_289] : memref<32x1xf32, #tpu.memory_space<vmem>>, vector<32x1xf32>
    %395 = vector.broadcast %394 : vector<32x1xf32> to vector<32x256xf32>
    %396 = arith.addf %393, %395 : vector<32x256xf32>
    %cst_290 = arith.constant 0.000000e+00 : f32
    %cst_291 = arith.constant 6.000000e+00 : f32
    %397 = vector.broadcast %cst_290 : f32 to vector<32x256xf32>
    %398 = arith.maximumf %397, %396 : vector<32x256xf32>
    %399 = vector.broadcast %cst_291 : f32 to vector<32x256xf32>
    %400 = arith.minimumf %399, %398 : vector<32x256xf32>
    %c4_292 = arith.constant 4 : index
    %c0_293 = arith.constant 0 : index
    %c0_294 = arith.constant 0 : index
    %401 = vector.load %arg6[%c4_292, %c0_293, %c0_294] : memref<9x32x256xf32, #tpu.memory_space<vmem>>, vector<1x32x256xf32>
    %402 = vector.shape_cast %401 : vector<1x32x256xf32> to vector<32x256xf32>
    %403 = arith.mulf %400, %402 : vector<32x256xf32>
    %c17_i32_295 = arith.constant 17 : i32
    %404 = tpu.dynamic_rotate %400 by %c17_i32_295 dim 1 : vector<32x256xf32>, i32 -> vector<32x256xf32>
    %c0_296 = arith.constant 0 : index
    %c0_297 = arith.constant 0 : index
    %c0_298 = arith.constant 0 : index
    %405 = vector.load %arg6[%c0_296, %c0_297, %c0_298] : memref<9x32x256xf32, #tpu.memory_space<vmem>>, vector<1x32x256xf32>
    %406 = vector.shape_cast %405 : vector<1x32x256xf32> to vector<32x256xf32>
    %407 = arith.mulf %404, %406 : vector<32x256xf32>
    %408 = arith.addf %403, %407 : vector<32x256xf32>
    %c16_i32_299 = arith.constant 16 : i32
    %409 = tpu.dynamic_rotate %400 by %c16_i32_299 dim 1 : vector<32x256xf32>, i32 -> vector<32x256xf32>
    %c1_300 = arith.constant 1 : index
    %c0_301 = arith.constant 0 : index
    %c0_302 = arith.constant 0 : index
    %410 = vector.load %arg6[%c1_300, %c0_301, %c0_302] : memref<9x32x256xf32, #tpu.memory_space<vmem>>, vector<1x32x256xf32>
    %411 = vector.shape_cast %410 : vector<1x32x256xf32> to vector<32x256xf32>
    %412 = arith.mulf %409, %411 : vector<32x256xf32>
    %413 = arith.addf %408, %412 : vector<32x256xf32>
    %c15_i32_303 = arith.constant 15 : i32
    %414 = tpu.dynamic_rotate %400 by %c15_i32_303 dim 1 : vector<32x256xf32>, i32 -> vector<32x256xf32>
    %c2_304 = arith.constant 2 : index
    %c0_305 = arith.constant 0 : index
    %c0_306 = arith.constant 0 : index
    %415 = vector.load %arg6[%c2_304, %c0_305, %c0_306] : memref<9x32x256xf32, #tpu.memory_space<vmem>>, vector<1x32x256xf32>
    %416 = vector.shape_cast %415 : vector<1x32x256xf32> to vector<32x256xf32>
    %417 = arith.mulf %414, %416 : vector<32x256xf32>
    %418 = arith.addf %413, %417 : vector<32x256xf32>
    %c1_i32_307 = arith.constant 1 : i32
    %419 = tpu.dynamic_rotate %400 by %c1_i32_307 dim 1 : vector<32x256xf32>, i32 -> vector<32x256xf32>
    %c3_308 = arith.constant 3 : index
    %c0_309 = arith.constant 0 : index
    %c0_310 = arith.constant 0 : index
    %420 = vector.load %arg6[%c3_308, %c0_309, %c0_310] : memref<9x32x256xf32, #tpu.memory_space<vmem>>, vector<1x32x256xf32>
    %421 = vector.shape_cast %420 : vector<1x32x256xf32> to vector<32x256xf32>
    %422 = arith.mulf %419, %421 : vector<32x256xf32>
    %423 = arith.addf %418, %422 : vector<32x256xf32>
    %c255_i32_311 = arith.constant 255 : i32
    %424 = tpu.dynamic_rotate %400 by %c255_i32_311 dim 1 : vector<32x256xf32>, i32 -> vector<32x256xf32>
    %c5_312 = arith.constant 5 : index
    %c0_313 = arith.constant 0 : index
    %c0_314 = arith.constant 0 : index
    %425 = vector.load %arg6[%c5_312, %c0_313, %c0_314] : memref<9x32x256xf32, #tpu.memory_space<vmem>>, vector<1x32x256xf32>
    %426 = vector.shape_cast %425 : vector<1x32x256xf32> to vector<32x256xf32>
    %427 = arith.mulf %424, %426 : vector<32x256xf32>
    %428 = arith.addf %423, %427 : vector<32x256xf32>
    %c241_i32_315 = arith.constant 241 : i32
    %429 = tpu.dynamic_rotate %400 by %c241_i32_315 dim 1 : vector<32x256xf32>, i32 -> vector<32x256xf32>
    %c6_316 = arith.constant 6 : index
    %c0_317 = arith.constant 0 : index
    %c0_318 = arith.constant 0 : index
    %430 = vector.load %arg6[%c6_316, %c0_317, %c0_318] : memref<9x32x256xf32, #tpu.memory_space<vmem>>, vector<1x32x256xf32>
    %431 = vector.shape_cast %430 : vector<1x32x256xf32> to vector<32x256xf32>
    %432 = arith.mulf %429, %431 : vector<32x256xf32>
    %433 = arith.addf %428, %432 : vector<32x256xf32>
    %c240_i32_319 = arith.constant 240 : i32
    %434 = tpu.dynamic_rotate %400 by %c240_i32_319 dim 1 : vector<32x256xf32>, i32 -> vector<32x256xf32>
    %c7_320 = arith.constant 7 : index
    %c0_321 = arith.constant 0 : index
    %c0_322 = arith.constant 0 : index
    %435 = vector.load %arg6[%c7_320, %c0_321, %c0_322] : memref<9x32x256xf32, #tpu.memory_space<vmem>>, vector<1x32x256xf32>
    %436 = vector.shape_cast %435 : vector<1x32x256xf32> to vector<32x256xf32>
    %437 = arith.mulf %434, %436 : vector<32x256xf32>
    %438 = arith.addf %433, %437 : vector<32x256xf32>
    %c239_i32_323 = arith.constant 239 : i32
    %439 = tpu.dynamic_rotate %400 by %c239_i32_323 dim 1 : vector<32x256xf32>, i32 -> vector<32x256xf32>
    %c8_324 = arith.constant 8 : index
    %c0_325 = arith.constant 0 : index
    %c0_326 = arith.constant 0 : index
    %440 = vector.load %arg6[%c8_324, %c0_325, %c0_326] : memref<9x32x256xf32, #tpu.memory_space<vmem>>, vector<1x32x256xf32>
    %441 = vector.shape_cast %440 : vector<1x32x256xf32> to vector<32x256xf32>
    %442 = arith.mulf %439, %441 : vector<32x256xf32>
    %443 = arith.addf %438, %442 : vector<32x256xf32>
    %c0_327 = arith.constant 0 : index
    %c0_328 = arith.constant 0 : index
    %444 = vector.load %arg7[%c0_327, %c0_328] : memref<32x1xf32, #tpu.memory_space<vmem>>, vector<32x1xf32>
    %445 = vector.broadcast %444 : vector<32x1xf32> to vector<32x256xf32>
    %446 = arith.addf %443, %445 : vector<32x256xf32>
    %447 = arith.addf %446, %341 : vector<32x256xf32>
    %448 = arith.index_cast %c3_i32 : i32 to index
    %c0_329 = arith.constant 0 : index
    %c0_330 = arith.constant 0 : index
    %449 = vector.load %arg8[%448, %c0_329, %c0_330] : memref<4x32x256xf32, #tpu.memory_space<vmem>>, vector<1x32x256xf32>
    %450 = vector.shape_cast %449 : vector<1x32x256xf32> to vector<32x256xf32>
    %451 = vector.shape_cast %447 : vector<32x256xf32> to vector<1x32x256xf32>
    tpu.vector_store %arg8[%448, %c0_329, %c0_330], %451 {strides = array<i32>} : memref<4x32x256xf32, #tpu.memory_space<vmem>>, vector<1x32x256xf32>,
    %c4_i32 = arith.constant 4 : i32
    return
  }
  func.func @transform_0(%arg0: i32) -> (i32, i32, i32) {
    %c0_i32 = arith.constant 0 : i32
    %c0_i32_0 = arith.constant 0 : i32
    %c0_i32_1 = arith.constant 0 : i32
    return %arg0, %c0_i32, %c0_i32_0 : i32, i32, i32
  }
  func.func @transform_1(%arg0: i32) -> (i32, i32, i32) {
    %c0_i32 = arith.constant 0 : i32
    %c0_i32_0 = arith.constant 0 : i32
    %c0_i32_1 = arith.constant 0 : i32
    %c0_i32_2 = arith.constant 0 : i32
    return %c0_i32, %c0_i32_0, %c0_i32_1 : i32, i32, i32
  }
  func.func @transform_2(%arg0: i32) -> (i32, i32) {
    %c0_i32 = arith.constant 0 : i32
    %c0_i32_0 = arith.constant 0 : i32
    %c0_i32_1 = arith.constant 0 : i32
    return %c0_i32, %c0_i32_0 : i32, i32
  }
  func.func @transform_3(%arg0: i32) -> (i32, i32) {
    %c0_i32 = arith.constant 0 : i32
    %c0_i32_0 = arith.constant 0 : i32
    %c0_i32_1 = arith.constant 0 : i32
    return %c0_i32, %c0_i32_0 : i32, i32
  }
  func.func @transform_4(%arg0: i32) -> (i32, i32) {
    %c0_i32 = arith.constant 0 : i32
    %c0_i32_0 = arith.constant 0 : i32
    %c0_i32_1 = arith.constant 0 : i32
    return %c0_i32, %c0_i32_0 : i32, i32
  }
  func.func @transform_5(%arg0: i32) -> (i32, i32, i32) {
    %c0_i32 = arith.constant 0 : i32
    %c0_i32_0 = arith.constant 0 : i32
    %c0_i32_1 = arith.constant 0 : i32
    %c0_i32_2 = arith.constant 0 : i32
    return %c0_i32, %c0_i32_0, %c0_i32_1 : i32, i32, i32
  }
  func.func @transform_6(%arg0: i32) -> (i32, i32) {
    %c0_i32 = arith.constant 0 : i32
    %c0_i32_0 = arith.constant 0 : i32
    %c0_i32_1 = arith.constant 0 : i32
    return %c0_i32, %c0_i32_0 : i32, i32
  }
  func.func @transform_7(%arg0: i32) -> (i32, i32, i32) {
    %c0_i32 = arith.constant 0 : i32
    %c0_i32_0 = arith.constant 0 : i32
    %c0_i32_1 = arith.constant 0 : i32
    return %arg0, %c0_i32, %c0_i32_0 : i32, i32, i32
  }
}

</mosaic_0001>

<llo_original>
// kernel: mul.15
$region0: #{mul.15}
  %s0 = inlined_call_operand.vmem [shape: f32[3,3,32], index: 0, kind: input, shape index: {}]
  %s1 = inlined_call_operand.vmem [shape: f32[9,32], index: 1, kind: output, shape index: {}]
  $region1: #{mul.15} parent=0
    #allocation0 [shape = 'u8[12288]{0}', space=vmem, size = 0x3000, scoped, tag = 'scoped mem for input reshape']
    %s3 = sshllo.u32 0, 4
    %s4 = smul.addr 4, 2
    %s5 = scalar_lea.vmem %s0, %s4
    %v6 = vld [vmem:[%s5] sm:%s3]
    %s7 = scalar_lea.vmem [#allocation0], 16
    %8 = vst [vmem:[%s7] sm:%s3] %v6
    %s9 = scalar_lea.vmem %s0, 4
    %v10 = vld [vmem:[%s9] sm:%s3]
    %s11 = scalar_lea.vmem [#allocation0], 8
    %12 = vst [vmem:[%s11] sm:%s3] %v10
    %v13 = vld [vmem:[%s0] sm:%s3]
    %14 = vst [vmem:[#allocation0] sm:%s3] %v13
    %v15 = vld [vmem:[#allocation0] sm:$0x7]
    %vm16 = vcmask 261120
    %17 = vst.msk [vmem:[%s1] sm:$0x7] %vm16, %v15
    %s18 = scalar_lea.vmem [#allocation0], 8
    %v19 = vld [vmem:[%s18] sm:$0x7]
    %vm20 = vcmask 261120
    %s21 = scalar_lea.vmem %s1, 3
    %22 = vst.msk [vmem:[%s21] sm:$0x7] %vm20, %v19
    %s23 = scalar_lea.vmem [#allocation0], 16
    %v24 = vld [vmem:[%s23] sm:$0x7]
    %vm25 = vcmask 261120
    %s26 = scalar_lea.vmem %s1, 6
    %27 = vst.msk [vmem:[%s26] sm:$0x7] %vm25, %v24

// kernel: sgblock_forward.1
$region0: #{sgblock_forward.1}
  #allocation0 [shape = 'u32[]', space=smem, size = 0x4, offset = 0x4, fixed_abs, tag = 'smem constant byte address 0x4 - core index']
  #allocation1 [shape = 'u32[144,128]{1,0:T(1,128)}', space=vmem, size = 0x12000, scoped, tag = 'internal scratch']
  %s0 = inlined_call_operand.vmem [shape: f32[8,32,256], index: 0, kind: input, shape index: {}]
  %s1 = inlined_call_operand.vmem [shape: f32[9,32,256], index: 1, kind: input, shape index: {}]
  %s2 = inlined_call_operand.vmem [shape: f32[32,1], index: 2, kind: input, shape index: {}]
  %s3 = inlined_call_operand.vmem [shape: f32[32,32], index: 3, kind: input, shape index: {}]
  %s4 = inlined_call_operand.vmem [shape: f32[32,1], index: 4, kind: input, shape index: {}]
  %s5 = inlined_call_operand.vmem [shape: f32[9,32,256], index: 5, kind: input, shape index: {}]
  %s6 = inlined_call_operand.vmem [shape: f32[32,1], index: 6, kind: input, shape index: {}]
  %s7 = inlined_call_operand.vmem [shape: f32[8,32,256], index: 7, kind: output, shape index: {}]
  %s8 = sld [smem:[#allocation0]]
  $region61: #{sgblock_forward.1} parent=0
    _
  %s10 = ssub.s32 1, %s8
  %s11 = scalar_select 0, %s10, %s8
  loop: start=0, step=1, limit=4
  $region2: #{sgblock_forward.1} parent=0 // loop_pre_header
    _
  $region3: #{sgblock_forward.1} parent=0 // loop_header
    %s13 = sphi 0, %s17
    %p14 = scmp.ge.s32.totalorder %s13, 4
    %s23 = sphi 0, %s25
    %s26 = sphi 0, %s23
    %s27 = sphi 0, %s26
    %s43 = sphi 0, %s27
    %s47 = sphi 0, %s47
    %s49 = sphi 0, %s47
    %s50 = sphi 0, %s49
    %s64 = sphi 0, %s50
    %s68 = sphi 0, %s68
    %s70 = sphi 0, %s68
    %s71 = sphi 0, %s70
    %s85 = sphi 0, %s71
    %s89 = sphi 0, %s89
    %s91 = sphi 0, %s89
    %s92 = sphi 0, %s91
    %s106 = sphi 0, %s92
    %s110 = sphi 0, %s110
    %s112 = sphi 0, %s110
    %s113 = sphi 0, %s112
    %s127 = sphi 0, %s113
    %s131 = sphi 0, %s131
    %s133 = sphi 0, %s131
    %s134 = sphi 0, %s133
    %s148 = sphi 0, %s134
    %s152 = sphi 0, %s152
    %s154 = sphi 0, %s152
    %s155 = sphi 0, %s154
    %s169 = sphi 0, %s155
    %s175 = sphi 0, %s177
    %s178 = sphi 0, %s175
    %s179 = sphi 0, %s178
    %s195 = sphi 0, %s179
  $region4: #{sgblock_forward.1} parent=0 // loop_header_branch
    %16 = sbr.rel (%p14) target = $region8
  $region5: #{sgblock_forward.1} parent=0 // loop_body
    %s18 = ssub.s32 %s13, 1
    %s19 = ssub.s32 %s13, 2
    %s20 = sadd.s32 %s13, 1
    %s21 = ssub.s32 %s13, %s20
    %p22 = scmp.eq.s32.totalorder %s21, 0
    %s24 = sadd.s32 %s23, 1
    %s25 = scalar_select %p22, %s23, %s24
    %p28 = pneg %p22
    %p29 = scmp.eq.s32.totalorder %s13, 1
    %p30 = por %p28, %p29
    %p31 = scmp.ne.s32.totalorder %s23, %s26
    %p32 = scmp.eq.s32.totalorder %s13, 0
    %p33 = por %p31, %p32
    %p34 = scmp.ne.s32.totalorder %s23, %s26
    %p35 = scmp.eq.s32.totalorder %s18, 1
    %p36 = por %p34, %p35
    %p37 = scmp.ne.s32.totalorder %s26, %s27
    %p38 = scmp.eq.s32.totalorder %s18, 0
    %p39 = por %p37, %p38
    %p40 = scmp.ne.s32.totalorder %s26, %s27
    %p41 = scmp.eq.s32.totalorder %s19, 1
    %p42 = por %p40, %p41
    %p44 = scmp.ne.s32.totalorder %s27, %s43
    %p45 = scmp.eq.s32.totalorder %s19, 0
    %p46 = por %p44, %p45
    %s48 = sadd.s32 %s47, 1
    %p51 = scmp.eq.s32.totalorder %s13, 1
    %p52 = scmp.ne.s32.totalorder %s47, %s49
    %p53 = scmp.eq.s32.totalorder %s13, 0
    %p54 = por %p52, %p53
    %p55 = scmp.ne.s32.totalorder %s47, %s49
    %p56 = scmp.eq.s32.totalorder %s18, 1
    %p57 = por %p55, %p56
    %p58 = scmp.ne.s32.totalorder %s49, %s50
    %p59 = scmp.eq.s32.totalorder %s18, 0
    %p60 = por %p58, %p59
    %p61 = scmp.ne.s32.totalorder %s49, %s50
    %p62 = scmp.eq.s32.totalorder %s19, 1
    %p63 = por %p61, %p62
    %p65 = scmp.ne.s32.totalorder %s50, %s64
    %p66 = scmp.eq.s32.totalorder %s19, 0
    %p67 = por %p65, %p66
    %s69 = sadd.s32 %s68, 1
    %p72 = scmp.eq.s32.totalorder %s13, 1
    %p73 = scmp.ne.s32.totalorder %s68, %s70
    %p74 = scmp.eq.s32.totalorder %s13, 0
    %p75 = por %p73, %p74
    %p76 = scmp.ne.s32.totalorder %s68, %s70
    %p77 = scmp.eq.s32.totalorder %s18, 1
    %p78 = por %p76, %p77
    %p79 = scmp.ne.s32.totalorder %s70, %s71
    %p80 = scmp.eq.s32.totalorder %s18, 0
    %p81 = por %p79, %p80
    %p82 = scmp.ne.s32.totalorder %s70, %s71
    %p83 = scmp.eq.s32.totalorder %s19, 1
    %p84 = por %p82, %p83
    %p86 = scmp.ne.s32.totalorder %s71, %s85
    %p87 = scmp.eq.s32.totalorder %s19, 0
    %p88 = por %p86, %p87
    %s90 = sadd.s32 %s89, 1
    %p93 = scmp.eq.s32.totalorder %s13, 1
    %p94 = scmp.ne.s32.totalorder %s89, %s91
    %p95 = scmp.eq.s32.totalorder %s13, 0
    %p96 = por %p94, %p95
    %p97 = scmp.ne.s32.totalorder %s89, %s91
    %p98 = scmp.eq.s32.totalorder %s18, 1
    %p99 = por %p97, %p98
    %p100 = scmp.ne.s32.totalorder %s91, %s92
    %p101 = scmp.eq.s32.totalorder %s18, 0
    %p102 = por %p100, %p101
    %p103 = scmp.ne.s32.totalorder %s91, %s92
    %p104 = scmp.eq.s32.totalorder %s19, 1
    %p105 = por %p103, %p104
    %p107 = scmp.ne.s32.totalorder %s92, %s106
    %p108 = scmp.eq.s32.totalorder %s19, 0
    %p109 = por %p107, %p108
    %s111 = sadd.s32 %s110, 1
    %p114 = scmp.eq.s32.totalorder %s13, 1
    %p115 = scmp.ne.s32.totalorder %s110, %s112
    %p116 = scmp.eq.s32.totalorder %s13, 0
    %p117 = por %p115, %p116
    %p118 = scmp.ne.s32.totalorder %s110, %s112
    %p119 = scmp.eq.s32.totalorder %s18, 1
    %p120 = por %p118, %p119
    %p121 = scmp.ne.s32.totalorder %s112, %s113
    %p122 = scmp.eq.s32.totalorder %s18, 0
    %p123 = por %p121, %p122
    %p124 = scmp.ne.s32.totalorder %s112, %s113
    %p125 = scmp.eq.s32.totalorder %s19, 1
    %p126 = por %p124, %p125
    %p128 = scmp.ne.s32.totalorder %s113, %s127
    %p129 = scmp.eq.s32.totalorder %s19, 0
    %p130 = por %p128, %p129
    %s132 = sadd.s32 %s131, 1
    %p135 = scmp.eq.s32.totalorder %s13, 1
    %p136 = scmp.ne.s32.totalorder %s131, %s133
    %p137 = scmp.eq.s32.totalorder %s13, 0
    %p138 = por %p136, %p137
    %p139 = scmp.ne.s32.totalorder %s131, %s133
    %p140 = scmp.eq.s32.totalorder %s18, 1
    %p141 = por %p139, %p140
    %p142 = scmp.ne.s32.totalorder %s133, %s134
    %p143 = scmp.eq.s32.totalorder %s18, 0
    %p144 = por %p142, %p143
    %p145 = scmp.ne.s32.totalorder %s133, %s134
    %p146 = scmp.eq.s32.totalorder %s19, 1
    %p147 = por %p145, %p146
    %p149 = scmp.ne.s32.totalorder %s134, %s148
    %p150 = scmp.eq.s32.totalorder %s19, 0
    %p151 = por %p149, %p150
    %s153 = sadd.s32 %s152, 1
    %p156 = scmp.eq.s32.totalorder %s13, 1
    %p157 = scmp.ne.s32.totalorder %s152, %s154
    %p158 = scmp.eq.s32.totalorder %s13, 0
    %p159 = por %p157, %p158
    %p160 = scmp.ne.s32.totalorder %s152, %s154
    %p161 = scmp.eq.s32.totalorder %s18, 1
    %p162 = por %p160, %p161
    %p163 = scmp.ne.s32.totalorder %s154, %s155
    %p164 = scmp.eq.s32.totalorder %s18, 0
    %p165 = por %p163, %p164
    %p166 = scmp.ne.s32.totalorder %s154, %s155
    %p167 = scmp.eq.s32.totalorder %s19, 1
    %p168 = por %p166, %p167
    %p170 = scmp.ne.s32.totalorder %s155, %s169
    %p171 = scmp.eq.s32.totalorder %s19, 0
    %p172 = por %p170, %p171
    %s173 = ssub.s32 %s13, %s20
    %p174 = scmp.eq.s32.totalorder %s173, 0
    %s176 = sadd.s32 %s175, 1
    %s177 = scalar_select %p174, %s175, %s176
    %p180 = pneg %p174
    %p181 = scmp.eq.s32.totalorder %s13, 1
    %p182 = por %p180, %p181
    %p183 = scmp.ne.s32.totalorder %s175, %s178
    %p184 = scmp.eq.s32.totalorder %s13, 0
    %p185 = por %p183, %p184
    %p186 = scmp.ne.s32.totalorder %s175, %s178
    %p187 = scmp.eq.s32.totalorder %s18, 1
    %p188 = por %p186, %p187
    %p189 = scmp.ne.s32.totalorder %s178, %s179
    %p190 = scmp.eq.s32.totalorder %s18, 0
    %p191 = por %p189, %p190
    %p192 = scmp.ne.s32.totalorder %s178, %s179
    %p193 = scmp.eq.s32.totalorder %s19, 1
    %p194 = por %p192, %p193
    %p196 = scmp.ne.s32.totalorder %s179, %s195
    %p197 = scmp.eq.s32.totalorder %s19, 0
    %p198 = por %p196, %p197
    %p199 = scmp.le.s32.totalorder 1, %s13
    %p200 = scmp.lt.s32.totalorder %s13, 3
    %p201 = pnand %p199, %p200
    %p202 = pneg %p201
    // Predicated region
    $region9: #{sgblock_forward.1} parent=5 // pred_check
      _
    $region10: #{sgblock_forward.1} parent=5 // pred_check_branch
      %204 = sbr.rel (%p201) target = $region12
    $region11: #{sgblock_forward.1} parent=5 // pred_region
      %s205 = ssub.s32 %s13, 1
      // Predicated region
      $region13: #{sgblock_forward.1} parent=11 // pred_check
        %p206 = pneg %p60
      $region14: #{sgblock_forward.1} parent=11 // pred_check_branch
        %208 = sbr.rel (%p206) target = $region16
      $region15: #{sgblock_forward.1} parent=11 // pred_region
        _
      $region16: #{sgblock_forward.1} parent=11 // pred_fallthru
        _
      // Predicated region
      $region17: #{sgblock_forward.1} parent=11 // pred_check
        %p209 = pneg %p81
      $region18: #{sgblock_forward.1} parent=11 // pred_check_branch
        %211 = sbr.rel (%p209) target = $region20
      $region19: #{sgblock_forward.1} parent=11 // pred_region
        _
      $region20: #{sgblock_forward.1} parent=11 // pred_fallthru
        _
      // Predicated region
      $region21: #{sgblock_forward.1} parent=11 // pred_check
        %p212 = pneg %p102
      $region22: #{sgblock_forward.1} parent=11 // pred_check_branch
        %214 = sbr.rel (%p212) target = $region24
      $region23: #{sgblock_forward.1} parent=11 // pred_region
        _
      $region24: #{sgblock_forward.1} parent=11 // pred_fallthru
        _
      // Predicated region
      $region25: #{sgblock_forward.1} parent=11 // pred_check
        %p215 = pneg %p123
      $region26: #{sgblock_forward.1} parent=11 // pred_check_branch
        %217 = sbr.rel (%p215) target = $region28
      $region27: #{sgblock_forward.1} parent=11 // pred_region
        _
      $region28: #{sgblock_forward.1} parent=11 // pred_fallthru
        _
      // Predicated region
      $region29: #{sgblock_forward.1} parent=11 // pred_check
        %p218 = pneg %p144
      $region30: #{sgblock_forward.1} parent=11 // pred_check_branch
        %220 = sbr.rel (%p218) target = $region32
      $region31: #{sgblock_forward.1} parent=11 // pred_region
        _
      $region32: #{sgblock_forward.1} parent=11 // pred_fallthru
        _
      // Predicated region
      $region33: #{sgblock_forward.1} parent=11 // pred_check
        %p221 = pneg %p165
      $region34: #{sgblock_forward.1} parent=11 // pred_check_branch
        %223 = sbr.rel (%p221) target = $region36
      $region35: #{sgblock_forward.1} parent=11 // pred_region
        _
      $region36: #{sgblock_forward.1} parent=11 // pred_fallthru
        _
    $region12: #{sgblock_forward.1} parent=5 // pred_fallthru
      _
    %p224 = scmp.lt.s32.totalorder %s13, 2
    // Predicated region
    $region37: #{sgblock_forward.1} parent=5 // pred_check
      %p225 = pneg %p224
    $region38: #{sgblock_forward.1} parent=5 // pred_check_branch
      %227 = sbr.rel (%p225) target = $region40
    $region39: #{sgblock_forward.1} parent=5 // pred_region
      // Predicated region
      $region41: #{sgblock_forward.1} parent=39 // pred_check
        %p228 = pneg %p33
      $region42: #{sgblock_forward.1} parent=39 // pred_check_branch
        %230 = sbr.rel (%p228) target = $region44
      $region43: #{sgblock_forward.1} parent=39 // pred_region
        %s231 = smul.u32 4, %s13
        %p232 = scmp.lt.s32.totalorder %s231, 7
        %s233 = scalar_select %p232, %s231, 7
        %s234 = smul.addr %s233, 8
        %s235 = smul.addr %s234, 8
        %s236 = scalar_lea.vmem %s0, %s235
        %s237 = smul.u32 4, %s13
      $region44: #{sgblock_forward.1} parent=39 // pred_fallthru
        _
    $region40: #{sgblock_forward.1} parent=5 // pred_fallthru
      _
    %p238 = scmp.le.s32.totalorder 1, %s13
    %p239 = scmp.lt.s32.totalorder %s13, 3
    %p240 = pnand %p238, %p239
    %p241 = pneg %p240
    // Predicated region
    $region45: #{sgblock_forward.1} parent=5 // pred_check
      _
    $region46: #{sgblock_forward.1} parent=5 // pred_check_branch
      %243 = sbr.rel (%p240) target = $region48
    $region47: #{sgblock_forward.1} parent=5 // pred_region
      %s244 = ssub.s32 %s13, 1
      %s245 = smul.u32 4, %s18
      %p246 = scmp.lt.s32.totalorder %s245, 7
      %s247 = scalar_select %p246, %s245, 7
      %s248 = smul.addr %s247, 8
      %s249 = smul.addr %s248, 8
      %s250 = scalar_lea.vmem %s0, %s249
      %p251 = pneg %p39
      %p252 = pneg %p36
      %p253 = pneg %p60
      %p254 = pneg %p57
      %p255 = pneg %p81
      %p256 = pneg %p78
      %p257 = pneg %p102
      %p258 = pneg %p99
      %p259 = pneg %p123
      %p260 = pneg %p120
      %p261 = pneg %p144
      %p262 = pneg %p141
      %p263 = pneg %p165
      %p264 = pneg %p162
      %p265 = pneg %p191
      %p266 = pneg %p188
      %s267 = smul.u32 4, %s18
      %p268 = scmp.lt.s32.totalorder %s267, 7
      %s269 = scalar_select %p268, %s267, 7
      %s270 = smul.addr %s269, 8
      %s271 = smul.addr %s270, 8
      %s272 = scalar_lea.vmem %s7, %s271
      %s273 = smul.u32 4, %s18
      %p274 = scmp.lt.s32.totalorder %s273, 7
      %s275 = scalar_select %p274, %s273, 7
      %s276 = smul.addr %s275, 8
      %s277 = smul.addr %s276, 8
      %s278 = scalar_lea.vmem %s0, %s277
      %s279 = smul.u32 4, %s18
      %s280 = smul.u32 4, %s18
      %p281 = scmp.lt.s32.totalorder %s280, 7
      %s282 = scalar_select %p281, %s280, 7
      %s283 = smul.addr %s282, 8
      %s284 = smul.addr %s283, 8
      %s285 = scalar_lea.vmem %s7, %s284
      %s286 = smul.u32 4, %s18
      %v287 = vld [vmem:[%s278] sm:$0xff]
      %v288 = vld [vmem:[%s278 + $0x8] sm:$0xff]
      %v289 = vld [vmem:[%s278 + $0x10] sm:$0xff]
      %v290 = vld [vmem:[%s278 + $0x18] sm:$0xff]
      %v291 = vld [vmem:[%s278 + $0x20] sm:$0xff]
      %v292 = vld [vmem:[%s278 + $0x28] sm:$0xff]
      %v293 = vld [vmem:[%s278 + $0x30] sm:$0xff]
      %v294 = vld [vmem:[%s278 + $0x38] sm:$0xff]
      %s295 = scalar_lea.vmem %s1, 256
      %v296 = vld [vmem:[%s295] sm:$0xff]
      %v297 = vld [vmem:[%s295 + $0x8] sm:$0xff]
      %v298 = vld [vmem:[%s295 + $0x10] sm:$0xff]
      %v299 = vld [vmem:[%s295 + $0x18] sm:$0xff]
      %v300 = vld [vmem:[%s295 + $0x20] sm:$0xff]
      %v301 = vld [vmem:[%s295 + $0x28] sm:$0xff]
      %v302 = vld [vmem:[%s295 + $0x30] sm:$0xff]
      %v303 = vld [vmem:[%s295 + $0x38] sm:$0xff]
      %v304 = vmul.f32 %v287, %v296
      %v305 = vmul.f32 %v288, %v297
      %v306 = vmul.f32 %v289, %v298
      %v307 = vmul.f32 %v290, %v299
      %v308 = vmul.f32 %v291, %v300
      %v309 = vmul.f32 %v292, %v301
      %v310 = vmul.f32 %v293, %v302
      %v311 = vmul.f32 %v294, %v303
      %312 = vrot.lane.b32.xlu0 %v287, 17
      %v313 = vpop.permute.xlu0 %312
      %314 = vrot.lane.b32.xlu0 %v289, 17
      %v315 = vpop.permute.xlu0 %314
      %316 = vrot.lane.b32.xlu0 %v291, 17
      %v317 = vpop.permute.xlu0 %316
      %318 = vrot.lane.b32.xlu0 %v293, 17
      %v319 = vpop.permute.xlu0 %318
      %320 = vrot.lane.b32.xlu0 %v288, 17
      %v321 = vpop.permute.xlu0 %320
      %322 = vrot.lane.b32.xlu0 %v290, 17
      %v323 = vpop.permute.xlu0 %322
      %324 = vrot.lane.b32.xlu0 %v292, 17
      %v325 = vpop.permute.xlu0 %324
      %326 = vrot.lane.b32.xlu0 %v294, 17
      %v327 = vpop.permute.xlu0 %326
      %v328 = vlaneseq
      %v329 = vand.u32 %v328, 127
      %vm330 = vcmp.lt.s32.totalorder %v329, 17
      %v331 = vsel %vm330, %v313, %v321
      %v332 = vsel %vm330, %v315, %v323
      %v333 = vsel %vm330, %v317, %v325
      %v334 = vsel %vm330, %v319, %v327
      %v335 = vsel %vm330, %v321, %v313
      %v336 = vsel %vm330, %v323, %v315
      %v337 = vsel %vm330, %v325, %v317
      %v338 = vsel %vm330, %v327, %v319
      %v339 = vld [vmem:[%s1] sm:$0xff]
      %v340 = vld [vmem:[%s1 + $0x8] sm:$0xff]
      %v341 = vld [vmem:[%s1 + $0x10] sm:$0xff]
      %v342 = vld [vmem:[%s1 + $0x18] sm:$0xff]
      %v343 = vld [vmem:[%s1 + $0x20] sm:$0xff]
      %v344 = vld [vmem:[%s1 + $0x28] sm:$0xff]
      %v345 = vld [vmem:[%s1 + $0x30] sm:$0xff]
      %v346 = vld [vmem:[%s1 + $0x38] sm:$0xff]
      %v347 = vmul.f32 %v335, %v339
      %v348 = vmul.f32 %v331, %v340
      %v349 = vmul.f32 %v336, %v341
      %v350 = vmul.f32 %v332, %v342
      %v351 = vmul.f32 %v337, %v343
      %v352 = vmul.f32 %v333, %v344
      %v353 = vmul.f32 %v338, %v345
      %v354 = vmul.f32 %v334, %v346
      %v355 = vadd.f32 %v304, %v347
      %v356 = vadd.f32 %v305, %v348
      %v357 = vadd.f32 %v306, %v349
      %v358 = vadd.f32 %v307, %v350
      %v359 = vadd.f32 %v308, %v351
      %v360 = vadd.f32 %v309, %v352
      %v361 = vadd.f32 %v310, %v353
      %v362 = vadd.f32 %v311, %v354
      %363 = vrot.lane.b32.xlu0 %v287, 16
      %v364 = vpop.permute.xlu0 %363
      %365 = vrot.lane.b32.xlu0 %v289, 16
      %v366 = vpop.permute.xlu0 %365
      %367 = vrot.lane.b32.xlu0 %v291, 16
      %v368 = vpop.permute.xlu0 %367
      %369 = vrot.lane.b32.xlu0 %v293, 16
      %v370 = vpop.permute.xlu0 %369
      %371 = vrot.lane.b32.xlu0 %v288, 16
      %v372 = vpop.permute.xlu0 %371
      %373 = vrot.lane.b32.xlu0 %v290, 16
      %v374 = vpop.permute.xlu0 %373
      %375 = vrot.lane.b32.xlu0 %v292, 16
      %v376 = vpop.permute.xlu0 %375
      %377 = vrot.lane.b32.xlu0 %v294, 16
      %v378 = vpop.permute.xlu0 %377
      %vm379 = vcmp.lt.s32.totalorder %v329, 16
      %v380 = vsel %vm379, %v364, %v372
      %v381 = vsel %vm379, %v366, %v374
      %v382 = vsel %vm379, %v368, %v376
      %v383 = vsel %vm379, %v370, %v378
      %v384 = vsel %vm379, %v372, %v364
      %v385 = vsel %vm379, %v374, %v366
      %v386 = vsel %vm379, %v376, %v368
      %v387 = vsel %vm379, %v378, %v370
      %s388 = scalar_lea.vmem %s1, 64
      %v389 = vld [vmem:[%s388] sm:$0xff]
      %v390 = vld [vmem:[%s388 + $0x8] sm:$0xff]
      %v391 = vld [vmem:[%s388 + $0x10] sm:$0xff]
      %v392 = vld [vmem:[%s388 + $0x18] sm:$0xff]
      %v393 = vld [vmem:[%s388 + $0x20] sm:$0xff]
      %v394 = vld [vmem:[%s388 + $0x28] sm:$0xff]
      %v395 = vld [vmem:[%s388 + $0x30] sm:$0xff]
      %v396 = vld [vmem:[%s388 + $0x38] sm:$0xff]
      %v397 = vmul.f32 %v384, %v389
      %v398 = vmul.f32 %v380, %v390
      %v399 = vmul.f32 %v385, %v391
      %v400 = vmul.f32 %v381, %v392
      %v401 = vmul.f32 %v386, %v393
      %v402 = vmul.f32 %v382, %v394
      %v403 = vmul.f32 %v387, %v395
      %v404 = vmul.f32 %v383, %v396
      %v405 = vadd.f32 %v355, %v397
      %v406 = vadd.f32 %v356, %v398
      %v407 = vadd.f32 %v357, %v399
      %v408 = vadd.f32 %v358, %v400
      %v409 = vadd.f32 %v359, %v401
      %v410 = vadd.f32 %v360, %v402
      %v411 = vadd.f32 %v361, %v403
      %v412 = vadd.f32 %v362, %v404
      %413 = vrot.lane.b32.xlu0 %v287, 15
      %v414 = vpop.permute.xlu0 %413
      %415 = vrot.lane.b32.xlu0 %v289, 15
      %v416 = vpop.permute.xlu0 %415
      %417 = vrot.lane.b32.xlu0 %v291, 15
      %v418 = vpop.permute.xlu0 %417
      %419 = vrot.lane.b32.xlu0 %v293, 15
      %v420 = vpop.permute.xlu0 %419
      %421 = vrot.lane.b32.xlu0 %v288, 15
      %v422 = vpop.permute.xlu0 %421
      %423 = vrot.lane.b32.xlu0 %v290, 15
      %v424 = vpop.permute.xlu0 %423
      %425 = vrot.lane.b32.xlu0 %v292, 15
      %v426 = vpop.permute.xlu0 %425
      %427 = vrot.lane.b32.xlu0 %v294, 15
      %v428 = vpop.permute.xlu0 %427
      %vm429 = vcmp.lt.s32.totalorder %v329, 15
      %v430 = vsel %vm429, %v414, %v422
      %v431 = vsel %vm429, %v416, %v424
      %v432 = vsel %vm429, %v418, %v426
      %v433 = vsel %vm429, %v420, %v428
      %v434 = vsel %vm429, %v422, %v414
      %v435 = vsel %vm429, %v424, %v416
      %v436 = vsel %vm429, %v426, %v418
      %v437 = vsel %vm429, %v428, %v420
      %s438 = scalar_lea.vmem %s1, 128
      %v439 = vld [vmem:[%s438] sm:$0xff]
      %v440 = vld [vmem:[%s438 + $0x8] sm:$0xff]
      %v441 = vld [vmem:[%s438 + $0x10] sm:$0xff]
      %v442 = vld [vmem:[%s438 + $0x18] sm:$0xff]
      %v443 = vld [vmem:[%s438 + $0x20] sm:$0xff]
      %v444 = vld [vmem:[%s438 + $0x28] sm:$0xff]
      %v445 = vld [vmem:[%s438 + $0x30] sm:$0xff]
      %v446 = vld [vmem:[%s438 + $0x38] sm:$0xff]
      %v447 = vmul.f32 %v434, %v439
      %v448 = vmul.f32 %v430, %v440
      %v449 = vmul.f32 %v435, %v441
      %v450 = vmul.f32 %v431, %v442
      %v451 = vmul.f32 %v436, %v443
      %v452 = vmul.f32 %v432, %v444
      %v453 = vmul.f32 %v437, %v445
      %v454 = vmul.f32 %v433, %v446
      %v455 = vadd.f32 %v405, %v447
      %v456 = vadd.f32 %v406, %v448
      %v457 = vadd.f32 %v407, %v449
      %v458 = vadd.f32 %v408, %v450
      %v459 = vadd.f32 %v409, %v451
      %v460 = vadd.f32 %v410, %v452
      %v461 = vadd.f32 %v411, %v453
      %v462 = vadd.f32 %v412, %v454
      %463 = vrot.lane.b32.xlu0 %v287, 1
      %v464 = vpop.permute.xlu0 %463
      %465 = vrot.lane.b32.xlu0 %v289, 1
      %v466 = vpop.permute.xlu0 %465
      %467 = vrot.lane.b32.xlu0 %v291, 1
      %v468 = vpop.permute.xlu0 %467
      %469 = vrot.lane.b32.xlu0 %v293, 1
      %v470 = vpop.permute.xlu0 %469
      %471 = vrot.lane.b32.xlu0 %v288, 1
      %v472 = vpop.permute.xlu0 %471
      %473 = vrot.lane.b32.xlu0 %v290, 1
      %v474 = vpop.permute.xlu0 %473
      %475 = vrot.lane.b32.xlu0 %v292, 1
      %v476 = vpop.permute.xlu0 %475
      %477 = vrot.lane.b32.xlu0 %v294, 1
      %v478 = vpop.permute.xlu0 %477
      %vm479 = vcmp.lt.s32.totalorder %v329, 1
      %v480 = vsel %vm479, %v464, %v472
      %v481 = vsel %vm479, %v466, %v474
      %v482 = vsel %vm479, %v468, %v476
      %v483 = vsel %vm479, %v470, %v478
      %v484 = vsel %vm479, %v472, %v464
      %v485 = vsel %vm479, %v474, %v466
      %v486 = vsel %vm479, %v476, %v468
      %v487 = vsel %vm479, %v478, %v470
      %s488 = scalar_lea.vmem %s1, 192
      %v489 = vld [vmem:[%s488] sm:$0xff]
      %v490 = vld [vmem:[%s488 + $0x8] sm:$0xff]
      %v491 = vld [vmem:[%s488 + $0x10] sm:$0xff]
      %v492 = vld [vmem:[%s488 + $0x18] sm:$0xff]
      %v493 = vld [vmem:[%s488 + $0x20] sm:$0xff]
      %v494 = vld [vmem:[%s488 + $0x28] sm:$0xff]
      %v495 = vld [vmem:[%s488 + $0x30] sm:$0xff]
      %v496 = vld [vmem:[%s488 + $0x38] sm:$0xff]
      %v497 = vmul.f32 %v484, %v489
      %v498 = vmul.f32 %v480, %v490
      %v499 = vmul.f32 %v485, %v491
      %v500 = vmul.f32 %v481, %v492
      %v501 = vmul.f32 %v486, %v493
      %v502 = vmul.f32 %v482, %v494
      %v503 = vmul.f32 %v487, %v495
      %v504 = vmul.f32 %v483, %v496
      %v505 = vadd.f32 %v455, %v497
      %v506 = vadd.f32 %v456, %v498
      %v507 = vadd.f32 %v457, %v499
      %v508 = vadd.f32 %v458, %v500
      %v509 = vadd.f32 %v459, %v501
      %v510 = vadd.f32 %v460, %v502
      %v511 = vadd.f32 %v461, %v503
      %v512 = vadd.f32 %v462, %v504
      %513 = vrot.lane.b32.xlu0 %v287, 127
      %v514 = vpop.permute.xlu0 %513
      %515 = vrot.lane.b32.xlu0 %v289, 127
      %v516 = vpop.permute.xlu0 %515
      %517 = vrot.lane.b32.xlu0 %v291, 127
      %v518 = vpop.permute.xlu0 %517
      %519 = vrot.lane.b32.xlu0 %v293, 127
      %v520 = vpop.permute.xlu0 %519
      %521 = vrot.lane.b32.xlu0 %v288, 127
      %v522 = vpop.permute.xlu0 %521
      %523 = vrot.lane.b32.xlu0 %v290, 127
      %v524 = vpop.permute.xlu0 %523
      %525 = vrot.lane.b32.xlu0 %v292, 127
      %v526 = vpop.permute.xlu0 %525
      %527 = vrot.lane.b32.xlu0 %v294, 127
      %v528 = vpop.permute.xlu0 %527
      %vm529 = vcmp.lt.s32.totalorder %v329, 127
      %v530 = vsel %vm529, %v514, %v522
      %v531 = vsel %vm529, %v516, %v524
      %v532 = vsel %vm529, %v518, %v526
      %v533 = vsel %vm529, %v520, %v528
      %v534 = vsel %vm529, %v522, %v514
      %v535 = vsel %vm529, %v524, %v516
      %v536 = vsel %vm529, %v526, %v518
      %v537 = vsel %vm529, %v528, %v520
      %s538 = scalar_lea.vmem %s1, 320
      %v539 = vld [vmem:[%s538] sm:$0xff]
      %v540 = vld [vmem:[%s538 + $0x8] sm:$0xff]
      %v541 = vld [vmem:[%s538 + $0x10] sm:$0xff]
      %v542 = vld [vmem:[%s538 + $0x18] sm:$0xff]
      %v543 = vld [vmem:[%s538 + $0x20] sm:$0xff]
      %v544 = vld [vmem:[%s538 + $0x28] sm:$0xff]
      %v545 = vld [vmem:[%s538 + $0x30] sm:$0xff]
      %v546 = vld [vmem:[%s538 + $0x38] sm:$0xff]
      %v547 = vmul.f32 %v530, %v539
      %v548 = vmul.f32 %v534, %v540
      %v549 = vmul.f32 %v531, %v541
      %v550 = vmul.f32 %v535, %v542
      %v551 = vmul.f32 %v532, %v543
      %v552 = vmul.f32 %v536, %v544
      %v553 = vmul.f32 %v533, %v545
      %v554 = vmul.f32 %v537, %v546
      %v555 = vadd.f32 %v505, %v547
      %v556 = vadd.f32 %v506, %v548
      %v557 = vadd.f32 %v507, %v549
      %v558 = vadd.f32 %v508, %v550
      %v559 = vadd.f32 %v509, %v551
      %v560 = vadd.f32 %v510, %v552
      %v561 = vadd.f32 %v511, %v553
      %v562 = vadd.f32 %v512, %v554
      %563 = vrot.lane.b32.xlu0 %v287, 113
      %v564 = vpop.permute.xlu0 %563
      %565 = vrot.lane.b32.xlu0 %v289, 113
      %v566 = vpop.permute.xlu0 %565
      %567 = vrot.lane.b32.xlu0 %v291, 113
      %v568 = vpop.permute.xlu0 %567
      %569 = vrot.lane.b32.xlu0 %v293, 113
      %v570 = vpop.permute.xlu0 %569
      %571 = vrot.lane.b32.xlu0 %v288, 113
      %v572 = vpop.permute.xlu0 %571
      %573 = vrot.lane.b32.xlu0 %v290, 113
      %v574 = vpop.permute.xlu0 %573
      %575 = vrot.lane.b32.xlu0 %v292, 113
      %v576 = vpop.permute.xlu0 %575
      %577 = vrot.lane.b32.xlu0 %v294, 113
      %v578 = vpop.permute.xlu0 %577
      %vm579 = vcmp.lt.s32.totalorder %v329, 113
      %v580 = vsel %vm579, %v564, %v572
      %v581 = vsel %vm579, %v566, %v574
      %v582 = vsel %vm579, %v568, %v576
      %v583 = vsel %vm579, %v570, %v578
      %v584 = vsel %vm579, %v572, %v564
      %v585 = vsel %vm579, %v574, %v566
      %v586 = vsel %vm579, %v576, %v568
      %v587 = vsel %vm579, %v578, %v570
      %s588 = scalar_lea.vmem %s1, 384
      %v589 = vld [vmem:[%s588] sm:$0xff]
      %v590 = vld [vmem:[%s588 + $0x8] sm:$0xff]
      %v591 = vld [vmem:[%s588 + $0x10] sm:$0xff]
      %v592 = vld [vmem:[%s588 + $0x18] sm:$0xff]
      %v593 = vld [vmem:[%s588 + $0x20] sm:$0xff]
      %v594 = vld [vmem:[%s588 + $0x28] sm:$0xff]
      %v595 = vld [vmem:[%s588 + $0x30] sm:$0xff]
      %v596 = vld [vmem:[%s588 + $0x38] sm:$0xff]
      %v597 = vmul.f32 %v580, %v589
      %v598 = vmul.f32 %v584, %v590
      %v599 = vmul.f32 %v581, %v591
      %v600 = vmul.f32 %v585, %v592
      %v601 = vmul.f32 %v582, %v593
      %v602 = vmul.f32 %v586, %v594
      %v603 = vmul.f32 %v583, %v595
      %v604 = vmul.f32 %v587, %v596
      %v605 = vadd.f32 %v555, %v597
      %v606 = vadd.f32 %v556, %v598
      %v607 = vadd.f32 %v557, %v599
      %v608 = vadd.f32 %v558, %v600
      %v609 = vadd.f32 %v559, %v601
      %v610 = vadd.f32 %v560, %v602
      %v611 = vadd.f32 %v561, %v603
      %v612 = vadd.f32 %v562, %v604
      %613 = vrot.lane.b32.xlu0 %v287, 112
      %v614 = vpop.permute.xlu0 %613
      %615 = vrot.lane.b32.xlu0 %v289, 112
      %v616 = vpop.permute.xlu0 %615
      %617 = vrot.lane.b32.xlu0 %v291, 112
      %v618 = vpop.permute.xlu0 %617
      %619 = vrot.lane.b32.xlu0 %v293, 112
      %v620 = vpop.permute.xlu0 %619
      %621 = vrot.lane.b32.xlu0 %v288, 112
      %v622 = vpop.permute.xlu0 %621
      %623 = vrot.lane.b32.xlu0 %v290, 112
      %v624 = vpop.permute.xlu0 %623
      %625 = vrot.lane.b32.xlu0 %v292, 112
      %v626 = vpop.permute.xlu0 %625
      %627 = vrot.lane.b32.xlu0 %v294, 112
      %v628 = vpop.permute.xlu0 %627
      %vm629 = vcmp.lt.s32.totalorder %v329, 112
      %v630 = vsel %vm629, %v614, %v622
      %v631 = vsel %vm629, %v616, %v624
      %v632 = vsel %vm629, %v618, %v626
      %v633 = vsel %vm629, %v620, %v628
      %v634 = vsel %vm629, %v622, %v614
      %v635 = vsel %vm629, %v624, %v616
      %v636 = vsel %vm629, %v626, %v618
      %v637 = vsel %vm629, %v628, %v620
      %s638 = scalar_lea.vmem %s1, 448
      %v639 = vld [vmem:[%s638] sm:$0xff]
      %v640 = vld [vmem:[%s638 + $0x8] sm:$0xff]
      %v641 = vld [vmem:[%s638 + $0x10] sm:$0xff]
      %v642 = vld [vmem:[%s638 + $0x18] sm:$0xff]
      %v643 = vld [vmem:[%s638 + $0x20] sm:$0xff]
      %v644 = vld [vmem:[%s638 + $0x28] sm:$0xff]
      %v645 = vld [vmem:[%s638 + $0x30] sm:$0xff]
      %v646 = vld [vmem:[%s638 + $0x38] sm:$0xff]
      %v647 = vmul.f32 %v630, %v639
      %v648 = vmul.f32 %v634, %v640
      %v649 = vmul.f32 %v631, %v641
      %v650 = vmul.f32 %v635, %v642
      %v651 = vmul.f32 %v632, %v643
      %v652 = vmul.f32 %v636, %v644
      %v653 = vmul.f32 %v633, %v645
      %v654 = vmul.f32 %v637, %v646
      %v655 = vadd.f32 %v605, %v647
      %v656 = vadd.f32 %v606, %v648
      %v657 = vadd.f32 %v607, %v649
      %v658 = vadd.f32 %v608, %v650
      %v659 = vadd.f32 %v609, %v651
      %v660 = vadd.f32 %v610, %v652
      %v661 = vadd.f32 %v611, %v653
      %v662 = vadd.f32 %v612, %v654
      %663 = vrot.lane.b32.xlu0 %v287, 111
      %v664 = vpop.permute.xlu0 %663
      %665 = vrot.lane.b32.xlu0 %v289, 111
      %v666 = vpop.permute.xlu0 %665
      %667 = vrot.lane.b32.xlu0 %v291, 111
      %v668 = vpop.permute.xlu0 %667
      %669 = vrot.lane.b32.xlu0 %v293, 111
      %v670 = vpop.permute.xlu0 %669
      %671 = vrot.lane.b32.xlu0 %v288, 111
      %v672 = vpop.permute.xlu0 %671
      %673 = vrot.lane.b32.xlu0 %v290, 111
      %v674 = vpop.permute.xlu0 %673
      %675 = vrot.lane.b32.xlu0 %v292, 111
      %v676 = vpop.permute.xlu0 %675
      %677 = vrot.lane.b32.xlu0 %v294, 111
      %v678 = vpop.permute.xlu0 %677
      %vm679 = vcmp.lt.s32.totalorder %v329, 111
      %v680 = vsel %vm679, %v664, %v672
      %v681 = vsel %vm679, %v666, %v674
      %v682 = vsel %vm679, %v668, %v676
      %v683 = vsel %vm679, %v670, %v678
      %v684 = vsel %vm679, %v672, %v664
      %v685 = vsel %vm679, %v674, %v666
      %v686 = vsel %vm679, %v676, %v668
      %v687 = vsel %vm679, %v678, %v670
      %s688 = scalar_lea.vmem %s1, 512
      %v689 = vld [vmem:[%s688] sm:$0xff]
      %v690 = vld [vmem:[%s688 + $0x8] sm:$0xff]
      %v691 = vld [vmem:[%s688 + $0x10] sm:$0xff]
      %v692 = vld [vmem:[%s688 + $0x18] sm:$0xff]
      %v693 = vld [vmem:[%s688 + $0x20] sm:$0xff]
      %v694 = vld [vmem:[%s688 + $0x28] sm:$0xff]
      %v695 = vld [vmem:[%s688 + $0x30] sm:$0xff]
      %v696 = vld [vmem:[%s688 + $0x38] sm:$0xff]
      %v697 = vmul.f32 %v680, %v689
      %v698 = vmul.f32 %v684, %v690
      %v699 = vmul.f32 %v681, %v691
      %v700 = vmul.f32 %v685, %v692
      %v701 = vmul.f32 %v682, %v693
      %v702 = vmul.f32 %v686, %v694
      %v703 = vmul.f32 %v683, %v695
      %v704 = vmul.f32 %v687, %v696
      %v705 = vadd.f32 %v655, %v697
      %v706 = vadd.f32 %v656, %v698
      %v707 = vadd.f32 %v657, %v699
      %v708 = vadd.f32 %v658, %v700
      %v709 = vadd.f32 %v659, %v701
      %v710 = vadd.f32 %v660, %v702
      %v711 = vadd.f32 %v661, %v703
      %v712 = vadd.f32 %v662, %v704
      %v713 = vld [vmem:[%s2] sm:$0xff]
      %v714 = vld [vmem:[%s2 + $0x8] sm:$0xff]
      %v715 = vld [vmem:[%s2 + $0x10] sm:$0xff]
      %v716 = vld [vmem:[%s2 + $0x18] sm:$0xff]
      %718 = vset.pattern.permute.xlu0 0
      %719 = vperm.xlu0 %718, %v713
      %v720 = vpop.permute.xlu0 %719
      %723 = vset.pattern.permute.xlu0 0
      %724 = vperm.xlu0 %723, %v714
      %v725 = vpop.permute.xlu0 %724
      %728 = vset.pattern.permute.xlu0 0
      %729 = vperm.xlu0 %728, %v715
      %v730 = vpop.permute.xlu0 %729
      %733 = vset.pattern.permute.xlu0 0
      %734 = vperm.xlu0 %733, %v716
      %v735 = vpop.permute.xlu0 %734
      %v737 = vadd.f32 %v705, %v720
      %v738 = vadd.f32 %v706, %v720
      %v739 = vadd.f32 %v707, %v725
      %v740 = vadd.f32 %v708, %v725
      %v741 = vadd.f32 %v709, %v730
      %v742 = vadd.f32 %v710, %v730
      %v743 = vadd.f32 %v711, %v735
      %v744 = vadd.f32 %v712, %v735
      %v745 = vmax.f32 %v737, 0.0
      %v746 = vmax.f32 %v738, 0.0
      %v747 = vmax.f32 %v739, 0.0
      %v748 = vmax.f32 %v740, 0.0
      %v749 = vmax.f32 %v741, 0.0
      %v750 = vmax.f32 %v742, 0.0
      %v751 = vmax.f32 %v743, 0.0
      %v752 = vmax.f32 %v744, 0.0
      %v753 = vmin.f32 %v745, 6.0
      %v754 = vmin.f32 %v746, 6.0
      %v755 = vmin.f32 %v747, 6.0
      %v756 = vmin.f32 %v748, 6.0
      %v757 = vmin.f32 %v749, 6.0
      %v758 = vmin.f32 %v750, 6.0
      %v759 = vmin.f32 %v751, 6.0
      %v760 = vmin.f32 %v752, 6.0
      %v761 = vld [vmem:[%s3] sm:$0xff]
      %v762 = vld [vmem:[%s3 + $0x8] sm:$0xff]
      %v763 = vld [vmem:[%s3 + $0x10] sm:$0xff]
      %v764 = vld [vmem:[%s3 + $0x18] sm:$0xff]
      %v765 = vld [vmem:[%s4] sm:$0xff]
      %v766 = vld [vmem:[%s4 + $0x8] sm:$0xff]
      %v767 = vld [vmem:[%s4 + $0x10] sm:$0xff]
      %v768 = vld [vmem:[%s4 + $0x18] sm:$0xff]
      %770 = vset.pattern.permute.xlu0 0
      %771 = vperm.xlu0 %770, %v765
      %v772 = vpop.permute.xlu0 %771
      %775 = vset.pattern.permute.xlu0 0
      %776 = vperm.xlu0 %775, %v766
      %v777 = vpop.permute.xlu0 %776
      %780 = vset.pattern.permute.xlu0 0
      %781 = vperm.xlu0 %780, %v767
      %v782 = vpop.permute.xlu0 %781
      %785 = vset.pattern.permute.xlu0 0
      %786 = vperm.xlu0 %785, %v768
      %v787 = vpop.permute.xlu0 %786
      %vm789 = vcmask 261120
      %v791 = vsel %vm789, %v761, 0
      %v794 = vsel %vm789, %v762, 0
      %v797 = vsel %vm789, %v763, 0
      %v800 = vsel %vm789, %v764, 0
      %802 = vmatprep.subr.mxu0 %v754
      %803 = vmatpush1.msra.mxu0 %v753
      %804 = vmatprep.subr.mxu0 %v756
      %805 = vmatpush1.msra.mxu0 %v755
      %806 = vmatprep.subr.mxu0 %v758
      %807 = vmatpush1.msra.mxu0 %v757
      %808 = vmatprep.subr.mxu0 %v760
      %809 = vmatpush1.msra.mxu0 %v759
      %810 = vmatprep.subr.mxu0 0.0
      %811 = vmatpush1.msra.mxu0 0.0
      %812 = vmatprep.subr.mxu0 0.0
      %813 = vmatpush1.msra.mxu0 0.0
      %814 = vmatprep.subr.mxu0 0.0
      %815 = vmatpush1.msra.mxu0 0.0
      %816 = vmatprep.subr.mxu0 0.0
      %817 = vmatpush1.msra.mxu0 0.0
      %818 = vmatprep.subr.mxu0 0.0
      %819 = vmatpush1.msra.mxu0 0.0
      %820 = vmatprep.subr.mxu0 0.0
      %821 = vmatpush1.msra.mxu0 0.0
      %822 = vmatprep.subr.mxu0 0.0
      %823 = vmatpush1.msra.mxu0 0.0
      %824 = vmatprep.subr.mxu0 0.0
      %825 = vmatpush1.msra.mxu0 0.0
      %826 = vmatprep.subr.mxu0 0.0
      %827 = vmatpush1.msra.mxu0 0.0
      %828 = vmatprep.subr.mxu0 0.0
      %829 = vmatpush1.msra.mxu0 0.0
      %830 = vmatprep.subr.mxu0 0.0
      %831 = vmatpush1.msra.mxu0 0.0
      %832 = vmatprep.subr.mxu0 0.0
      %833 = vmatpush1.msra.mxu0 0.0
      %834 = vmatprep.subr.mxu0 0.0
      %835 = vmatpush1.msra.mxu0 0.0
      %836 = vmatprep.subr.mxu0 0.0
      %837 = vmatpush1.msra.mxu0 0.0
      %838 = vmatprep.subr.mxu0 0.0
      %839 = vmatpush1.msra.mxu0 0.0
      %840 = vmatprep.subr.mxu0 0.0
      %841 = vmatpush1.msra.mxu0 0.0
      %842 = vmatprep.subr.mxu0 0.0
      %843 = vmatpush1.msra.mxu0 0.0
      %844 = vmatprep.subr.mxu0 0.0
      %845 = vmatpush1.msra.mxu0 0.0
      %846 = vmatprep.subr.mxu0 0.0
      %847 = vmatpush1.msra.mxu0 0.0
      %848 = vmatprep.subr.mxu0 0.0
      %849 = vmatpush1.msra.mxu0 0.0
      %850 = vmatprep.subr.mxu0 0.0
      %851 = vmatpush1.msra.mxu0 0.0
      %852 = vmatprep.subr.mxu0 0.0
      %853 = vmatpush1.msra.mxu0 0.0
      %854 = vmatprep.subr.mxu0 0.0
      %855 = vmatpush1.msra.mxu0 0.0
      %856 = vmatprep.subr.mxu0 0.0
      %857 = vmatpush1.msra.mxu0 0.0
      %858 = vmatprep.subr.mxu0 0.0
      %859 = vmatpush1.msra.mxu0 0.0
      %860 = vmatprep.subr.mxu0 0.0
      %861 = vmatpush1.msra.mxu0 0.0
      %862 = vmatprep.subr.mxu0 0.0
      %863 = vmatpush1.msra.mxu0 0.0
      %864 = vmatprep.subr.mxu0 0.0
      %865 = vmatpush1.msra.mxu0 0.0
      %866 = vmatprep.mubr.f32.mxu0 0.0
      %867 = vmatmul.mubr.f32.gmra.mrb[0].mxu0 %v791
      %v868 = vpop.f32.mrb[0].mxu0
      %v869 = vadd.f32 %v772, %v868
      %v870 = vpop.f32.mrb[0].mxu0
      %v871 = vadd.f32 %v772, %v870
      %872 = vmatprep.mubr.f32.mxu0 0.0
      %873 = vmatmul.mubr.f32.gmra.mrb[0].mxu0 %v794
      %v874 = vpop.f32.mrb[0].mxu0
      %v875 = vadd.f32 %v777, %v874
      %v876 = vpop.f32.mrb[0].mxu0
      %v877 = vadd.f32 %v777, %v876
      %878 = vmatprep.mubr.f32.mxu0 0.0
      %879 = vmatmul.mubr.f32.gmra.mrb[0].mxu0 %v797
      %v880 = vpop.f32.mrb[0].mxu0
      %v881 = vadd.f32 %v782, %v880
      %v882 = vpop.f32.mrb[0].mxu0
      %v883 = vadd.f32 %v782, %v882
      %884 = vmatprep.mubr.f32.mxu0 0.0
      %885 = vmatmul.mubr.f32.gmra.mrb[0].mxu0 %v800
      %v886 = vpop.f32.mrb[0].mxu0
      %v887 = vadd.f32 %v787, %v886
      %v888 = vpop.f32.mrb[0].mxu0
      %v889 = vadd.f32 %v787, %v888
      %890 = vdwg.mxu0
      %v891 = vmax.f32 %v869, 0.0
      %v892 = vmax.f32 %v871, 0.0
      %v893 = vmax.f32 %v875, 0.0
      %v894 = vmax.f32 %v877, 0.0
      %v895 = vmax.f32 %v881, 0.0
      %v896 = vmax.f32 %v883, 0.0
      %v897 = vmax.f32 %v887, 0.0
      %v898 = vmax.f32 %v889, 0.0
      %v899 = vmin.f32 %v891, 6.0
      %v900 = vmin.f32 %v892, 6.0
      %v901 = vmin.f32 %v893, 6.0
      %v902 = vmin.f32 %v894, 6.0
      %v903 = vmin.f32 %v895, 6.0
      %v904 = vmin.f32 %v896, 6.0
      %v905 = vmin.f32 %v897, 6.0
      %v906 = vmin.f32 %v898, 6.0
      %s907 = scalar_lea.vmem %s5, 256
      %v908 = vld [vmem:[%s907] sm:$0xff]
      %v909 = vld [vmem:[%s907 + $0x8] sm:$0xff]
      %v910 = vld [vmem:[%s907 + $0x10] sm:$0xff]
      %v911 = vld [vmem:[%s907 + $0x18] sm:$0xff]
      %v912 = vld [vmem:[%s907 + $0x20] sm:$0xff]
      %v913 = vld [vmem:[%s907 + $0x28] sm:$0xff]
      %v914 = vld [vmem:[%s907 + $0x30] sm:$0xff]
      %v915 = vld [vmem:[%s907 + $0x38] sm:$0xff]
      %v916 = vmul.f32 %v899, %v908
      %v917 = vmul.f32 %v900, %v909
      %v918 = vmul.f32 %v901, %v910
      %v919 = vmul.f32 %v902, %v911
      %v920 = vmul.f32 %v903, %v912
      %v921 = vmul.f32 %v904, %v913
      %v922 = vmul.f32 %v905, %v914
      %v923 = vmul.f32 %v906, %v915
      %924 = vrot.lane.b32.xlu0 %v899, 17
      %v925 = vpop.permute.xlu0 %924
      %926 = vrot.lane.b32.xlu0 %v901, 17
      %v927 = vpop.permute.xlu0 %926
      %928 = vrot.lane.b32.xlu0 %v903, 17
      %v929 = vpop.permute.xlu0 %928
      %930 = vrot.lane.b32.xlu0 %v905, 17
      %v931 = vpop.permute.xlu0 %930
      %932 = vrot.lane.b32.xlu0 %v900, 17
      %v933 = vpop.permute.xlu0 %932
      %934 = vrot.lane.b32.xlu0 %v902, 17
      %v935 = vpop.permute.xlu0 %934
      %936 = vrot.lane.b32.xlu0 %v904, 17
      %v937 = vpop.permute.xlu0 %936
      %938 = vrot.lane.b32.xlu0 %v906, 17
      %v939 = vpop.permute.xlu0 %938
      %v940 = vsel %vm330, %v925, %v933
      %v941 = vsel %vm330, %v927, %v935
      %v942 = vsel %vm330, %v929, %v937
      %v943 = vsel %vm330, %v931, %v939
      %v944 = vsel %vm330, %v933, %v925
      %v945 = vsel %vm330, %v935, %v927
      %v946 = vsel %vm330, %v937, %v929
      %v947 = vsel %vm330, %v939, %v931
      %v948 = vld [vmem:[%s5] sm:$0xff]
      %v949 = vld [vmem:[%s5 + $0x8] sm:$0xff]
      %v950 = vld [vmem:[%s5 + $0x10] sm:$0xff]
      %v951 = vld [vmem:[%s5 + $0x18] sm:$0xff]
      %v952 = vld [vmem:[%s5 + $0x20] sm:$0xff]
      %v953 = vld [vmem:[%s5 + $0x28] sm:$0xff]
      %v954 = vld [vmem:[%s5 + $0x30] sm:$0xff]
      %v955 = vld [vmem:[%s5 + $0x38] sm:$0xff]
      %v956 = vmul.f32 %v944, %v948
      %v957 = vmul.f32 %v940, %v949
      %v958 = vmul.f32 %v945, %v950
      %v959 = vmul.f32 %v941, %v951
      %v960 = vmul.f32 %v946, %v952
      %v961 = vmul.f32 %v942, %v953
      %v962 = vmul.f32 %v947, %v954
      %v963 = vmul.f32 %v943, %v955
      %v964 = vadd.f32 %v916, %v956
      %v965 = vadd.f32 %v917, %v957
      %v966 = vadd.f32 %v918, %v958
      %v967 = vadd.f32 %v919, %v959
      %v968 = vadd.f32 %v920, %v960
      %v969 = vadd.f32 %v921, %v961
      %v970 = vadd.f32 %v922, %v962
      %v971 = vadd.f32 %v923, %v963
      %972 = vrot.lane.b32.xlu0 %v899, 16
      %v973 = vpop.permute.xlu0 %972
      %974 = vrot.lane.b32.xlu0 %v901, 16
      %v975 = vpop.permute.xlu0 %974
      %976 = vrot.lane.b32.xlu0 %v903, 16
      %v977 = vpop.permute.xlu0 %976
      %978 = vrot.lane.b32.xlu0 %v905, 16
      %v979 = vpop.permute.xlu0 %978
      %980 = vrot.lane.b32.xlu0 %v900, 16
      %v981 = vpop.permute.xlu0 %980
      %982 = vrot.lane.b32.xlu0 %v902, 16
      %v983 = vpop.permute.xlu0 %982
      %984 = vrot.lane.b32.xlu0 %v904, 16
      %v985 = vpop.permute.xlu0 %984
      %986 = vrot.lane.b32.xlu0 %v906, 16
      %v987 = vpop.permute.xlu0 %986
      %v988 = vsel %vm379, %v973, %v981
      %v989 = vsel %vm379, %v975, %v983
      %v990 = vsel %vm379, %v977, %v985
      %v991 = vsel %vm379, %v979, %v987
      %v992 = vsel %vm379, %v981, %v973
      %v993 = vsel %vm379, %v983, %v975
      %v994 = vsel %vm379, %v985, %v977
      %v995 = vsel %vm379, %v987, %v979
      %s996 = scalar_lea.vmem %s5, 64
      %v997 = vld [vmem:[%s996] sm:$0xff]
      %v998 = vld [vmem:[%s996 + $0x8] sm:$0xff]
      %v999 = vld [vmem:[%s996 + $0x10] sm:$0xff]
      %v1000 = vld [vmem:[%s996 + $0x18] sm:$0xff]
      %v1001 = vld [vmem:[%s996 + $0x20] sm:$0xff]
      %v1002 = vld [vmem:[%s996 + $0x28] sm:$0xff]
      %v1003 = vld [vmem:[%s996 + $0x30] sm:$0xff]
      %v1004 = vld [vmem:[%s996 + $0x38] sm:$0xff]
      %v1005 = vmul.f32 %v992, %v997
      %v1006 = vmul.f32 %v988, %v998
      %v1007 = vmul.f32 %v993, %v999
      %v1008 = vmul.f32 %v989, %v1000
      %v1009 = vmul.f32 %v994, %v1001
      %v1010 = vmul.f32 %v990, %v1002
      %v1011 = vmul.f32 %v995, %v1003
      %v1012 = vmul.f32 %v991, %v1004
      %v1013 = vadd.f32 %v964, %v1005
      %v1014 = vadd.f32 %v965, %v1006
      %v1015 = vadd.f32 %v966, %v1007
      %v1016 = vadd.f32 %v967, %v1008
      %v1017 = vadd.f32 %v968, %v1009
      %v1018 = vadd.f32 %v969, %v1010
      %v1019 = vadd.f32 %v970, %v1011
      %v1020 = vadd.f32 %v971, %v1012
      %1021 = vrot.lane.b32.xlu0 %v899, 15
      %v1022 = vpop.permute.xlu0 %1021
      %1023 = vrot.lane.b32.xlu0 %v901, 15
      %v1024 = vpop.permute.xlu0 %1023
      %1025 = vrot.lane.b32.xlu0 %v903, 15
      %v1026 = vpop.permute.xlu0 %1025
      %1027 = vrot.lane.b32.xlu0 %v905, 15
      %v1028 = vpop.permute.xlu0 %1027
      %1029 = vrot.lane.b32.xlu0 %v900, 15
      %v1030 = vpop.permute.xlu0 %1029
      %1031 = vrot.lane.b32.xlu0 %v902, 15
      %v1032 = vpop.permute.xlu0 %1031
      %1033 = vrot.lane.b32.xlu0 %v904, 15
      %v1034 = vpop.permute.xlu0 %1033
      %1035 = vrot.lane.b32.xlu0 %v906, 15
      %v1036 = vpop.permute.xlu0 %1035
      %v1037 = vsel %vm429, %v1022, %v1030
      %v1038 = vsel %vm429, %v1024, %v1032
      %v1039 = vsel %vm429, %v1026, %v1034
      %v1040 = vsel %vm429, %v1028, %v1036
      %v1041 = vsel %vm429, %v1030, %v1022
      %v1042 = vsel %vm429, %v1032, %v1024
      %v1043 = vsel %vm429, %v1034, %v1026
      %v1044 = vsel %vm429, %v1036, %v1028
      %s1045 = scalar_lea.vmem %s5, 128
      %v1046 = vld [vmem:[%s1045] sm:$0xff]
      %v1047 = vld [vmem:[%s1045 + $0x8] sm:$0xff]
      %v1048 = vld [vmem:[%s1045 + $0x10] sm:$0xff]
      %v1049 = vld [vmem:[%s1045 + $0x18] sm:$0xff]
      %v1050 = vld [vmem:[%s1045 + $0x20] sm:$0xff]
      %v1051 = vld [vmem:[%s1045 + $0x28] sm:$0xff]
      %v1052 = vld [vmem:[%s1045 + $0x30] sm:$0xff]
      %v1053 = vld [vmem:[%s1045 + $0x38] sm:$0xff]
      %v1054 = vmul.f32 %v1041, %v1046
      %v1055 = vmul.f32 %v1037, %v1047
      %v1056 = vmul.f32 %v1042, %v1048
      %v1057 = vmul.f32 %v1038, %v1049
      %v1058 = vmul.f32 %v1043, %v1050
      %v1059 = vmul.f32 %v1039, %v1051
      %v1060 = vmul.f32 %v1044, %v1052
      %v1061 = vmul.f32 %v1040, %v1053
      %v1062 = vadd.f32 %v1013, %v1054
      %v1063 = vadd.f32 %v1014, %v1055
      %v1064 = vadd.f32 %v1015, %v1056
      %v1065 = vadd.f32 %v1016, %v1057
      %v1066 = vadd.f32 %v1017, %v1058
      %v1067 = vadd.f32 %v1018, %v1059
      %v1068 = vadd.f32 %v1019, %v1060
      %v1069 = vadd.f32 %v1020, %v1061
      %1070 = vrot.lane.b32.xlu0 %v899, 1
      %v1071 = vpop.permute.xlu0 %1070
      %1072 = vrot.lane.b32.xlu0 %v901, 1
      %v1073 = vpop.permute.xlu0 %1072
      %1074 = vrot.lane.b32.xlu0 %v903, 1
      %v1075 = vpop.permute.xlu0 %1074
      %1076 = vrot.lane.b32.xlu0 %v905, 1
      %v1077 = vpop.permute.xlu0 %1076
      %1078 = vrot.lane.b32.xlu0 %v900, 1
      %v1079 = vpop.permute.xlu0 %1078
      %1080 = vrot.lane.b32.xlu0 %v902, 1
      %v1081 = vpop.permute.xlu0 %1080
      %1082 = vrot.lane.b32.xlu0 %v904, 1
      %v1083 = vpop.permute.xlu0 %1082
      %1084 = vrot.lane.b32.xlu0 %v906, 1
      %v1085 = vpop.permute.xlu0 %1084
      %v1086 = vsel %vm479, %v1071, %v1079
      %v1087 = vsel %vm479, %v1073, %v1081
      %v1088 = vsel %vm479, %v1075, %v1083
      %v1089 = vsel %vm479, %v1077, %v1085
      %v1090 = vsel %vm479, %v1079, %v1071
      %v1091 = vsel %vm479, %v1081, %v1073
      %v1092 = vsel %vm479, %v1083, %v1075
      %v1093 = vsel %vm479, %v1085, %v1077
      %s1094 = scalar_lea.vmem %s5, 192
      %v1095 = vld [vmem:[%s1094] sm:$0xff]
      %v1096 = vld [vmem:[%s1094 + $0x8] sm:$0xff]
      %v1097 = vld [vmem:[%s1094 + $0x10] sm:$0xff]
      %v1098 = vld [vmem:[%s1094 + $0x18] sm:$0xff]
      %v1099 = vld [vmem:[%s1094 + $0x20] sm:$0xff]
      %v1100 = vld [vmem:[%s1094 + $0x28] sm:$0xff]
      %v1101 = vld [vmem:[%s1094 + $0x30] sm:$0xff]
      %v1102 = vld [vmem:[%s1094 + $0x38] sm:$0xff]
      %v1103 = vmul.f32 %v1090, %v1095
      %v1104 = vmul.f32 %v1086, %v1096
      %v1105 = vmul.f32 %v1091, %v1097
      %v1106 = vmul.f32 %v1087, %v1098
      %v1107 = vmul.f32 %v1092, %v1099
      %v1108 = vmul.f32 %v1088, %v1100
      %v1109 = vmul.f32 %v1093, %v1101
      %v1110 = vmul.f32 %v1089, %v1102
      %v1111 = vadd.f32 %v1062, %v1103
      %v1112 = vadd.f32 %v1063, %v1104
      %v1113 = vadd.f32 %v1064, %v1105
      %v1114 = vadd.f32 %v1065, %v1106
      %v1115 = vadd.f32 %v1066, %v1107
      %v1116 = vadd.f32 %v1067, %v1108
      %v1117 = vadd.f32 %v1068, %v1109
      %v1118 = vadd.f32 %v1069, %v1110
      %1119 = vrot.lane.b32.xlu0 %v899, 127
      %v1120 = vpop.permute.xlu0 %1119
      %1121 = vrot.lane.b32.xlu0 %v901, 127
      %v1122 = vpop.permute.xlu0 %1121
      %1123 = vrot.lane.b32.xlu0 %v903, 127
      %v1124 = vpop.permute.xlu0 %1123
      %1125 = vrot.lane.b32.xlu0 %v905, 127
      %v1126 = vpop.permute.xlu0 %1125
      %1127 = vrot.lane.b32.xlu0 %v900, 127
      %v1128 = vpop.permute.xlu0 %1127
      %1129 = vrot.lane.b32.xlu0 %v902, 127
      %v1130 = vpop.permute.xlu0 %1129
      %1131 = vrot.lane.b32.xlu0 %v904, 127
      %v1132 = vpop.permute.xlu0 %1131
      %1133 = vrot.lane.b32.xlu0 %v906, 127
      %v1134 = vpop.permute.xlu0 %1133
      %v1135 = vsel %vm529, %v1120, %v1128
      %v1136 = vsel %vm529, %v1122, %v1130
      %v1137 = vsel %vm529, %v1124, %v1132
      %v1138 = vsel %vm529, %v1126, %v1134
      %v1139 = vsel %vm529, %v1128, %v1120
      %v1140 = vsel %vm529, %v1130, %v1122
      %v1141 = vsel %vm529, %v1132, %v1124
      %v1142 = vsel %vm529, %v1134, %v1126
      %s1143 = scalar_lea.vmem %s5, 320
      %v1144 = vld [vmem:[%s1143] sm:$0xff]
      %v1145 = vld [vmem:[%s1143 + $0x8] sm:$0xff]
      %v1146 = vld [vmem:[%s1143 + $0x10] sm:$0xff]
      %v1147 = vld [vmem:[%s1143 + $0x18] sm:$0xff]
      %v1148 = vld [vmem:[%s1143 + $0x20] sm:$0xff]
      %v1149 = vld [vmem:[%s1143 + $0x28] sm:$0xff]
      %v1150 = vld [vmem:[%s1143 + $0x30] sm:$0xff]
      %v1151 = vld [vmem:[%s1143 + $0x38] sm:$0xff]
      %v1152 = vmul.f32 %v1135, %v1144
      %v1153 = vmul.f32 %v1139, %v1145
      %v1154 = vmul.f32 %v1136, %v1146
      %v1155 = vmul.f32 %v1140, %v1147
      %v1156 = vmul.f32 %v1137, %v1148
      %v1157 = vmul.f32 %v1141, %v1149
      %v1158 = vmul.f32 %v1138, %v1150
      %v1159 = vmul.f32 %v1142, %v1151
      %v1160 = vadd.f32 %v1111, %v1152
      %v1161 = vadd.f32 %v1112, %v1153
      %v1162 = vadd.f32 %v1113, %v1154
      %v1163 = vadd.f32 %v1114, %v1155
      %v1164 = vadd.f32 %v1115, %v1156
      %v1165 = vadd.f32 %v1116, %v1157
      %v1166 = vadd.f32 %v1117, %v1158
      %v1167 = vadd.f32 %v1118, %v1159
      %1168 = vrot.lane.b32.xlu0 %v899, 113
      %v1169 = vpop.permute.xlu0 %1168
      %1170 = vrot.lane.b32.xlu0 %v901, 113
      %v1171 = vpop.permute.xlu0 %1170
      %1172 = vrot.lane.b32.xlu0 %v903, 113
      %v1173 = vpop.permute.xlu0 %1172
      %1174 = vrot.lane.b32.xlu0 %v905, 113
      %v1175 = vpop.permute.xlu0 %1174
      %1176 = vrot.lane.b32.xlu0 %v900, 113
      %v1177 = vpop.permute.xlu0 %1176
      %1178 = vrot.lane.b32.xlu0 %v902, 113
      %v1179 = vpop.permute.xlu0 %1178
      %1180 = vrot.lane.b32.xlu0 %v904, 113
      %v1181 = vpop.permute.xlu0 %1180
      %1182 = vrot.lane.b32.xlu0 %v906, 113
      %v1183 = vpop.permute.xlu0 %1182
      %v1184 = vsel %vm579, %v1169, %v1177
      %v1185 = vsel %vm579, %v1171, %v1179
      %v1186 = vsel %vm579, %v1173, %v1181
      %v1187 = vsel %vm579, %v1175, %v1183
      %v1188 = vsel %vm579, %v1177, %v1169
      %v1189 = vsel %vm579, %v1179, %v1171
      %v1190 = vsel %vm579, %v1181, %v1173
      %v1191 = vsel %vm579, %v1183, %v1175
      %s1192 = scalar_lea.vmem %s5, 384
      %v1193 = vld [vmem:[%s1192] sm:$0xff]
      %v1194 = vld [vmem:[%s1192 + $0x8] sm:$0xff]
      %v1195 = vld [vmem:[%s1192 + $0x10] sm:$0xff]
      %v1196 = vld [vmem:[%s1192 + $0x18] sm:$0xff]
      %v1197 = vld [vmem:[%s1192 + $0x20] sm:$0xff]
      %v1198 = vld [vmem:[%s1192 + $0x28] sm:$0xff]
      %v1199 = vld [vmem:[%s1192 + $0x30] sm:$0xff]
      %v1200 = vld [vmem:[%s1192 + $0x38] sm:$0xff]
      %v1201 = vmul.f32 %v1184, %v1193
      %v1202 = vmul.f32 %v1188, %v1194
      %v1203 = vmul.f32 %v1185, %v1195
      %v1204 = vmul.f32 %v1189, %v1196
      %v1205 = vmul.f32 %v1186, %v1197
      %v1206 = vmul.f32 %v1190, %v1198
      %v1207 = vmul.f32 %v1187, %v1199
      %v1208 = vmul.f32 %v1191, %v1200
      %v1209 = vadd.f32 %v1160, %v1201
      %v1210 = vadd.f32 %v1161, %v1202
      %v1211 = vadd.f32 %v1162, %v1203
      %v1212 = vadd.f32 %v1163, %v1204
      %v1213 = vadd.f32 %v1164, %v1205
      %v1214 = vadd.f32 %v1165, %v1206
      %v1215 = vadd.f32 %v1166, %v1207
      %v1216 = vadd.f32 %v1167, %v1208
      %1217 = vrot.lane.b32.xlu0 %v899, 112
      %v1218 = vpop.permute.xlu0 %1217
      %1219 = vrot.lane.b32.xlu0 %v901, 112
      %v1220 = vpop.permute.xlu0 %1219
      %1221 = vrot.lane.b32.xlu0 %v903, 112
      %v1222 = vpop.permute.xlu0 %1221
      %1223 = vrot.lane.b32.xlu0 %v905, 112
      %v1224 = vpop.permute.xlu0 %1223
      %1225 = vrot.lane.b32.xlu0 %v900, 112
      %v1226 = vpop.permute.xlu0 %1225
      %1227 = vrot.lane.b32.xlu0 %v902, 112
      %v1228 = vpop.permute.xlu0 %1227
      %1229 = vrot.lane.b32.xlu0 %v904, 112
      %v1230 = vpop.permute.xlu0 %1229
      %1231 = vrot.lane.b32.xlu0 %v906, 112
      %v1232 = vpop.permute.xlu0 %1231
      %v1233 = vsel %vm629, %v1218, %v1226
      %v1234 = vsel %vm629, %v1220, %v1228
      %v1235 = vsel %vm629, %v1222, %v1230
      %v1236 = vsel %vm629, %v1224, %v1232
      %v1237 = vsel %vm629, %v1226, %v1218
      %v1238 = vsel %vm629, %v1228, %v1220
      %v1239 = vsel %vm629, %v1230, %v1222
      %v1240 = vsel %vm629, %v1232, %v1224
      %s1241 = scalar_lea.vmem %s5, 448
      %v1242 = vld [vmem:[%s1241] sm:$0xff]
      %v1243 = vld [vmem:[%s1241 + $0x8] sm:$0xff]
      %v1244 = vld [vmem:[%s1241 + $0x10] sm:$0xff]
      %v1245 = vld [vmem:[%s1241 + $0x18] sm:$0xff]
      %v1246 = vld [vmem:[%s1241 + $0x20] sm:$0xff]
      %v1247 = vld [vmem:[%s1241 + $0x28] sm:$0xff]
      %v1248 = vld [vmem:[%s1241 + $0x30] sm:$0xff]
      %v1249 = vld [vmem:[%s1241 + $0x38] sm:$0xff]
      %v1250 = vmul.f32 %v1233, %v1242
      %v1251 = vmul.f32 %v1237, %v1243
      %v1252 = vmul.f32 %v1234, %v1244
      %v1253 = vmul.f32 %v1238, %v1245
      %v1254 = vmul.f32 %v1235, %v1246
      %v1255 = vmul.f32 %v1239, %v1247
      %v1256 = vmul.f32 %v1236, %v1248
      %v1257 = vmul.f32 %v1240, %v1249
      %v1258 = vadd.f32 %v1209, %v1250
      %v1259 = vadd.f32 %v1210, %v1251
      %v1260 = vadd.f32 %v1211, %v1252
      %v1261 = vadd.f32 %v1212, %v1253
      %v1262 = vadd.f32 %v1213, %v1254
      %v1263 = vadd.f32 %v1214, %v1255
      %v1264 = vadd.f32 %v1215, %v1256
      %v1265 = vadd.f32 %v1216, %v1257
      %1266 = vrot.lane.b32.xlu0 %v899, 111
      %v1267 = vpop.permute.xlu0 %1266
      %1268 = vrot.lane.b32.xlu0 %v901, 111
      %v1269 = vpop.permute.xlu0 %1268
      %1270 = vrot.lane.b32.xlu0 %v903, 111
      %v1271 = vpop.permute.xlu0 %1270
      %1272 = vrot.lane.b32.xlu0 %v905, 111
      %v1273 = vpop.permute.xlu0 %1272
      %1274 = vrot.lane.b32.xlu0 %v900, 111
      %v1275 = vpop.permute.xlu0 %1274
      %1276 = vrot.lane.b32.xlu0 %v902, 111
      %v1277 = vpop.permute.xlu0 %1276
      %1278 = vrot.lane.b32.xlu0 %v904, 111
      %v1279 = vpop.permute.xlu0 %1278
      %1280 = vrot.lane.b32.xlu0 %v906, 111
      %v1281 = vpop.permute.xlu0 %1280
      %v1282 = vsel %vm679, %v1267, %v1275
      %v1283 = vsel %vm679, %v1269, %v1277
      %v1284 = vsel %vm679, %v1271, %v1279
      %v1285 = vsel %vm679, %v1273, %v1281
      %v1286 = vsel %vm679, %v1275, %v1267
      %v1287 = vsel %vm679, %v1277, %v1269
      %v1288 = vsel %vm679, %v1279, %v1271
      %v1289 = vsel %vm679, %v1281, %v1273
      %s1290 = scalar_lea.vmem %s5, 512
      %v1291 = vld [vmem:[%s1290] sm:$0xff]
      %v1292 = vld [vmem:[%s1290 + $0x8] sm:$0xff]
      %v1293 = vld [vmem:[%s1290 + $0x10] sm:$0xff]
      %v1294 = vld [vmem:[%s1290 + $0x18] sm:$0xff]
      %v1295 = vld [vmem:[%s1290 + $0x20] sm:$0xff]
      %v1296 = vld [vmem:[%s1290 + $0x28] sm:$0xff]
      %v1297 = vld [vmem:[%s1290 + $0x30] sm:$0xff]
      %v1298 = vld [vmem:[%s1290 + $0x38] sm:$0xff]
      %v1299 = vmul.f32 %v1282, %v1291
      %v1300 = vmul.f32 %v1286, %v1292
      %v1301 = vmul.f32 %v1283, %v1293
      %v1302 = vmul.f32 %v1287, %v1294
      %v1303 = vmul.f32 %v1284, %v1295
      %v1304 = vmul.f32 %v1288, %v1296
      %v1305 = vmul.f32 %v1285, %v1297
      %v1306 = vmul.f32 %v1289, %v1298
      %v1307 = vadd.f32 %v1258, %v1299
      %v1308 = vadd.f32 %v1259, %v1300
      %v1309 = vadd.f32 %v1260, %v1301
      %v1310 = vadd.f32 %v1261, %v1302
      %v1311 = vadd.f32 %v1262, %v1303
      %v1312 = vadd.f32 %v1263, %v1304
      %v1313 = vadd.f32 %v1264, %v1305
      %v1314 = vadd.f32 %v1265, %v1306
      %v1315 = vld [vmem:[%s6] sm:$0xff]
      %v1316 = vld [vmem:[%s6 + $0x8] sm:$0xff]
      %v1317 = vld [vmem:[%s6 + $0x10] sm:$0xff]
      %v1318 = vld [vmem:[%s6 + $0x18] sm:$0xff]
      %1320 = vset.pattern.permute.xlu0 0
      %1321 = vperm.xlu0 %1320, %v1315
      %v1322 = vpop.permute.xlu0 %1321
      %1325 = vset.pattern.permute.xlu0 0
      %1326 = vperm.xlu0 %1325, %v1316
      %v1327 = vpop.permute.xlu0 %1326
      %1330 = vset.pattern.permute.xlu0 0
      %1331 = vperm.xlu0 %1330, %v1317
      %v1332 = vpop.permute.xlu0 %1331
      %1335 = vset.pattern.permute.xlu0 0
      %1336 = vperm.xlu0 %1335, %v1318
      %v1337 = vpop.permute.xlu0 %1336
      %v1339 = vadd.f32 %v1307, %v1322
      %v1340 = vadd.f32 %v1308, %v1322
      %v1341 = vadd.f32 %v1309, %v1327
      %v1342 = vadd.f32 %v1310, %v1327
      %v1343 = vadd.f32 %v1311, %v1332
      %v1344 = vadd.f32 %v1312, %v1332
      %v1345 = vadd.f32 %v1313, %v1337
      %v1346 = vadd.f32 %v1314, %v1337
      %v1347 = vadd.f32 %v1339, %v287
      %v1348 = vadd.f32 %v1340, %v288
      %v1349 = vadd.f32 %v1341, %v289
      %v1350 = vadd.f32 %v1342, %v290
      %v1351 = vadd.f32 %v1343, %v291
      %v1352 = vadd.f32 %v1344, %v292
      %v1353 = vadd.f32 %v1345, %v293
      %v1354 = vadd.f32 %v1346, %v294
      %1355 = vst [vmem:[%s285] sm:$0xff] %v1347
      %1356 = vst [vmem:[%s285 + $0x8] sm:$0xff] %v1348
      %1357 = vst [vmem:[%s285 + $0x10] sm:$0xff] %v1349
      %1358 = vst [vmem:[%s285 + $0x18] sm:$0xff] %v1350
      %1359 = vst [vmem:[%s285 + $0x20] sm:$0xff] %v1351
      %1360 = vst [vmem:[%s285 + $0x28] sm:$0xff] %v1352
      %1361 = vst [vmem:[%s285 + $0x30] sm:$0xff] %v1353
      %1362 = vst [vmem:[%s285 + $0x38] sm:$0xff] %v1354
      %s1363 = scalar_lea.vmem %s278, 64
      %v1364 = vld [vmem:[%s1363] sm:$0xff]
      %v1365 = vld [vmem:[%s1363 + $0x8] sm:$0xff]
      %v1366 = vld [vmem:[%s1363 + $0x10] sm:$0xff]
      %v1367 = vld [vmem:[%s1363 + $0x18] sm:$0xff]
      %v1368 = vld [vmem:[%s1363 + $0x20] sm:$0xff]
      %v1369 = vld [vmem:[%s1363 + $0x28] sm:$0xff]
      %v1370 = vld [vmem:[%s1363 + $0x30] sm:$0xff]
      %v1371 = vld [vmem:[%s1363 + $0x38] sm:$0xff]
      %v1372 = vld [vmem:[%s295] sm:$0xff]
      %v1373 = vld [vmem:[%s295 + $0x8] sm:$0xff]
      %v1374 = vld [vmem:[%s295 + $0x10] sm:$0xff]
      %v1375 = vld [vmem:[%s295 + $0x18] sm:$0xff]
      %v1376 = vld [vmem:[%s295 + $0x20] sm:$0xff]
      %v1377 = vld [vmem:[%s295 + $0x28] sm:$0xff]
      %v1378 = vld [vmem:[%s295 + $0x30] sm:$0xff]
      %v1379 = vld [vmem:[%s295 + $0x38] sm:$0xff]
      %v1380 = vmul.f32 %v1364, %v1372
      %v1381 = vmul.f32 %v1365, %v1373
      %v1382 = vmul.f32 %v1366, %v1374
      %v1383 = vmul.f32 %v1367, %v1375
      %v1384 = vmul.f32 %v1368, %v1376
      %v1385 = vmul.f32 %v1369, %v1377
      %v1386 = vmul.f32 %v1370, %v1378
      %v1387 = vmul.f32 %v1371, %v1379
      %1388 = vrot.lane.b32.xlu0 %v1364, 17
      %v1389 = vpop.permute.xlu0 %1388
      %1390 = vrot.lane.b32.xlu0 %v1366, 17
      %v1391 = vpop.permute.xlu0 %1390
      %1392 = vrot.lane.b32.xlu0 %v1368, 17
      %v1393 = vpop.permute.xlu0 %1392
      %1394 = vrot.lane.b32.xlu0 %v1370, 17
      %v1395 = vpop.permute.xlu0 %1394
      %1396 = vrot.lane.b32.xlu0 %v1365, 17
      %v1397 = vpop.permute.xlu0 %1396
      %1398 = vrot.lane.b32.xlu0 %v1367, 17
      %v1399 = vpop.permute.xlu0 %1398
      %1400 = vrot.lane.b32.xlu0 %v1369, 17
      %v1401 = vpop.permute.xlu0 %1400
      %1402 = vrot.lane.b32.xlu0 %v1371, 17
      %v1403 = vpop.permute.xlu0 %1402
      %v1404 = vsel %vm330, %v1389, %v1397
      %v1405 = vsel %vm330, %v1391, %v1399
      %v1406 = vsel %vm330, %v1393, %v1401
      %v1407 = vsel %vm330, %v1395, %v1403
      %v1408 = vsel %vm330, %v1397, %v1389
      %v1409 = vsel %vm330, %v1399, %v1391
      %v1410 = vsel %vm330, %v1401, %v1393
      %v1411 = vsel %vm330, %v1403, %v1395
      %v1412 = vld [vmem:[%s1] sm:$0xff]
      %v1413 = vld [vmem:[%s1 + $0x8] sm:$0xff]
      %v1414 = vld [vmem:[%s1 + $0x10] sm:$0xff]
      %v1415 = vld [vmem:[%s1 + $0x18] sm:$0xff]
      %v1416 = vld [vmem:[%s1 + $0x20] sm:$0xff]
      %v1417 = vld [vmem:[%s1 + $0x28] sm:$0xff]
      %v1418 = vld [vmem:[%s1 + $0x30] sm:$0xff]
      %v1419 = vld [vmem:[%s1 + $0x38] sm:$0xff]
      %v1420 = vmul.f32 %v1408, %v1412
      %v1421 = vmul.f32 %v1404, %v1413
      %v1422 = vmul.f32 %v1409, %v1414
      %v1423 = vmul.f32 %v1405, %v1415
      %v1424 = vmul.f32 %v1410, %v1416
      %v1425 = vmul.f32 %v1406, %v1417
      %v1426 = vmul.f32 %v1411, %v1418
      %v1427 = vmul.f32 %v1407, %v1419
      %v1428 = vadd.f32 %v1380, %v1420
      %v1429 = vadd.f32 %v1381, %v1421
      %v1430 = vadd.f32 %v1382, %v1422
      %v1431 = vadd.f32 %v1383, %v1423
      %v1432 = vadd.f32 %v1384, %v1424
      %v1433 = vadd.f32 %v1385, %v1425
      %v1434 = vadd.f32 %v1386, %v1426
      %v1435 = vadd.f32 %v1387, %v1427
      %1436 = vrot.lane.b32.xlu0 %v1364, 16
      %v1437 = vpop.permute.xlu0 %1436
      %1438 = vrot.lane.b32.xlu0 %v1366, 16
      %v1439 = vpop.permute.xlu0 %1438
      %1440 = vrot.lane.b32.xlu0 %v1368, 16
      %v1441 = vpop.permute.xlu0 %1440
      %1442 = vrot.lane.b32.xlu0 %v1370, 16
      %v1443 = vpop.permute.xlu0 %1442
      %1444 = vrot.lane.b32.xlu0 %v1365, 16
      %v1445 = vpop.permute.xlu0 %1444
      %1446 = vrot.lane.b32.xlu0 %v1367, 16
      %v1447 = vpop.permute.xlu0 %1446
      %1448 = vrot.lane.b32.xlu0 %v1369, 16
      %v1449 = vpop.permute.xlu0 %1448
      %1450 = vrot.lane.b32.xlu0 %v1371, 16
      %v1451 = vpop.permute.xlu0 %1450
      %v1452 = vsel %vm379, %v1437, %v1445
      %v1453 = vsel %vm379, %v1439, %v1447
      %v1454 = vsel %vm379, %v1441, %v1449
      %v1455 = vsel %vm379, %v1443, %v1451
      %v1456 = vsel %vm379, %v1445, %v1437
      %v1457 = vsel %vm379, %v1447, %v1439
      %v1458 = vsel %vm379, %v1449, %v1441
      %v1459 = vsel %vm379, %v1451, %v1443
      %v1460 = vld [vmem:[%s388] sm:$0xff]
      %v1461 = vld [vmem:[%s388 + $0x8] sm:$0xff]
      %v1462 = vld [vmem:[%s388 + $0x10] sm:$0xff]
      %v1463 = vld [vmem:[%s388 + $0x18] sm:$0xff]
      %v1464 = vld [vmem:[%s388 + $0x20] sm:$0xff]
      %v1465 = vld [vmem:[%s388 + $0x28] sm:$0xff]
      %v1466 = vld [vmem:[%s388 + $0x30] sm:$0xff]
      %v1467 = vld [vmem:[%s388 + $0x38] sm:$0xff]
      %v1468 = vmul.f32 %v1456, %v1460
      %v1469 = vmul.f32 %v1452, %v1461
      %v1470 = vmul.f32 %v1457, %v1462
      %v1471 = vmul.f32 %v1453, %v1463
      %v1472 = vmul.f32 %v1458, %v1464
      %v1473 = vmul.f32 %v1454, %v1465
      %v1474 = vmul.f32 %v1459, %v1466
      %v1475 = vmul.f32 %v1455, %v1467
      %v1476 = vadd.f32 %v1428, %v1468
      %v1477 = vadd.f32 %v1429, %v1469
      %v1478 = vadd.f32 %v1430, %v1470
      %v1479 = vadd.f32 %v1431, %v1471
      %v1480 = vadd.f32 %v1432, %v1472
      %v1481 = vadd.f32 %v1433, %v1473
      %v1482 = vadd.f32 %v1434, %v1474
      %v1483 = vadd.f32 %v1435, %v1475
      %1484 = vrot.lane.b32.xlu0 %v1364, 15
      %v1485 = vpop.permute.xlu0 %1484
      %1486 = vrot.lane.b32.xlu0 %v1366, 15
      %v1487 = vpop.permute.xlu0 %1486
      %1488 = vrot.lane.b32.xlu0 %v1368, 15
      %v1489 = vpop.permute.xlu0 %1488
      %1490 = vrot.lane.b32.xlu0 %v1370, 15
      %v1491 = vpop.permute.xlu0 %1490
      %1492 = vrot.lane.b32.xlu0 %v1365, 15
      %v1493 = vpop.permute.xlu0 %1492
      %1494 = vrot.lane.b32.xlu0 %v1367, 15
      %v1495 = vpop.permute.xlu0 %1494
      %1496 = vrot.lane.b32.xlu0 %v1369, 15
      %v1497 = vpop.permute.xlu0 %1496
      %1498 = vrot.lane.b32.xlu0 %v1371, 15
      %v1499 = vpop.permute.xlu0 %1498
      %v1500 = vsel %vm429, %v1485, %v1493
      %v1501 = vsel %vm429, %v1487, %v1495
      %v1502 = vsel %vm429, %v1489, %v1497
      %v1503 = vsel %vm429, %v1491, %v1499
      %v1504 = vsel %vm429, %v1493, %v1485
      %v1505 = vsel %vm429, %v1495, %v1487
      %v1506 = vsel %vm429, %v1497, %v1489
      %v1507 = vsel %vm429, %v1499, %v1491
      %v1508 = vld [vmem:[%s438] sm:$0xff]
      %v1509 = vld [vmem:[%s438 + $0x8] sm:$0xff]
      %v1510 = vld [vmem:[%s438 + $0x10] sm:$0xff]
      %v1511 = vld [vmem:[%s438 + $0x18] sm:$0xff]
      %v1512 = vld [vmem:[%s438 + $0x20] sm:$0xff]
      %v1513 = vld [vmem:[%s438 + $0x28] sm:$0xff]
      %v1514 = vld [vmem:[%s438 + $0x30] sm:$0xff]
      %v1515 = vld [vmem:[%s438 + $0x38] sm:$0xff]
      %v1516 = vmul.f32 %v1504, %v1508
      %v1517 = vmul.f32 %v1500, %v1509
      %v1518 = vmul.f32 %v1505, %v1510
      %v1519 = vmul.f32 %v1501, %v1511
      %v1520 = vmul.f32 %v1506, %v1512
      %v1521 = vmul.f32 %v1502, %v1513
      %v1522 = vmul.f32 %v1507, %v1514
      %v1523 = vmul.f32 %v1503, %v1515
      %v1524 = vadd.f32 %v1476, %v1516
      %v1525 = vadd.f32 %v1477, %v1517
      %v1526 = vadd.f32 %v1478, %v1518
      %v1527 = vadd.f32 %v1479, %v1519
      %v1528 = vadd.f32 %v1480, %v1520
      %v1529 = vadd.f32 %v1481, %v1521
      %v1530 = vadd.f32 %v1482, %v1522
      %v1531 = vadd.f32 %v1483, %v1523
      %1532 = vrot.lane.b32.xlu0 %v1364, 1
      %v1533 = vpop.permute.xlu0 %1532
      %1534 = vrot.lane.b32.xlu0 %v1366, 1
      %v1535 = vpop.permute.xlu0 %1534
      %1536 = vrot.lane.b32.xlu0 %v1368, 1
      %v1537 = vpop.permute.xlu0 %1536
      %1538 = vrot.lane.b32.xlu0 %v1370, 1
      %v1539 = vpop.permute.xlu0 %1538
      %1540 = vrot.lane.b32.xlu0 %v1365, 1
      %v1541 = vpop.permute.xlu0 %1540
      %1542 = vrot.lane.b32.xlu0 %v1367, 1
      %v1543 = vpop.permute.xlu0 %1542
      %1544 = vrot.lane.b32.xlu0 %v1369, 1
      %v1545 = vpop.permute.xlu0 %1544
      %1546 = vrot.lane.b32.xlu0 %v1371, 1
      %v1547 = vpop.permute.xlu0 %1546
      %v1548 = vsel %vm479, %v1533, %v1541
      %v1549 = vsel %vm479, %v1535, %v1543
      %v1550 = vsel %vm479, %v1537, %v1545
      %v1551 = vsel %vm479, %v1539, %v1547
      %v1552 = vsel %vm479, %v1541, %v1533
      %v1553 = vsel %vm479, %v1543, %v1535
      %v1554 = vsel %vm479, %v1545, %v1537
      %v1555 = vsel %vm479, %v1547, %v1539
      %v1556 = vld [vmem:[%s488] sm:$0xff]
      %v1557 = vld [vmem:[%s488 + $0x8] sm:$0xff]
      %v1558 = vld [vmem:[%s488 + $0x10] sm:$0xff]
      %v1559 = vld [vmem:[%s488 + $0x18] sm:$0xff]
      %v1560 = vld [vmem:[%s488 + $0x20] sm:$0xff]
      %v1561 = vld [vmem:[%s488 + $0x28] sm:$0xff]
      %v1562 = vld [vmem:[%s488 + $0x30] sm:$0xff]
      %v1563 = vld [vmem:[%s488 + $0x38] sm:$0xff]
      %v1564 = vmul.f32 %v1552, %v1556
      %v1565 = vmul.f32 %v1548, %v1557
      %v1566 = vmul.f32 %v1553, %v1558
      %v1567 = vmul.f32 %v1549, %v1559
      %v1568 = vmul.f32 %v1554, %v1560
      %v1569 = vmul.f32 %v1550, %v1561
      %v1570 = vmul.f32 %v1555, %v1562
      %v1571 = vmul.f32 %v1551, %v1563
      %v1572 = vadd.f32 %v1524, %v1564
      %v1573 = vadd.f32 %v1525, %v1565
      %v1574 = vadd.f32 %v1526, %v1566
      %v1575 = vadd.f32 %v1527, %v1567
      %v1576 = vadd.f32 %v1528, %v1568
      %v1577 = vadd.f32 %v1529, %v1569
      %v1578 = vadd.f32 %v1530, %v1570
      %v1579 = vadd.f32 %v1531, %v1571
      %1580 = vrot.lane.b32.xlu0 %v1364, 127
      %v1581 = vpop.permute.xlu0 %1580
      %1582 = vrot.lane.b32.xlu0 %v1366, 127
      %v1583 = vpop.permute.xlu0 %1582
      %1584 = vrot.lane.b32.xlu0 %v1368, 127
      %v1585 = vpop.permute.xlu0 %1584
      %1586 = vrot.lane.b32.xlu0 %v1370, 127
      %v1587 = vpop.permute.xlu0 %1586
      %1588 = vrot.lane.b32.xlu0 %v1365, 127
      %v1589 = vpop.permute.xlu0 %1588
      %1590 = vrot.lane.b32.xlu0 %v1367, 127
      %v1591 = vpop.permute.xlu0 %1590
      %1592 = vrot.lane.b32.xlu0 %v1369, 127
      %v1593 = vpop.permute.xlu0 %1592
      %1594 = vrot.lane.b32.xlu0 %v1371, 127
      %v1595 = vpop.permute.xlu0 %1594
      %v1596 = vsel %vm529, %v1581, %v1589
      %v1597 = vsel %vm529, %v1583, %v1591
      %v1598 = vsel %vm529, %v1585, %v1593
      %v1599 = vsel %vm529, %v1587, %v1595
      %v1600 = vsel %vm529, %v1589, %v1581
      %v1601 = vsel %vm529, %v1591, %v1583
      %v1602 = vsel %vm529, %v1593, %v1585
      %v1603 = vsel %vm529, %v1595, %v1587
      %v1604 = vld [vmem:[%s538] sm:$0xff]
      %v1605 = vld [vmem:[%s538 + $0x8] sm:$0xff]
      %v1606 = vld [vmem:[%s538 + $0x10] sm:$0xff]
      %v1607 = vld [vmem:[%s538 + $0x18] sm:$0xff]
      %v1608 = vld [vmem:[%s538 + $0x20] sm:$0xff]
      %v1609 = vld [vmem:[%s538 + $0x28] sm:$0xff]
      %v1610 = vld [vmem:[%s538 + $0x30] sm:$0xff]
      %v1611 = vld [vmem:[%s538 + $0x38] sm:$0xff]
      %v1612 = vmul.f32 %v1596, %v1604
      %v1613 = vmul.f32 %v1600, %v1605
      %v1614 = vmul.f32 %v1597, %v1606
      %v1615 = vmul.f32 %v1601, %v1607
      %v1616 = vmul.f32 %v1598, %v1608
      %v1617 = vmul.f32 %v1602, %v1609
      %v1618 = vmul.f32 %v1599, %v1610
      %v1619 = vmul.f32 %v1603, %v1611
      %v1620 = vadd.f32 %v1572, %v1612
      %v1621 = vadd.f32 %v1573, %v1613
      %v1622 = vadd.f32 %v1574, %v1614
      %v1623 = vadd.f32 %v1575, %v1615
      %v1624 = vadd.f32 %v1576, %v1616
      %v1625 = vadd.f32 %v1577, %v1617
      %v1626 = vadd.f32 %v1578, %v1618
      %v1627 = vadd.f32 %v1579, %v1619
      %1628 = vrot.lane.b32.xlu0 %v1364, 113
      %v1629 = vpop.permute.xlu0 %1628
      %1630 = vrot.lane.b32.xlu0 %v1366, 113
      %v1631 = vpop.permute.xlu0 %1630
      %1632 = vrot.lane.b32.xlu0 %v1368, 113
      %v1633 = vpop.permute.xlu0 %1632
      %1634 = vrot.lane.b32.xlu0 %v1370, 113
      %v1635 = vpop.permute.xlu0 %1634
      %1636 = vrot.lane.b32.xlu0 %v1365, 113
      %v1637 = vpop.permute.xlu0 %1636
      %1638 = vrot.lane.b32.xlu0 %v1367, 113
      %v1639 = vpop.permute.xlu0 %1638
      %1640 = vrot.lane.b32.xlu0 %v1369, 113
      %v1641 = vpop.permute.xlu0 %1640
      %1642 = vrot.lane.b32.xlu0 %v1371, 113
      %v1643 = vpop.permute.xlu0 %1642
      %v1644 = vsel %vm579, %v1629, %v1637
      %v1645 = vsel %vm579, %v1631, %v1639
      %v1646 = vsel %vm579, %v1633, %v1641
      %v1647 = vsel %vm579, %v1635, %v1643
      %v1648 = vsel %vm579, %v1637, %v1629
      %v1649 = vsel %vm579, %v1639, %v1631
      %v1650 = vsel %vm579, %v1641, %v1633
      %v1651 = vsel %vm579, %v1643, %v1635
      %v1652 = vld [vmem:[%s588] sm:$0xff]
      %v1653 = vld [vmem:[%s588 + $0x8] sm:$0xff]
      %v1654 = vld [vmem:[%s588 + $0x10] sm:$0xff]
      %v1655 = vld [vmem:[%s588 + $0x18] sm:$0xff]
      %v1656 = vld [vmem:[%s588 + $0x20] sm:$0xff]
      %v1657 = vld [vmem:[%s588 + $0x28] sm:$0xff]
      %v1658 = vld [vmem:[%s588 + $0x30] sm:$0xff]
      %v1659 = vld [vmem:[%s588 + $0x38] sm:$0xff]
      %v1660 = vmul.f32 %v1644, %v1652
      %v1661 = vmul.f32 %v1648, %v1653
      %v1662 = vmul.f32 %v1645, %v1654
      %v1663 = vmul.f32 %v1649, %v1655
      %v1664 = vmul.f32 %v1646, %v1656
      %v1665 = vmul.f32 %v1650, %v1657
      %v1666 = vmul.f32 %v1647, %v1658
      %v1667 = vmul.f32 %v1651, %v1659
      %v1668 = vadd.f32 %v1620, %v1660
      %v1669 = vadd.f32 %v1621, %v1661
      %v1670 = vadd.f32 %v1622, %v1662
      %v1671 = vadd.f32 %v1623, %v1663
      %v1672 = vadd.f32 %v1624, %v1664
      %v1673 = vadd.f32 %v1625, %v1665
      %v1674 = vadd.f32 %v1626, %v1666
      %v1675 = vadd.f32 %v1627, %v1667
      %1676 = vrot.lane.b32.xlu0 %v1364, 112
      %v1677 = vpop.permute.xlu0 %1676
      %1678 = vrot.lane.b32.xlu0 %v1366, 112
      %v1679 = vpop.permute.xlu0 %1678
      %1680 = vrot.lane.b32.xlu0 %v1368, 112
      %v1681 = vpop.permute.xlu0 %1680
      %1682 = vrot.lane.b32.xlu0 %v1370, 112
      %v1683 = vpop.permute.xlu0 %1682
      %1684 = vrot.lane.b32.xlu0 %v1365, 112
      %v1685 = vpop.permute.xlu0 %1684
      %1686 = vrot.lane.b32.xlu0 %v1367, 112
      %v1687 = vpop.permute.xlu0 %1686
      %1688 = vrot.lane.b32.xlu0 %v1369, 112
      %v1689 = vpop.permute.xlu0 %1688
      %1690 = vrot.lane.b32.xlu0 %v1371, 112
      %v1691 = vpop.permute.xlu0 %1690
      %v1692 = vsel %vm629, %v1677, %v1685
      %v1693 = vsel %vm629, %v1679, %v1687
      %v1694 = vsel %vm629, %v1681, %v1689
      %v1695 = vsel %vm629, %v1683, %v1691
      %v1696 = vsel %vm629, %v1685, %v1677
      %v1697 = vsel %vm629, %v1687, %v1679
      %v1698 = vsel %vm629, %v1689, %v1681
      %v1699 = vsel %vm629, %v1691, %v1683
      %v1700 = vld [vmem:[%s638] sm:$0xff]
      %v1701 = vld [vmem:[%s638 + $0x8] sm:$0xff]
      %v1702 = vld [vmem:[%s638 + $0x10] sm:$0xff]
      %v1703 = vld [vmem:[%s638 + $0x18] sm:$0xff]
      %v1704 = vld [vmem:[%s638 + $0x20] sm:$0xff]
      %v1705 = vld [vmem:[%s638 + $0x28] sm:$0xff]
      %v1706 = vld [vmem:[%s638 + $0x30] sm:$0xff]
      %v1707 = vld [vmem:[%s638 + $0x38] sm:$0xff]
      %v1708 = vmul.f32 %v1692, %v1700
      %v1709 = vmul.f32 %v1696, %v1701
      %v1710 = vmul.f32 %v1693, %v1702
      %v1711 = vmul.f32 %v1697, %v1703
      %v1712 = vmul.f32 %v1694, %v1704
      %v1713 = vmul.f32 %v1698, %v1705
      %v1714 = vmul.f32 %v1695, %v1706
      %v1715 = vmul.f32 %v1699, %v1707
      %v1716 = vadd.f32 %v1668, %v1708
      %v1717 = vadd.f32 %v1669, %v1709
      %v1718 = vadd.f32 %v1670, %v1710
      %v1719 = vadd.f32 %v1671, %v1711
      %v1720 = vadd.f32 %v1672, %v1712
      %v1721 = vadd.f32 %v1673, %v1713
      %v1722 = vadd.f32 %v1674, %v1714
      %v1723 = vadd.f32 %v1675, %v1715
      %1724 = vrot.lane.b32.xlu0 %v1364, 111
      %v1725 = vpop.permute.xlu0 %1724
      %1726 = vrot.lane.b32.xlu0 %v1366, 111
      %v1727 = vpop.permute.xlu0 %1726
      %1728 = vrot.lane.b32.xlu0 %v1368, 111
      %v1729 = vpop.permute.xlu0 %1728
      %1730 = vrot.lane.b32.xlu0 %v1370, 111
      %v1731 = vpop.permute.xlu0 %1730
      %1732 = vrot.lane.b32.xlu0 %v1365, 111
      %v1733 = vpop.permute.xlu0 %1732
      %1734 = vrot.lane.b32.xlu0 %v1367, 111
      %v1735 = vpop.permute.xlu0 %1734
      %1736 = vrot.lane.b32.xlu0 %v1369, 111
      %v1737 = vpop.permute.xlu0 %1736
      %1738 = vrot.lane.b32.xlu0 %v1371, 111
      %v1739 = vpop.permute.xlu0 %1738
      %v1740 = vsel %vm679, %v1725, %v1733
      %v1741 = vsel %vm679, %v1727, %v1735
      %v1742 = vsel %vm679, %v1729, %v1737
      %v1743 = vsel %vm679, %v1731, %v1739
      %v1744 = vsel %vm679, %v1733, %v1725
      %v1745 = vsel %vm679, %v1735, %v1727
      %v1746 = vsel %vm679, %v1737, %v1729
      %v1747 = vsel %vm679, %v1739, %v1731
      %v1748 = vld [vmem:[%s688] sm:$0xff]
      %v1749 = vld [vmem:[%s688 + $0x8] sm:$0xff]
      %v1750 = vld [vmem:[%s688 + $0x10] sm:$0xff]
      %v1751 = vld [vmem:[%s688 + $0x18] sm:$0xff]
      %v1752 = vld [vmem:[%s688 + $0x20] sm:$0xff]
      %v1753 = vld [vmem:[%s688 + $0x28] sm:$0xff]
      %v1754 = vld [vmem:[%s688 + $0x30] sm:$0xff]
      %v1755 = vld [vmem:[%s688 + $0x38] sm:$0xff]
      %v1756 = vmul.f32 %v1740, %v1748
      %v1757 = vmul.f32 %v1744, %v1749
      %v1758 = vmul.f32 %v1741, %v1750
      %v1759 = vmul.f32 %v1745, %v1751
      %v1760 = vmul.f32 %v1742, %v1752
      %v1761 = vmul.f32 %v1746, %v1753
      %v1762 = vmul.f32 %v1743, %v1754
      %v1763 = vmul.f32 %v1747, %v1755
      %v1764 = vadd.f32 %v1716, %v1756
      %v1765 = vadd.f32 %v1717, %v1757
      %v1766 = vadd.f32 %v1718, %v1758
      %v1767 = vadd.f32 %v1719, %v1759
      %v1768 = vadd.f32 %v1720, %v1760
      %v1769 = vadd.f32 %v1721, %v1761
      %v1770 = vadd.f32 %v1722, %v1762
      %v1771 = vadd.f32 %v1723, %v1763
      %v1772 = vld [vmem:[%s2] sm:$0xff]
      %v1773 = vld [vmem:[%s2 + $0x8] sm:$0xff]
      %v1774 = vld [vmem:[%s2 + $0x10] sm:$0xff]
      %v1775 = vld [vmem:[%s2 + $0x18] sm:$0xff]
      %1777 = vset.pattern.permute.xlu0 0
      %1778 = vperm.xlu0 %1777, %v1772
      %v1779 = vpop.permute.xlu0 %1778
      %1782 = vset.pattern.permute.xlu0 0
      %1783 = vperm.xlu0 %1782, %v1773
      %v1784 = vpop.permute.xlu0 %1783
      %1787 = vset.pattern.permute.xlu0 0
      %1788 = vperm.xlu0 %1787, %v1774
      %v1789 = vpop.permute.xlu0 %1788
      %1792 = vset.pattern.permute.xlu0 0
      %1793 = vperm.xlu0 %1792, %v1775
      %v1794 = vpop.permute.xlu0 %1793
      %v1796 = vadd.f32 %v1764, %v1779
      %v1797 = vadd.f32 %v1765, %v1779
      %v1798 = vadd.f32 %v1766, %v1784
      %v1799 = vadd.f32 %v1767, %v1784
      %v1800 = vadd.f32 %v1768, %v1789
      %v1801 = vadd.f32 %v1769, %v1789
      %v1802 = vadd.f32 %v1770, %v1794
      %v1803 = vadd.f32 %v1771, %v1794
      %v1804 = vmax.f32 %v1796, 0.0
      %v1805 = vmax.f32 %v1797, 0.0
      %v1806 = vmax.f32 %v1798, 0.0
      %v1807 = vmax.f32 %v1799, 0.0
      %v1808 = vmax.f32 %v1800, 0.0
      %v1809 = vmax.f32 %v1801, 0.0
      %v1810 = vmax.f32 %v1802, 0.0
      %v1811 = vmax.f32 %v1803, 0.0
      %v1812 = vmin.f32 %v1804, 6.0
      %v1813 = vmin.f32 %v1805, 6.0
      %v1814 = vmin.f32 %v1806, 6.0
      %v1815 = vmin.f32 %v1807, 6.0
      %v1816 = vmin.f32 %v1808, 6.0
      %v1817 = vmin.f32 %v1809, 6.0
      %v1818 = vmin.f32 %v1810, 6.0
      %v1819 = vmin.f32 %v1811, 6.0
      %v1820 = vld [vmem:[%s3] sm:$0xff]
      %v1821 = vld [vmem:[%s3 + $0x8] sm:$0xff]
      %v1822 = vld [vmem:[%s3 + $0x10] sm:$0xff]
      %v1823 = vld [vmem:[%s3 + $0x18] sm:$0xff]
      %v1824 = vld [vmem:[%s4] sm:$0xff]
      %v1825 = vld [vmem:[%s4 + $0x8] sm:$0xff]
      %v1826 = vld [vmem:[%s4 + $0x10] sm:$0xff]
      %v1827 = vld [vmem:[%s4 + $0x18] sm:$0xff]
      %1829 = vset.pattern.permute.xlu0 0
      %1830 = vperm.xlu0 %1829, %v1824
      %v1831 = vpop.permute.xlu0 %1830
      %1834 = vset.pattern.permute.xlu0 0
      %1835 = vperm.xlu0 %1834, %v1825
      %v1836 = vpop.permute.xlu0 %1835
      %1839 = vset.pattern.permute.xlu0 0
      %1840 = vperm.xlu0 %1839, %v1826
      %v1841 = vpop.permute.xlu0 %1840
      %1844 = vset.pattern.permute.xlu0 0
      %1845 = vperm.xlu0 %1844, %v1827
      %v1846 = vpop.permute.xlu0 %1845
      %v1849 = vsel %vm789, %v1820, 0
      %v1852 = vsel %vm789, %v1821, 0
      %v1855 = vsel %vm789, %v1822, 0
      %v1858 = vsel %vm789, %v1823, 0
      %1860 = vmatprep.subr.mxu0 %v1813
      %1861 = vmatpush1.msra.mxu0 %v1812
      %1862 = vmatprep.subr.mxu0 %v1815
      %1863 = vmatpush1.msra.mxu0 %v1814
      %1864 = vmatprep.subr.mxu0 %v1817
      %1865 = vmatpush1.msra.mxu0 %v1816
      %1866 = vmatprep.subr.mxu0 %v1819
      %1867 = vmatpush1.msra.mxu0 %v1818
      %1868 = vmatprep.subr.mxu0 0.0
      %1869 = vmatpush1.msra.mxu0 0.0
      %1870 = vmatprep.subr.mxu0 0.0
      %1871 = vmatpush1.msra.mxu0 0.0
      %1872 = vmatprep.subr.mxu0 0.0
      %1873 = vmatpush1.msra.mxu0 0.0
      %1874 = vmatprep.subr.mxu0 0.0
      %1875 = vmatpush1.msra.mxu0 0.0
      %1876 = vmatprep.subr.mxu0 0.0
      %1877 = vmatpush1.msra.mxu0 0.0
      %1878 = vmatprep.subr.mxu0 0.0
      %1879 = vmatpush1.msra.mxu0 0.0
      %1880 = vmatprep.subr.mxu0 0.0
      %1881 = vmatpush1.msra.mxu0 0.0
      %1882 = vmatprep.subr.mxu0 0.0
      %1883 = vmatpush1.msra.mxu0 0.0
      %1884 = vmatprep.subr.mxu0 0.0
      %1885 = vmatpush1.msra.mxu0 0.0
      %1886 = vmatprep.subr.mxu0 0.0
      %1887 = vmatpush1.msra.mxu0 0.0
      %1888 = vmatprep.subr.mxu0 0.0
      %1889 = vmatpush1.msra.mxu0 0.0
      %1890 = vmatprep.subr.mxu0 0.0
      %1891 = vmatpush1.msra.mxu0 0.0
      %1892 = vmatprep.subr.mxu0 0.0
      %1893 = vmatpush1.msra.mxu0 0.0
      %1894 = vmatprep.subr.mxu0 0.0
      %1895 = vmatpush1.msra.mxu0 0.0
      %1896 = vmatprep.subr.mxu0 0.0
      %1897 = vmatpush1.msra.mxu0 0.0
      %1898 = vmatprep.subr.mxu0 0.0
      %1899 = vmatpush1.msra.mxu0 0.0
      %1900 = vmatprep.subr.mxu0 0.0
      %1901 = vmatpush1.msra.mxu0 0.0
      %1902 = vmatprep.subr.mxu0 0.0
      %1903 = vmatpush1.msra.mxu0 0.0
      %1904 = vmatprep.subr.mxu0 0.0
      %1905 = vmatpush1.msra.mxu0 0.0
      %1906 = vmatprep.subr.mxu0 0.0
      %1907 = vmatpush1.msra.mxu0 0.0
      %1908 = vmatprep.subr.mxu0 0.0
      %1909 = vmatpush1.msra.mxu0 0.0
      %1910 = vmatprep.subr.mxu0 0.0
      %1911 = vmatpush1.msra.mxu0 0.0
      %1912 = vmatprep.subr.mxu0 0.0
      %1913 = vmatpush1.msra.mxu0 0.0
      %1914 = vmatprep.subr.mxu0 0.0
      %1915 = vmatpush1.msra.mxu0 0.0
      %1916 = vmatprep.subr.mxu0 0.0
      %1917 = vmatpush1.msra.mxu0 0.0
      %1918 = vmatprep.subr.mxu0 0.0
      %1919 = vmatpush1.msra.mxu0 0.0
      %1920 = vmatprep.subr.mxu0 0.0
      %1921 = vmatpush1.msra.mxu0 0.0
      %1922 = vmatprep.subr.mxu0 0.0
      %1923 = vmatpush1.msra.mxu0 0.0
      %1924 = vmatprep.mubr.f32.mxu0 0.0
      %1925 = vmatmul.mubr.f32.gmra.mrb[0].mxu0 %v1849
      %v1926 = vpop.f32.mrb[0].mxu0
      %v1927 = vadd.f32 %v1831, %v1926
      %v1928 = vpop.f32.mrb[0].mxu0
      %v1929 = vadd.f32 %v1831, %v1928
      %1930 = vmatprep.mubr.f32.mxu0 0.0
      %1931 = vmatmul.mubr.f32.gmra.mrb[0].mxu0 %v1852
      %v1932 = vpop.f32.mrb[0].mxu0
      %v1933 = vadd.f32 %v1836, %v1932
      %v1934 = vpop.f32.mrb[0].mxu0
      %v1935 = vadd.f32 %v1836, %v1934
      %1936 = vmatprep.mubr.f32.mxu0 0.0
      %1937 = vmatmul.mubr.f32.gmra.mrb[0].mxu0 %v1855
      %v1938 = vpop.f32.mrb[0].mxu0
      %v1939 = vadd.f32 %v1841, %v1938
      %v1940 = vpop.f32.mrb[0].mxu0
      %v1941 = vadd.f32 %v1841, %v1940
      %1942 = vmatprep.mubr.f32.mxu0 0.0
      %1943 = vmatmul.mubr.f32.gmra.mrb[0].mxu0 %v1858
      %v1944 = vpop.f32.mrb[0].mxu0
      %v1945 = vadd.f32 %v1846, %v1944
      %v1946 = vpop.f32.mrb[0].mxu0
      %v1947 = vadd.f32 %v1846, %v1946
      %1948 = vdwg.mxu0
      %v1949 = vmax.f32 %v1927, 0.0
      %v1950 = vmax.f32 %v1929, 0.0
      %v1951 = vmax.f32 %v1933, 0.0
      %v1952 = vmax.f32 %v1935, 0.0
      %v1953 = vmax.f32 %v1939, 0.0
      %v1954 = vmax.f32 %v1941, 0.0
      %v1955 = vmax.f32 %v1945, 0.0
      %v1956 = vmax.f32 %v1947, 0.0
      %v1957 = vmin.f32 %v1949, 6.0
      %v1958 = vmin.f32 %v1950, 6.0
      %v1959 = vmin.f32 %v1951, 6.0
      %v1960 = vmin.f32 %v1952, 6.0
      %v1961 = vmin.f32 %v1953, 6.0
      %v1962 = vmin.f32 %v1954, 6.0
      %v1963 = vmin.f32 %v1955, 6.0
      %v1964 = vmin.f32 %v1956, 6.0
      %v1965 = vld [vmem:[%s907] sm:$0xff]
      %v1966 = vld [vmem:[%s907 + $0x8] sm:$0xff]
      %v1967 = vld [vmem:[%s907 + $0x10] sm:$0xff]
      %v1968 = vld [vmem:[%s907 + $0x18] sm:$0xff]
      %v1969 = vld [vmem:[%s907 + $0x20] sm:$0xff]
      %v1970 = vld [vmem:[%s907 + $0x28] sm:$0xff]
      %v1971 = vld [vmem:[%s907 + $0x30] sm:$0xff]
      %v1972 = vld [vmem:[%s907 + $0x38] sm:$0xff]
      %v1973 = vmul.f32 %v1957, %v1965
      %v1974 = vmul.f32 %v1958, %v1966
      %v1975 = vmul.f32 %v1959, %v1967
      %v1976 = vmul.f32 %v1960, %v1968
      %v1977 = vmul.f32 %v1961, %v1969
      %v1978 = vmul.f32 %v1962, %v1970
      %v1979 = vmul.f32 %v1963, %v1971
      %v1980 = vmul.f32 %v1964, %v1972
      %1981 = vrot.lane.b32.xlu0 %v1957, 17
      %v1982 = vpop.permute.xlu0 %1981
      %1983 = vrot.lane.b32.xlu0 %v1959, 17
      %v1984 = vpop.permute.xlu0 %1983
      %1985 = vrot.lane.b32.xlu0 %v1961, 17
      %v1986 = vpop.permute.xlu0 %1985
      %1987 = vrot.lane.b32.xlu0 %v1963, 17
      %v1988 = vpop.permute.xlu0 %1987
      %1989 = vrot.lane.b32.xlu0 %v1958, 17
      %v1990 = vpop.permute.xlu0 %1989
      %1991 = vrot.lane.b32.xlu0 %v1960, 17
      %v1992 = vpop.permute.xlu0 %1991
      %1993 = vrot.lane.b32.xlu0 %v1962, 17
      %v1994 = vpop.permute.xlu0 %1993
      %1995 = vrot.lane.b32.xlu0 %v1964, 17
      %v1996 = vpop.permute.xlu0 %1995
      %v1997 = vsel %vm330, %v1982, %v1990
      %v1998 = vsel %vm330, %v1984, %v1992
      %v1999 = vsel %vm330, %v1986, %v1994
      %v2000 = vsel %vm330, %v1988, %v1996
      %v2001 = vsel %vm330, %v1990, %v1982
      %v2002 = vsel %vm330, %v1992, %v1984
      %v2003 = vsel %vm330, %v1994, %v1986
      %v2004 = vsel %vm330, %v1996, %v1988
      %v2005 = vld [vmem:[%s5] sm:$0xff]
      %v2006 = vld [vmem:[%s5 + $0x8] sm:$0xff]
      %v2007 = vld [vmem:[%s5 + $0x10] sm:$0xff]
      %v2008 = vld [vmem:[%s5 + $0x18] sm:$0xff]
      %v2009 = vld [vmem:[%s5 + $0x20] sm:$0xff]
      %v2010 = vld [vmem:[%s5 + $0x28] sm:$0xff]
      %v2011 = vld [vmem:[%s5 + $0x30] sm:$0xff]
      %v2012 = vld [vmem:[%s5 + $0x38] sm:$0xff]
      %v2013 = vmul.f32 %v2001, %v2005
      %v2014 = vmul.f32 %v1997, %v2006
      %v2015 = vmul.f32 %v2002, %v2007
      %v2016 = vmul.f32 %v1998, %v2008
      %v2017 = vmul.f32 %v2003, %v2009
      %v2018 = vmul.f32 %v1999, %v2010
      %v2019 = vmul.f32 %v2004, %v2011
      %v2020 = vmul.f32 %v2000, %v2012
      %v2021 = vadd.f32 %v1973, %v2013
      %v2022 = vadd.f32 %v1974, %v2014
      %v2023 = vadd.f32 %v1975, %v2015
      %v2024 = vadd.f32 %v1976, %v2016
      %v2025 = vadd.f32 %v1977, %v2017
      %v2026 = vadd.f32 %v1978, %v2018
      %v2027 = vadd.f32 %v1979, %v2019
      %v2028 = vadd.f32 %v1980, %v2020
      %2029 = vrot.lane.b32.xlu0 %v1957, 16
      %v2030 = vpop.permute.xlu0 %2029
      %2031 = vrot.lane.b32.xlu0 %v1959, 16
      %v2032 = vpop.permute.xlu0 %2031
      %2033 = vrot.lane.b32.xlu0 %v1961, 16
      %v2034 = vpop.permute.xlu0 %2033
      %2035 = vrot.lane.b32.xlu0 %v1963, 16
      %v2036 = vpop.permute.xlu0 %2035
      %2037 = vrot.lane.b32.xlu0 %v1958, 16
      %v2038 = vpop.permute.xlu0 %2037
      %2039 = vrot.lane.b32.xlu0 %v1960, 16
      %v2040 = vpop.permute.xlu0 %2039
      %2041 = vrot.lane.b32.xlu0 %v1962, 16
      %v2042 = vpop.permute.xlu0 %2041
      %2043 = vrot.lane.b32.xlu0 %v1964, 16
      %v2044 = vpop.permute.xlu0 %2043
      %v2045 = vsel %vm379, %v2030, %v2038
      %v2046 = vsel %vm379, %v2032, %v2040
      %v2047 = vsel %vm379, %v2034, %v2042
      %v2048 = vsel %vm379, %v2036, %v2044
      %v2049 = vsel %vm379, %v2038, %v2030
      %v2050 = vsel %vm379, %v2040, %v2032
      %v2051 = vsel %vm379, %v2042, %v2034
      %v2052 = vsel %vm379, %v2044, %v2036
      %v2053 = vld [vmem:[%s996] sm:$0xff]
      %v2054 = vld [vmem:[%s996 + $0x8] sm:$0xff]
      %v2055 = vld [vmem:[%s996 + $0x10] sm:$0xff]
      %v2056 = vld [vmem:[%s996 + $0x18] sm:$0xff]
      %v2057 = vld [vmem:[%s996 + $0x20] sm:$0xff]
      %v2058 = vld [vmem:[%s996 + $0x28] sm:$0xff]
      %v2059 = vld [vmem:[%s996 + $0x30] sm:$0xff]
      %v2060 = vld [vmem:[%s996 + $0x38] sm:$0xff]
      %v2061 = vmul.f32 %v2049, %v2053
      %v2062 = vmul.f32 %v2045, %v2054
      %v2063 = vmul.f32 %v2050, %v2055
      %v2064 = vmul.f32 %v2046, %v2056
      %v2065 = vmul.f32 %v2051, %v2057
      %v2066 = vmul.f32 %v2047, %v2058
      %v2067 = vmul.f32 %v2052, %v2059
      %v2068 = vmul.f32 %v2048, %v2060
      %v2069 = vadd.f32 %v2021, %v2061
      %v2070 = vadd.f32 %v2022, %v2062
      %v2071 = vadd.f32 %v2023, %v2063
      %v2072 = vadd.f32 %v2024, %v2064
      %v2073 = vadd.f32 %v2025, %v2065
      %v2074 = vadd.f32 %v2026, %v2066
      %v2075 = vadd.f32 %v2027, %v2067
      %v2076 = vadd.f32 %v2028, %v2068
      %2077 = vrot.lane.b32.xlu0 %v1957, 15
      %v2078 = vpop.permute.xlu0 %2077
      %2079 = vrot.lane.b32.xlu0 %v1959, 15
      %v2080 = vpop.permute.xlu0 %2079
      %2081 = vrot.lane.b32.xlu0 %v1961, 15
      %v2082 = vpop.permute.xlu0 %2081
      %2083 = vrot.lane.b32.xlu0 %v1963, 15
      %v2084 = vpop.permute.xlu0 %2083
      %2085 = vrot.lane.b32.xlu0 %v1958, 15
      %v2086 = vpop.permute.xlu0 %2085
      %2087 = vrot.lane.b32.xlu0 %v1960, 15
      %v2088 = vpop.permute.xlu0 %2087
      %2089 = vrot.lane.b32.xlu0 %v1962, 15
      %v2090 = vpop.permute.xlu0 %2089
      %2091 = vrot.lane.b32.xlu0 %v1964, 15
      %v2092 = vpop.permute.xlu0 %2091
      %v2093 = vsel %vm429, %v2078, %v2086
      %v2094 = vsel %vm429, %v2080, %v2088
      %v2095 = vsel %vm429, %v2082, %v2090
      %v2096 = vsel %vm429, %v2084, %v2092
      %v2097 = vsel %vm429, %v2086, %v2078
      %v2098 = vsel %vm429, %v2088, %v2080
      %v2099 = vsel %vm429, %v2090, %v2082
      %v2100 = vsel %vm429, %v2092, %v2084
      %v2101 = vld [vmem:[%s1045] sm:$0xff]
      %v2102 = vld [vmem:[%s1045 + $0x8] sm:$0xff]
      %v2103 = vld [vmem:[%s1045 + $0x10] sm:$0xff]
      %v2104 = vld [vmem:[%s1045 + $0x18] sm:$0xff]
      %v2105 = vld [vmem:[%s1045 + $0x20] sm:$0xff]
      %v2106 = vld [vmem:[%s1045 + $0x28] sm:$0xff]
      %v2107 = vld [vmem:[%s1045 + $0x30] sm:$0xff]
      %v2108 = vld [vmem:[%s1045 + $0x38] sm:$0xff]
      %v2109 = vmul.f32 %v2097, %v2101
      %v2110 = vmul.f32 %v2093, %v2102
      %v2111 = vmul.f32 %v2098, %v2103
      %v2112 = vmul.f32 %v2094, %v2104
      %v2113 = vmul.f32 %v2099, %v2105
      %v2114 = vmul.f32 %v2095, %v2106
      %v2115 = vmul.f32 %v2100, %v2107
      %v2116 = vmul.f32 %v2096, %v2108
      %v2117 = vadd.f32 %v2069, %v2109
      %v2118 = vadd.f32 %v2070, %v2110
      %v2119 = vadd.f32 %v2071, %v2111
      %v2120 = vadd.f32 %v2072, %v2112
      %v2121 = vadd.f32 %v2073, %v2113
      %v2122 = vadd.f32 %v2074, %v2114
      %v2123 = vadd.f32 %v2075, %v2115
      %v2124 = vadd.f32 %v2076, %v2116
      %2125 = vrot.lane.b32.xlu0 %v1957, 1
      %v2126 = vpop.permute.xlu0 %2125
      %2127 = vrot.lane.b32.xlu0 %v1959, 1
      %v2128 = vpop.permute.xlu0 %2127
      %2129 = vrot.lane.b32.xlu0 %v1961, 1
      %v2130 = vpop.permute.xlu0 %2129
      %2131 = vrot.lane.b32.xlu0 %v1963, 1
      %v2132 = vpop.permute.xlu0 %2131
      %2133 = vrot.lane.b32.xlu0 %v1958, 1
      %v2134 = vpop.permute.xlu0 %2133
      %2135 = vrot.lane.b32.xlu0 %v1960, 1
      %v2136 = vpop.permute.xlu0 %2135
      %2137 = vrot.lane.b32.xlu0 %v1962, 1
      %v2138 = vpop.permute.xlu0 %2137
      %2139 = vrot.lane.b32.xlu0 %v1964, 1
      %v2140 = vpop.permute.xlu0 %2139
      %v2141 = vsel %vm479, %v2126, %v2134
      %v2142 = vsel %vm479, %v2128, %v2136
      %v2143 = vsel %vm479, %v2130, %v2138
      %v2144 = vsel %vm479, %v2132, %v2140
      %v2145 = vsel %vm479, %v2134, %v2126
      %v2146 = vsel %vm479, %v2136, %v2128
      %v2147 = vsel %vm479, %v2138, %v2130
      %v2148 = vsel %vm479, %v2140, %v2132
      %v2149 = vld [vmem:[%s1094] sm:$0xff]
      %v2150 = vld [vmem:[%s1094 + $0x8] sm:$0xff]
      %v2151 = vld [vmem:[%s1094 + $0x10] sm:$0xff]
      %v2152 = vld [vmem:[%s1094 + $0x18] sm:$0xff]
      %v2153 = vld [vmem:[%s1094 + $0x20] sm:$0xff]
      %v2154 = vld [vmem:[%s1094 + $0x28] sm:$0xff]
      %v2155 = vld [vmem:[%s1094 + $0x30] sm:$0xff]
      %v2156 = vld [vmem:[%s1094 + $0x38] sm:$0xff]
      %v2157 = vmul.f32 %v2145, %v2149
      %v2158 = vmul.f32 %v2141, %v2150
      %v2159 = vmul.f32 %v2146, %v2151
      %v2160 = vmul.f32 %v2142, %v2152
      %v2161 = vmul.f32 %v2147, %v2153
      %v2162 = vmul.f32 %v2143, %v2154
      %v2163 = vmul.f32 %v2148, %v2155
      %v2164 = vmul.f32 %v2144, %v2156
      %v2165 = vadd.f32 %v2117, %v2157
      %v2166 = vadd.f32 %v2118, %v2158
      %v2167 = vadd.f32 %v2119, %v2159
      %v2168 = vadd.f32 %v2120, %v2160
      %v2169 = vadd.f32 %v2121, %v2161
      %v2170 = vadd.f32 %v2122, %v2162
      %v2171 = vadd.f32 %v2123, %v2163
      %v2172 = vadd.f32 %v2124, %v2164
      %2173 = vrot.lane.b32.xlu0 %v1957, 127
      %v2174 = vpop.permute.xlu0 %2173
      %2175 = vrot.lane.b32.xlu0 %v1959, 127
      %v2176 = vpop.permute.xlu0 %2175
      %2177 = vrot.lane.b32.xlu0 %v1961, 127
      %v2178 = vpop.permute.xlu0 %2177
      %2179 = vrot.lane.b32.xlu0 %v1963, 127
      %v2180 = vpop.permute.xlu0 %2179
      %2181 = vrot.lane.b32.xlu0 %v1958, 127
      %v2182 = vpop.permute.xlu0 %2181
      %2183 = vrot.lane.b32.xlu0 %v1960, 127
      %v2184 = vpop.permute.xlu0 %2183
      %2185 = vrot.lane.b32.xlu0 %v1962, 127
      %v2186 = vpop.permute.xlu0 %2185
      %2187 = vrot.lane.b32.xlu0 %v1964, 127
      %v2188 = vpop.permute.xlu0 %2187
      %v2189 = vsel %vm529, %v2174, %v2182
      %v2190 = vsel %vm529, %v2176, %v2184
      %v2191 = vsel %vm529, %v2178, %v2186
      %v2192 = vsel %vm529, %v2180, %v2188
      %v2193 = vsel %vm529, %v2182, %v2174
      %v2194 = vsel %vm529, %v2184, %v2176
      %v2195 = vsel %vm529, %v2186, %v2178
      %v2196 = vsel %vm529, %v2188, %v2180
      %v2197 = vld [vmem:[%s1143] sm:$0xff]
      %v2198 = vld [vmem:[%s1143 + $0x8] sm:$0xff]
      %v2199 = vld [vmem:[%s1143 + $0x10] sm:$0xff]
      %v2200 = vld [vmem:[%s1143 + $0x18] sm:$0xff]
      %v2201 = vld [vmem:[%s1143 + $0x20] sm:$0xff]
      %v2202 = vld [vmem:[%s1143 + $0x28] sm:$0xff]
      %v2203 = vld [vmem:[%s1143 + $0x30] sm:$0xff]
      %v2204 = vld [vmem:[%s1143 + $0x38] sm:$0xff]
      %v2205 = vmul.f32 %v2189, %v2197
      %v2206 = vmul.f32 %v2193, %v2198
      %v2207 = vmul.f32 %v2190, %v2199
      %v2208 = vmul.f32 %v2194, %v2200
      %v2209 = vmul.f32 %v2191, %v2201
      %v2210 = vmul.f32 %v2195, %v2202
      %v2211 = vmul.f32 %v2192, %v2203
      %v2212 = vmul.f32 %v2196, %v2204
      %v2213 = vadd.f32 %v2165, %v2205
      %v2214 = vadd.f32 %v2166, %v2206
      %v2215 = vadd.f32 %v2167, %v2207
      %v2216 = vadd.f32 %v2168, %v2208
      %v2217 = vadd.f32 %v2169, %v2209
      %v2218 = vadd.f32 %v2170, %v2210
      %v2219 = vadd.f32 %v2171, %v2211
      %v2220 = vadd.f32 %v2172, %v2212
      %2221 = vrot.lane.b32.xlu0 %v1957, 113
      %v2222 = vpop.permute.xlu0 %2221
      %2223 = vrot.lane.b32.xlu0 %v1959, 113
      %v2224 = vpop.permute.xlu0 %2223
      %2225 = vrot.lane.b32.xlu0 %v1961, 113
      %v2226 = vpop.permute.xlu0 %2225
      %2227 = vrot.lane.b32.xlu0 %v1963, 113
      %v2228 = vpop.permute.xlu0 %2227
      %2229 = vrot.lane.b32.xlu0 %v1958, 113
      %v2230 = vpop.permute.xlu0 %2229
      %2231 = vrot.lane.b32.xlu0 %v1960, 113
      %v2232 = vpop.permute.xlu0 %2231
      %2233 = vrot.lane.b32.xlu0 %v1962, 113
      %v2234 = vpop.permute.xlu0 %2233
      %2235 = vrot.lane.b32.xlu0 %v1964, 113
      %v2236 = vpop.permute.xlu0 %2235
      %v2237 = vsel %vm579, %v2222, %v2230
      %v2238 = vsel %vm579, %v2224, %v2232
      %v2239 = vsel %vm579, %v2226, %v2234
      %v2240 = vsel %vm579, %v2228, %v2236
      %v2241 = vsel %vm579, %v2230, %v2222
      %v2242 = vsel %vm579, %v2232, %v2224
      %v2243 = vsel %vm579, %v2234, %v2226
      %v2244 = vsel %vm579, %v2236, %v2228
      %v2245 = vld [vmem:[%s1192] sm:$0xff]
      %v2246 = vld [vmem:[%s1192 + $0x8] sm:$0xff]
      %v2247 = vld [vmem:[%s1192 + $0x10] sm:$0xff]
      %v2248 = vld [vmem:[%s1192 + $0x18] sm:$0xff]
      %v2249 = vld [vmem:[%s1192 + $0x20] sm:$0xff]
      %v2250 = vld [vmem:[%s1192 + $0x28] sm:$0xff]
      %v2251 = vld [vmem:[%s1192 + $0x30] sm:$0xff]
      %v2252 = vld [vmem:[%s1192 + $0x38] sm:$0xff]
      %v2253 = vmul.f32 %v2237, %v2245
      %v2254 = vmul.f32 %v2241, %v2246
      %v2255 = vmul.f32 %v2238, %v2247
      %v2256 = vmul.f32 %v2242, %v2248
      %v2257 = vmul.f32 %v2239, %v2249
      %v2258 = vmul.f32 %v2243, %v2250
      %v2259 = vmul.f32 %v2240, %v2251
      %v2260 = vmul.f32 %v2244, %v2252
      %v2261 = vadd.f32 %v2213, %v2253
      %v2262 = vadd.f32 %v2214, %v2254
      %v2263 = vadd.f32 %v2215, %v2255
      %v2264 = vadd.f32 %v2216, %v2256
      %v2265 = vadd.f32 %v2217, %v2257
      %v2266 = vadd.f32 %v2218, %v2258
      %v2267 = vadd.f32 %v2219, %v2259
      %v2268 = vadd.f32 %v2220, %v2260
      %2269 = vrot.lane.b32.xlu0 %v1957, 112
      %v2270 = vpop.permute.xlu0 %2269
      %2271 = vrot.lane.b32.xlu0 %v1959, 112
      %v2272 = vpop.permute.xlu0 %2271
      %2273 = vrot.lane.b32.xlu0 %v1961, 112
      %v2274 = vpop.permute.xlu0 %2273
      %2275 = vrot.lane.b32.xlu0 %v1963, 112
      %v2276 = vpop.permute.xlu0 %2275
      %2277 = vrot.lane.b32.xlu0 %v1958, 112
      %v2278 = vpop.permute.xlu0 %2277
      %2279 = vrot.lane.b32.xlu0 %v1960, 112
      %v2280 = vpop.permute.xlu0 %2279
      %2281 = vrot.lane.b32.xlu0 %v1962, 112
      %v2282 = vpop.permute.xlu0 %2281
      %2283 = vrot.lane.b32.xlu0 %v1964, 112
      %v2284 = vpop.permute.xlu0 %2283
      %v2285 = vsel %vm629, %v2270, %v2278
      %v2286 = vsel %vm629, %v2272, %v2280
      %v2287 = vsel %vm629, %v2274, %v2282
      %v2288 = vsel %vm629, %v2276, %v2284
      %v2289 = vsel %vm629, %v2278, %v2270
      %v2290 = vsel %vm629, %v2280, %v2272
      %v2291 = vsel %vm629, %v2282, %v2274
      %v2292 = vsel %vm629, %v2284, %v2276
      %v2293 = vld [vmem:[%s1241] sm:$0xff]
      %v2294 = vld [vmem:[%s1241 + $0x8] sm:$0xff]
      %v2295 = vld [vmem:[%s1241 + $0x10] sm:$0xff]
      %v2296 = vld [vmem:[%s1241 + $0x18] sm:$0xff]
      %v2297 = vld [vmem:[%s1241 + $0x20] sm:$0xff]
      %v2298 = vld [vmem:[%s1241 + $0x28] sm:$0xff]
      %v2299 = vld [vmem:[%s1241 + $0x30] sm:$0xff]
      %v2300 = vld [vmem:[%s1241 + $0x38] sm:$0xff]
      %v2301 = vmul.f32 %v2285, %v2293
      %v2302 = vmul.f32 %v2289, %v2294
      %v2303 = vmul.f32 %v2286, %v2295
      %v2304 = vmul.f32 %v2290, %v2296
      %v2305 = vmul.f32 %v2287, %v2297
      %v2306 = vmul.f32 %v2291, %v2298
      %v2307 = vmul.f32 %v2288, %v2299
      %v2308 = vmul.f32 %v2292, %v2300
      %v2309 = vadd.f32 %v2261, %v2301
      %v2310 = vadd.f32 %v2262, %v2302
      %v2311 = vadd.f32 %v2263, %v2303
      %v2312 = vadd.f32 %v2264, %v2304
      %v2313 = vadd.f32 %v2265, %v2305
      %v2314 = vadd.f32 %v2266, %v2306
      %v2315 = vadd.f32 %v2267, %v2307
      %v2316 = vadd.f32 %v2268, %v2308
      %2317 = vrot.lane.b32.xlu0 %v1957, 111
      %v2318 = vpop.permute.xlu0 %2317
      %2319 = vrot.lane.b32.xlu0 %v1959, 111
      %v2320 = vpop.permute.xlu0 %2319
      %2321 = vrot.lane.b32.xlu0 %v1961, 111
      %v2322 = vpop.permute.xlu0 %2321
      %2323 = vrot.lane.b32.xlu0 %v1963, 111
      %v2324 = vpop.permute.xlu0 %2323
      %2325 = vrot.lane.b32.xlu0 %v1958, 111
      %v2326 = vpop.permute.xlu0 %2325
      %2327 = vrot.lane.b32.xlu0 %v1960, 111
      %v2328 = vpop.permute.xlu0 %2327
      %2329 = vrot.lane.b32.xlu0 %v1962, 111
      %v2330 = vpop.permute.xlu0 %2329
      %2331 = vrot.lane.b32.xlu0 %v1964, 111
      %v2332 = vpop.permute.xlu0 %2331
      %v2333 = vsel %vm679, %v2318, %v2326
      %v2334 = vsel %vm679, %v2320, %v2328
      %v2335 = vsel %vm679, %v2322, %v2330
      %v2336 = vsel %vm679, %v2324, %v2332
      %v2337 = vsel %vm679, %v2326, %v2318
      %v2338 = vsel %vm679, %v2328, %v2320
      %v2339 = vsel %vm679, %v2330, %v2322
      %v2340 = vsel %vm679, %v2332, %v2324
      %v2341 = vld [vmem:[%s1290] sm:$0xff]
      %v2342 = vld [vmem:[%s1290 + $0x8] sm:$0xff]
      %v2343 = vld [vmem:[%s1290 + $0x10] sm:$0xff]
      %v2344 = vld [vmem:[%s1290 + $0x18] sm:$0xff]
      %v2345 = vld [vmem:[%s1290 + $0x20] sm:$0xff]
      %v2346 = vld [vmem:[%s1290 + $0x28] sm:$0xff]
      %v2347 = vld [vmem:[%s1290 + $0x30] sm:$0xff]
      %v2348 = vld [vmem:[%s1290 + $0x38] sm:$0xff]
      %v2349 = vmul.f32 %v2333, %v2341
      %v2350 = vmul.f32 %v2337, %v2342
      %v2351 = vmul.f32 %v2334, %v2343
      %v2352 = vmul.f32 %v2338, %v2344
      %v2353 = vmul.f32 %v2335, %v2345
      %v2354 = vmul.f32 %v2339, %v2346
      %v2355 = vmul.f32 %v2336, %v2347
      %v2356 = vmul.f32 %v2340, %v2348
      %v2357 = vadd.f32 %v2309, %v2349
      %v2358 = vadd.f32 %v2310, %v2350
      %v2359 = vadd.f32 %v2311, %v2351
      %v2360 = vadd.f32 %v2312, %v2352
      %v2361 = vadd.f32 %v2313, %v2353
      %v2362 = vadd.f32 %v2314, %v2354
      %v2363 = vadd.f32 %v2315, %v2355
      %v2364 = vadd.f32 %v2316, %v2356
      %v2365 = vld [vmem:[%s6] sm:$0xff]
      %v2366 = vld [vmem:[%s6 + $0x8] sm:$0xff]
      %v2367 = vld [vmem:[%s6 + $0x10] sm:$0xff]
      %v2368 = vld [vmem:[%s6 + $0x18] sm:$0xff]
      %2370 = vset.pattern.permute.xlu0 0
      %2371 = vperm.xlu0 %2370, %v2365
      %v2372 = vpop.permute.xlu0 %2371
      %2375 = vset.pattern.permute.xlu0 0
      %2376 = vperm.xlu0 %2375, %v2366
      %v2377 = vpop.permute.xlu0 %2376
      %2380 = vset.pattern.permute.xlu0 0
      %2381 = vperm.xlu0 %2380, %v2367
      %v2382 = vpop.permute.xlu0 %2381
      %2385 = vset.pattern.permute.xlu0 0
      %2386 = vperm.xlu0 %2385, %v2368
      %v2387 = vpop.permute.xlu0 %2386
      %v2389 = vadd.f32 %v2357, %v2372
      %v2390 = vadd.f32 %v2358, %v2372
      %v2391 = vadd.f32 %v2359, %v2377
      %v2392 = vadd.f32 %v2360, %v2377
      %v2393 = vadd.f32 %v2361, %v2382
      %v2394 = vadd.f32 %v2362, %v2382
      %v2395 = vadd.f32 %v2363, %v2387
      %v2396 = vadd.f32 %v2364, %v2387
      %v2397 = vadd.f32 %v2389, %v1364
      %v2398 = vadd.f32 %v2390, %v1365
      %v2399 = vadd.f32 %v2391, %v1366
      %v2400 = vadd.f32 %v2392, %v1367
      %v2401 = vadd.f32 %v2393, %v1368
      %v2402 = vadd.f32 %v2394, %v1369
      %v2403 = vadd.f32 %v2395, %v1370
      %v2404 = vadd.f32 %v2396, %v1371
      %s2405 = scalar_lea.vmem %s285, 64
      %2406 = vst [vmem:[%s2405] sm:$0xff] %v2397
      %2407 = vst [vmem:[%s2405 + $0x8] sm:$0xff] %v2398
      %2408 = vst [vmem:[%s2405 + $0x10] sm:$0xff] %v2399
      %2409 = vst [vmem:[%s2405 + $0x18] sm:$0xff] %v2400
      %2410 = vst [vmem:[%s2405 + $0x20] sm:$0xff] %v2401
      %2411 = vst [vmem:[%s2405 + $0x28] sm:$0xff] %v2402
      %2412 = vst [vmem:[%s2405 + $0x30] sm:$0xff] %v2403
      %2413 = vst [vmem:[%s2405 + $0x38] sm:$0xff] %v2404
      %s2414 = scalar_lea.vmem %s278, 128
      %v2415 = vld [vmem:[%s2414] sm:$0xff]
      %v2416 = vld [vmem:[%s2414 + $0x8] sm:$0xff]
      %v2417 = vld [vmem:[%s2414 + $0x10] sm:$0xff]
      %v2418 = vld [vmem:[%s2414 + $0x18] sm:$0xff]
      %v2419 = vld [vmem:[%s2414 + $0x20] sm:$0xff]
      %v2420 = vld [vmem:[%s2414 + $0x28] sm:$0xff]
      %v2421 = vld [vmem:[%s2414 + $0x30] sm:$0xff]
      %v2422 = vld [vmem:[%s2414 + $0x38] sm:$0xff]
      %v2423 = vld [vmem:[%s295] sm:$0xff]
      %v2424 = vld [vmem:[%s295 + $0x8] sm:$0xff]
      %v2425 = vld [vmem:[%s295 + $0x10] sm:$0xff]
      %v2426 = vld [vmem:[%s295 + $0x18] sm:$0xff]
      %v2427 = vld [vmem:[%s295 + $0x20] sm:$0xff]
      %v2428 = vld [vmem:[%s295 + $0x28] sm:$0xff]
      %v2429 = vld [vmem:[%s295 + $0x30] sm:$0xff]
      %v2430 = vld [vmem:[%s295 + $0x38] sm:$0xff]
      %v2431 = vmul.f32 %v2415, %v2423
      %v2432 = vmul.f32 %v2416, %v2424
      %v2433 = vmul.f32 %v2417, %v2425
      %v2434 = vmul.f32 %v2418, %v2426
      %v2435 = vmul.f32 %v2419, %v2427
      %v2436 = vmul.f32 %v2420, %v2428
      %v2437 = vmul.f32 %v2421, %v2429
      %v2438 = vmul.f32 %v2422, %v2430
      %2439 = vrot.lane.b32.xlu0 %v2415, 17
      %v2440 = vpop.permute.xlu0 %2439
      %2441 = vrot.lane.b32.xlu0 %v2417, 17
      %v2442 = vpop.permute.xlu0 %2441
      %2443 = vrot.lane.b32.xlu0 %v2419, 17
      %v2444 = vpop.permute.xlu0 %2443
      %2445 = vrot.lane.b32.xlu0 %v2421, 17
      %v2446 = vpop.permute.xlu0 %2445
      %2447 = vrot.lane.b32.xlu0 %v2416, 17
      %v2448 = vpop.permute.xlu0 %2447
      %2449 = vrot.lane.b32.xlu0 %v2418, 17
      %v2450 = vpop.permute.xlu0 %2449
      %2451 = vrot.lane.b32.xlu0 %v2420, 17
      %v2452 = vpop.permute.xlu0 %2451
      %2453 = vrot.lane.b32.xlu0 %v2422, 17
      %v2454 = vpop.permute.xlu0 %2453
      %v2455 = vsel %vm330, %v2440, %v2448
      %v2456 = vsel %vm330, %v2442, %v2450
      %v2457 = vsel %vm330, %v2444, %v2452
      %v2458 = vsel %vm330, %v2446, %v2454
      %v2459 = vsel %vm330, %v2448, %v2440
      %v2460 = vsel %vm330, %v2450, %v2442
      %v2461 = vsel %vm330, %v2452, %v2444
      %v2462 = vsel %vm330, %v2454, %v2446
      %v2463 = vld [vmem:[%s1] sm:$0xff]
      %v2464 = vld [vmem:[%s1 + $0x8] sm:$0xff]
      %v2465 = vld [vmem:[%s1 + $0x10] sm:$0xff]
      %v2466 = vld [vmem:[%s1 + $0x18] sm:$0xff]
      %v2467 = vld [vmem:[%s1 + $0x20] sm:$0xff]
      %v2468 = vld [vmem:[%s1 + $0x28] sm:$0xff]
      %v2469 = vld [vmem:[%s1 + $0x30] sm:$0xff]
      %v2470 = vld [vmem:[%s1 + $0x38] sm:$0xff]
      %v2471 = vmul.f32 %v2459, %v2463
      %v2472 = vmul.f32 %v2455, %v2464
      %v2473 = vmul.f32 %v2460, %v2465
      %v2474 = vmul.f32 %v2456, %v2466
      %v2475 = vmul.f32 %v2461, %v2467
      %v2476 = vmul.f32 %v2457, %v2468
      %v2477 = vmul.f32 %v2462, %v2469
      %v2478 = vmul.f32 %v2458, %v2470
      %v2479 = vadd.f32 %v2431, %v2471
      %v2480 = vadd.f32 %v2432, %v2472
      %v2481 = vadd.f32 %v2433, %v2473
      %v2482 = vadd.f32 %v2434, %v2474
      %v2483 = vadd.f32 %v2435, %v2475
      %v2484 = vadd.f32 %v2436, %v2476
      %v2485 = vadd.f32 %v2437, %v2477
      %v2486 = vadd.f32 %v2438, %v2478
      %2487 = vrot.lane.b32.xlu0 %v2415, 16
      %v2488 = vpop.permute.xlu0 %2487
      %2489 = vrot.lane.b32.xlu0 %v2417, 16
      %v2490 = vpop.permute.xlu0 %2489
      %2491 = vrot.lane.b32.xlu0 %v2419, 16
      %v2492 = vpop.permute.xlu0 %2491
      %2493 = vrot.lane.b32.xlu0 %v2421, 16
      %v2494 = vpop.permute.xlu0 %2493
      %2495 = vrot.lane.b32.xlu0 %v2416, 16
      %v2496 = vpop.permute.xlu0 %2495
      %2497 = vrot.lane.b32.xlu0 %v2418, 16
      %v2498 = vpop.permute.xlu0 %2497
      %2499 = vrot.lane.b32.xlu0 %v2420, 16
      %v2500 = vpop.permute.xlu0 %2499
      %2501 = vrot.lane.b32.xlu0 %v2422, 16
      %v2502 = vpop.permute.xlu0 %2501
      %v2503 = vsel %vm379, %v2488, %v2496
      %v2504 = vsel %vm379, %v2490, %v2498
      %v2505 = vsel %vm379, %v2492, %v2500
      %v2506 = vsel %vm379, %v2494, %v2502
      %v2507 = vsel %vm379, %v2496, %v2488
      %v2508 = vsel %vm379, %v2498, %v2490
      %v2509 = vsel %vm379, %v2500, %v2492
      %v2510 = vsel %vm379, %v2502, %v2494
      %v2511 = vld [vmem:[%s388] sm:$0xff]
      %v2512 = vld [vmem:[%s388 + $0x8] sm:$0xff]
      %v2513 = vld [vmem:[%s388 + $0x10] sm:$0xff]
      %v2514 = vld [vmem:[%s388 + $0x18] sm:$0xff]
      %v2515 = vld [vmem:[%s388 + $0x20] sm:$0xff]
      %v2516 = vld [vmem:[%s388 + $0x28] sm:$0xff]
      %v2517 = vld [vmem:[%s388 + $0x30] sm:$0xff]
      %v2518 = vld [vmem:[%s388 + $0x38] sm:$0xff]
      %v2519 = vmul.f32 %v2507, %v2511
      %v2520 = vmul.f32 %v2503, %v2512
      %v2521 = vmul.f32 %v2508, %v2513
      %v2522 = vmul.f32 %v2504, %v2514
      %v2523 = vmul.f32 %v2509, %v2515
      %v2524 = vmul.f32 %v2505, %v2516
      %v2525 = vmul.f32 %v2510, %v2517
      %v2526 = vmul.f32 %v2506, %v2518
      %v2527 = vadd.f32 %v2479, %v2519
      %v2528 = vadd.f32 %v2480, %v2520
      %v2529 = vadd.f32 %v2481, %v2521
      %v2530 = vadd.f32 %v2482, %v2522
      %v2531 = vadd.f32 %v2483, %v2523
      %v2532 = vadd.f32 %v2484, %v2524
      %v2533 = vadd.f32 %v2485, %v2525
      %v2534 = vadd.f32 %v2486, %v2526
      %2535 = vrot.lane.b32.xlu0 %v2415, 15
      %v2536 = vpop.permute.xlu0 %2535
      %2537 = vrot.lane.b32.xlu0 %v2417, 15
      %v2538 = vpop.permute.xlu0 %2537
      %2539 = vrot.lane.b32.xlu0 %v2419, 15
      %v2540 = vpop.permute.xlu0 %2539
      %2541 = vrot.lane.b32.xlu0 %v2421, 15
      %v2542 = vpop.permute.xlu0 %2541
      %2543 = vrot.lane.b32.xlu0 %v2416, 15
      %v2544 = vpop.permute.xlu0 %2543
      %2545 = vrot.lane.b32.xlu0 %v2418, 15
      %v2546 = vpop.permute.xlu0 %2545
      %2547 = vrot.lane.b32.xlu0 %v2420, 15
      %v2548 = vpop.permute.xlu0 %2547
      %2549 = vrot.lane.b32.xlu0 %v2422, 15
      %v2550 = vpop.permute.xlu0 %2549
      %v2551 = vsel %vm429, %v2536, %v2544
      %v2552 = vsel %vm429, %v2538, %v2546
      %v2553 = vsel %vm429, %v2540, %v2548
      %v2554 = vsel %vm429, %v2542, %v2550
      %v2555 = vsel %vm429, %v2544, %v2536
      %v2556 = vsel %vm429, %v2546, %v2538
      %v2557 = vsel %vm429, %v2548, %v2540
      %v2558 = vsel %vm429, %v2550, %v2542
      %v2559 = vld [vmem:[%s438] sm:$0xff]
      %v2560 = vld [vmem:[%s438 + $0x8] sm:$0xff]
      %v2561 = vld [vmem:[%s438 + $0x10] sm:$0xff]
      %v2562 = vld [vmem:[%s438 + $0x18] sm:$0xff]
      %v2563 = vld [vmem:[%s438 + $0x20] sm:$0xff]
      %v2564 = vld [vmem:[%s438 + $0x28] sm:$0xff]
      %v2565 = vld [vmem:[%s438 + $0x30] sm:$0xff]
      %v2566 = vld [vmem:[%s438 + $0x38] sm:$0xff]
      %v2567 = vmul.f32 %v2555, %v2559
      %v2568 = vmul.f32 %v2551, %v2560
      %v2569 = vmul.f32 %v2556, %v2561
      %v2570 = vmul.f32 %v2552, %v2562
      %v2571 = vmul.f32 %v2557, %v2563
      %v2572 = vmul.f32 %v2553, %v2564
      %v2573 = vmul.f32 %v2558, %v2565
      %v2574 = vmul.f32 %v2554, %v2566
      %v2575 = vadd.f32 %v2527, %v2567
      %v2576 = vadd.f32 %v2528, %v2568
      %v2577 = vadd.f32 %v2529, %v2569
      %v2578 = vadd.f32 %v2530, %v2570
      %v2579 = vadd.f32 %v2531, %v2571
      %v2580 = vadd.f32 %v2532, %v2572
      %v2581 = vadd.f32 %v2533, %v2573
      %v2582 = vadd.f32 %v2534, %v2574
      %2583 = vrot.lane.b32.xlu0 %v2415, 1
      %v2584 = vpop.permute.xlu0 %2583
      %2585 = vrot.lane.b32.xlu0 %v2417, 1
      %v2586 = vpop.permute.xlu0 %2585
      %2587 = vrot.lane.b32.xlu0 %v2419, 1
      %v2588 = vpop.permute.xlu0 %2587
      %2589 = vrot.lane.b32.xlu0 %v2421, 1
      %v2590 = vpop.permute.xlu0 %2589
      %2591 = vrot.lane.b32.xlu0 %v2416, 1
      %v2592 = vpop.permute.xlu0 %2591
      %2593 = vrot.lane.b32.xlu0 %v2418, 1
      %v2594 = vpop.permute.xlu0 %2593
      %2595 = vrot.lane.b32.xlu0 %v2420, 1
      %v2596 = vpop.permute.xlu0 %2595
      %2597 = vrot.lane.b32.xlu0 %v2422, 1
      %v2598 = vpop.permute.xlu0 %2597
      %v2599 = vsel %vm479, %v2584, %v2592
      %v2600 = vsel %vm479, %v2586, %v2594
      %v2601 = vsel %vm479, %v2588, %v2596
      %v2602 = vsel %vm479, %v2590, %v2598
      %v2603 = vsel %vm479, %v2592, %v2584
      %v2604 = vsel %vm479, %v2594, %v2586
      %v2605 = vsel %vm479, %v2596, %v2588
      %v2606 = vsel %vm479, %v2598, %v2590
      %v2607 = vld [vmem:[%s488] sm:$0xff]
      %v2608 = vld [vmem:[%s488 + $0x8] sm:$0xff]
      %v2609 = vld [vmem:[%s488 + $0x10] sm:$0xff]
      %v2610 = vld [vmem:[%s488 + $0x18] sm:$0xff]
      %v2611 = vld [vmem:[%s488 + $0x20] sm:$0xff]
      %v2612 = vld [vmem:[%s488 + $0x28] sm:$0xff]
      %v2613 = vld [vmem:[%s488 + $0x30] sm:$0xff]
      %v2614 = vld [vmem:[%s488 + $0x38] sm:$0xff]
      %v2615 = vmul.f32 %v2603, %v2607
      %v2616 = vmul.f32 %v2599, %v2608
      %v2617 = vmul.f32 %v2604, %v2609
      %v2618 = vmul.f32 %v2600, %v2610
      %v2619 = vmul.f32 %v2605, %v2611
      %v2620 = vmul.f32 %v2601, %v2612
      %v2621 = vmul.f32 %v2606, %v2613
      %v2622 = vmul.f32 %v2602, %v2614
      %v2623 = vadd.f32 %v2575, %v2615
      %v2624 = vadd.f32 %v2576, %v2616
      %v2625 = vadd.f32 %v2577, %v2617
      %v2626 = vadd.f32 %v2578, %v2618
      %v2627 = vadd.f32 %v2579, %v2619
      %v2628 = vadd.f32 %v2580, %v2620
      %v2629 = vadd.f32 %v2581, %v2621
      %v2630 = vadd.f32 %v2582, %v2622
      %2631 = vrot.lane.b32.xlu0 %v2415, 127
      %v2632 = vpop.permute.xlu0 %2631
      %2633 = vrot.lane.b32.xlu0 %v2417, 127
      %v2634 = vpop.permute.xlu0 %2633
      %2635 = vrot.lane.b32.xlu0 %v2419, 127
      %v2636 = vpop.permute.xlu0 %2635
      %2637 = vrot.lane.b32.xlu0 %v2421, 127
      %v2638 = vpop.permute.xlu0 %2637
      %2639 = vrot.lane.b32.xlu0 %v2416, 127
      %v2640 = vpop.permute.xlu0 %2639
      %2641 = vrot.lane.b32.xlu0 %v2418, 127
      %v2642 = vpop.permute.xlu0 %2641
      %2643 = vrot.lane.b32.xlu0 %v2420, 127
      %v2644 = vpop.permute.xlu0 %2643
      %2645 = vrot.lane.b32.xlu0 %v2422, 127
      %v2646 = vpop.permute.xlu0 %2645
      %v2647 = vsel %vm529, %v2632, %v2640
      %v2648 = vsel %vm529, %v2634, %v2642
      %v2649 = vsel %vm529, %v2636, %v2644
      %v2650 = vsel %vm529, %v2638, %v2646
      %v2651 = vsel %vm529, %v2640, %v2632
      %v2652 = vsel %vm529, %v2642, %v2634
      %v2653 = vsel %vm529, %v2644, %v2636
      %v2654 = vsel %vm529, %v2646, %v2638
      %v2655 = vld [vmem:[%s538] sm:$0xff]
      %v2656 = vld [vmem:[%s538 + $0x8] sm:$0xff]
      %v2657 = vld [vmem:[%s538 + $0x10] sm:$0xff]
      %v2658 = vld [vmem:[%s538 + $0x18] sm:$0xff]
      %v2659 = vld [vmem:[%s538 + $0x20] sm:$0xff]
      %v2660 = vld [vmem:[%s538 + $0x28] sm:$0xff]
      %v2661 = vld [vmem:[%s538 + $0x30] sm:$0xff]
      %v2662 = vld [vmem:[%s538 + $0x38] sm:$0xff]
      %v2663 = vmul.f32 %v2647, %v2655
      %v2664 = vmul.f32 %v2651, %v2656
      %v2665 = vmul.f32 %v2648, %v2657
      %v2666 = vmul.f32 %v2652, %v2658
      %v2667 = vmul.f32 %v2649, %v2659
      %v2668 = vmul.f32 %v2653, %v2660
      %v2669 = vmul.f32 %v2650, %v2661
      %v2670 = vmul.f32 %v2654, %v2662
      %v2671 = vadd.f32 %v2623, %v2663
      %v2672 = vadd.f32 %v2624, %v2664
      %v2673 = vadd.f32 %v2625, %v2665
      %v2674 = vadd.f32 %v2626, %v2666
      %v2675 = vadd.f32 %v2627, %v2667
      %v2676 = vadd.f32 %v2628, %v2668
      %v2677 = vadd.f32 %v2629, %v2669
      %v2678 = vadd.f32 %v2630, %v2670
      %2679 = vrot.lane.b32.xlu0 %v2415, 113
      %v2680 = vpop.permute.xlu0 %2679
      %2681 = vrot.lane.b32.xlu0 %v2417, 113
      %v2682 = vpop.permute.xlu0 %2681
      %2683 = vrot.lane.b32.xlu0 %v2419, 113
      %v2684 = vpop.permute.xlu0 %2683
      %2685 = vrot.lane.b32.xlu0 %v2421, 113
      %v2686 = vpop.permute.xlu0 %2685
      %2687 = vrot.lane.b32.xlu0 %v2416, 113
      %v2688 = vpop.permute.xlu0 %2687
      %2689 = vrot.lane.b32.xlu0 %v2418, 113
      %v2690 = vpop.permute.xlu0 %2689
      %2691 = vrot.lane.b32.xlu0 %v2420, 113
      %v2692 = vpop.permute.xlu0 %2691
      %2693 = vrot.lane.b32.xlu0 %v2422, 113
      %v2694 = vpop.permute.xlu0 %2693
      %v2695 = vsel %vm579, %v2680, %v2688
      %v2696 = vsel %vm579, %v2682, %v2690
      %v2697 = vsel %vm579, %v2684, %v2692
      %v2698 = vsel %vm579, %v2686, %v2694
      %v2699 = vsel %vm579, %v2688, %v2680
      %v2700 = vsel %vm579, %v2690, %v2682
      %v2701 = vsel %vm579, %v2692, %v2684
      %v2702 = vsel %vm579, %v2694, %v2686
      %v2703 = vld [vmem:[%s588] sm:$0xff]
      %v2704 = vld [vmem:[%s588 + $0x8] sm:$0xff]
      %v2705 = vld [vmem:[%s588 + $0x10] sm:$0xff]
      %v2706 = vld [vmem:[%s588 + $0x18] sm:$0xff]
      %v2707 = vld [vmem:[%s588 + $0x20] sm:$0xff]
      %v2708 = vld [vmem:[%s588 + $0x28] sm:$0xff]
      %v2709 = vld [vmem:[%s588 + $0x30] sm:$0xff]
      %v2710 = vld [vmem:[%s588 + $0x38] sm:$0xff]
      %v2711 = vmul.f32 %v2695, %v2703
      %v2712 = vmul.f32 %v2699, %v2704
      %v2713 = vmul.f32 %v2696, %v2705
      %v2714 = vmul.f32 %v2700, %v2706
      %v2715 = vmul.f32 %v2697, %v2707
      %v2716 = vmul.f32 %v2701, %v2708
      %v2717 = vmul.f32 %v2698, %v2709
      %v2718 = vmul.f32 %v2702, %v2710
      %v2719 = vadd.f32 %v2671, %v2711
      %v2720 = vadd.f32 %v2672, %v2712
      %v2721 = vadd.f32 %v2673, %v2713
      %v2722 = vadd.f32 %v2674, %v2714
      %v2723 = vadd.f32 %v2675, %v2715
      %v2724 = vadd.f32 %v2676, %v2716
      %v2725 = vadd.f32 %v2677, %v2717
      %v2726 = vadd.f32 %v2678, %v2718
      %2727 = vrot.lane.b32.xlu0 %v2415, 112
      %v2728 = vpop.permute.xlu0 %2727
      %2729 = vrot.lane.b32.xlu0 %v2417, 112
      %v2730 = vpop.permute.xlu0 %2729
      %2731 = vrot.lane.b32.xlu0 %v2419, 112
      %v2732 = vpop.permute.xlu0 %2731
      %2733 = vrot.lane.b32.xlu0 %v2421, 112
      %v2734 = vpop.permute.xlu0 %2733
      %2735 = vrot.lane.b32.xlu0 %v2416, 112
      %v2736 = vpop.permute.xlu0 %2735
      %2737 = vrot.lane.b32.xlu0 %v2418, 112
      %v2738 = vpop.permute.xlu0 %2737
      %2739 = vrot.lane.b32.xlu0 %v2420, 112
      %v2740 = vpop.permute.xlu0 %2739
      %2741 = vrot.lane.b32.xlu0 %v2422, 112
      %v2742 = vpop.permute.xlu0 %2741
      %v2743 = vsel %vm629, %v2728, %v2736
      %v2744 = vsel %vm629, %v2730, %v2738
      %v2745 = vsel %vm629, %v2732, %v2740
      %v2746 = vsel %vm629, %v2734, %v2742
      %v2747 = vsel %vm629, %v2736, %v2728
      %v2748 = vsel %vm629, %v2738, %v2730
      %v2749 = vsel %vm629, %v2740, %v2732
      %v2750 = vsel %vm629, %v2742, %v2734
      %v2751 = vld [vmem:[%s638] sm:$0xff]
      %v2752 = vld [vmem:[%s638 + $0x8] sm:$0xff]
      %v2753 = vld [vmem:[%s638 + $0x10] sm:$0xff]
      %v2754 = vld [vmem:[%s638 + $0x18] sm:$0xff]
      %v2755 = vld [vmem:[%s638 + $0x20] sm:$0xff]
      %v2756 = vld [vmem:[%s638 + $0x28] sm:$0xff]
      %v2757 = vld [vmem:[%s638 + $0x30] sm:$0xff]
      %v2758 = vld [vmem:[%s638 + $0x38] sm:$0xff]
      %v2759 = vmul.f32 %v2743, %v2751
      %v2760 = vmul.f32 %v2747, %v2752
      %v2761 = vmul.f32 %v2744, %v2753
      %v2762 = vmul.f32 %v2748, %v2754
      %v2763 = vmul.f32 %v2745, %v2755
      %v2764 = vmul.f32 %v2749, %v2756
      %v2765 = vmul.f32 %v2746, %v2757
      %v2766 = vmul.f32 %v2750, %v2758
      %v2767 = vadd.f32 %v2719, %v2759
      %v2768 = vadd.f32 %v2720, %v2760
      %v2769 = vadd.f32 %v2721, %v2761
      %v2770 = vadd.f32 %v2722, %v2762
      %v2771 = vadd.f32 %v2723, %v2763
      %v2772 = vadd.f32 %v2724, %v2764
      %v2773 = vadd.f32 %v2725, %v2765
      %v2774 = vadd.f32 %v2726, %v2766
      %2775 = vrot.lane.b32.xlu0 %v2415, 111
      %v2776 = vpop.permute.xlu0 %2775
      %2777 = vrot.lane.b32.xlu0 %v2417, 111
      %v2778 = vpop.permute.xlu0 %2777
      %2779 = vrot.lane.b32.xlu0 %v2419, 111
      %v2780 = vpop.permute.xlu0 %2779
      %2781 = vrot.lane.b32.xlu0 %v2421, 111
      %v2782 = vpop.permute.xlu0 %2781
      %2783 = vrot.lane.b32.xlu0 %v2416, 111
      %v2784 = vpop.permute.xlu0 %2783
      %2785 = vrot.lane.b32.xlu0 %v2418, 111
      %v2786 = vpop.permute.xlu0 %2785
      %2787 = vrot.lane.b32.xlu0 %v2420, 111
      %v2788 = vpop.permute.xlu0 %2787
      %2789 = vrot.lane.b32.xlu0 %v2422, 111
      %v2790 = vpop.permute.xlu0 %2789
      %v2791 = vsel %vm679, %v2776, %v2784
      %v2792 = vsel %vm679, %v2778, %v2786
      %v2793 = vsel %vm679, %v2780, %v2788
      %v2794 = vsel %vm679, %v2782, %v2790
      %v2795 = vsel %vm679, %v2784, %v2776
      %v2796 = vsel %vm679, %v2786, %v2778
      %v2797 = vsel %vm679, %v2788, %v2780
      %v2798 = vsel %vm679, %v2790, %v2782
      %v2799 = vld [vmem:[%s688] sm:$0xff]
      %v2800 = vld [vmem:[%s688 + $0x8] sm:$0xff]
      %v2801 = vld [vmem:[%s688 + $0x10] sm:$0xff]
      %v2802 = vld [vmem:[%s688 + $0x18] sm:$0xff]
      %v2803 = vld [vmem:[%s688 + $0x20] sm:$0xff]
      %v2804 = vld [vmem:[%s688 + $0x28] sm:$0xff]
      %v2805 = vld [vmem:[%s688 + $0x30] sm:$0xff]
      %v2806 = vld [vmem:[%s688 + $0x38] sm:$0xff]
      %v2807 = vmul.f32 %v2791, %v2799
      %v2808 = vmul.f32 %v2795, %v2800
      %v2809 = vmul.f32 %v2792, %v2801
      %v2810 = vmul.f32 %v2796, %v2802
      %v2811 = vmul.f32 %v2793, %v2803
      %v2812 = vmul.f32 %v2797, %v2804
      %v2813 = vmul.f32 %v2794, %v2805
      %v2814 = vmul.f32 %v2798, %v2806
      %v2815 = vadd.f32 %v2767, %v2807
      %v2816 = vadd.f32 %v2768, %v2808
      %v2817 = vadd.f32 %v2769, %v2809
      %v2818 = vadd.f32 %v2770, %v2810
      %v2819 = vadd.f32 %v2771, %v2811
      %v2820 = vadd.f32 %v2772, %v2812
      %v2821 = vadd.f32 %v2773, %v2813
      %v2822 = vadd.f32 %v2774, %v2814
      %v2823 = vld [vmem:[%s2] sm:$0xff]
      %v2824 = vld [vmem:[%s2 + $0x8] sm:$0xff]
      %v2825 = vld [vmem:[%s2 + $0x10] sm:$0xff]
      %v2826 = vld [vmem:[%s2 + $0x18] sm:$0xff]
      %2828 = vset.pattern.permute.xlu0 0
      %2829 = vperm.xlu0 %2828, %v2823
      %v2830 = vpop.permute.xlu0 %2829
      %2833 = vset.pattern.permute.xlu0 0
      %2834 = vperm.xlu0 %2833, %v2824
      %v2835 = vpop.permute.xlu0 %2834
      %2838 = vset.pattern.permute.xlu0 0
      %2839 = vperm.xlu0 %2838, %v2825
      %v2840 = vpop.permute.xlu0 %2839
      %2843 = vset.pattern.permute.xlu0 0
      %2844 = vperm.xlu0 %2843, %v2826
      %v2845 = vpop.permute.xlu0 %2844
      %v2847 = vadd.f32 %v2815, %v2830
      %v2848 = vadd.f32 %v2816, %v2830
      %v2849 = vadd.f32 %v2817, %v2835
      %v2850 = vadd.f32 %v2818, %v2835
      %v2851 = vadd.f32 %v2819, %v2840
      %v2852 = vadd.f32 %v2820, %v2840
      %v2853 = vadd.f32 %v2821, %v2845
      %v2854 = vadd.f32 %v2822, %v2845
      %v2855 = vmax.f32 %v2847, 0.0
      %v2856 = vmax.f32 %v2848, 0.0
      %v2857 = vmax.f32 %v2849, 0.0
      %v2858 = vmax.f32 %v2850, 0.0
      %v2859 = vmax.f32 %v2851, 0.0
      %v2860 = vmax.f32 %v2852, 0.0
      %v2861 = vmax.f32 %v2853, 0.0
      %v2862 = vmax.f32 %v2854, 0.0
      %v2863 = vmin.f32 %v2855, 6.0
      %v2864 = vmin.f32 %v2856, 6.0
      %v2865 = vmin.f32 %v2857, 6.0
      %v2866 = vmin.f32 %v2858, 6.0
      %v2867 = vmin.f32 %v2859, 6.0
      %v2868 = vmin.f32 %v2860, 6.0
      %v2869 = vmin.f32 %v2861, 6.0
      %v2870 = vmin.f32 %v2862, 6.0
      %v2871 = vld [vmem:[%s3] sm:$0xff]
      %v2872 = vld [vmem:[%s3 + $0x8] sm:$0xff]
      %v2873 = vld [vmem:[%s3 + $0x10] sm:$0xff]
      %v2874 = vld [vmem:[%s3 + $0x18] sm:$0xff]
      %v2875 = vld [vmem:[%s4] sm:$0xff]
      %v2876 = vld [vmem:[%s4 + $0x8] sm:$0xff]
      %v2877 = vld [vmem:[%s4 + $0x10] sm:$0xff]
      %v2878 = vld [vmem:[%s4 + $0x18] sm:$0xff]
      %2880 = vset.pattern.permute.xlu0 0
      %2881 = vperm.xlu0 %2880, %v2875
      %v2882 = vpop.permute.xlu0 %2881
      %2885 = vset.pattern.permute.xlu0 0
      %2886 = vperm.xlu0 %2885, %v2876
      %v2887 = vpop.permute.xlu0 %2886
      %2890 = vset.pattern.permute.xlu0 0
      %2891 = vperm.xlu0 %2890, %v2877
      %v2892 = vpop.permute.xlu0 %2891
      %2895 = vset.pattern.permute.xlu0 0
      %2896 = vperm.xlu0 %2895, %v2878
      %v2897 = vpop.permute.xlu0 %2896
      %v2900 = vsel %vm789, %v2871, 0
      %v2903 = vsel %vm789, %v2872, 0
      %v2906 = vsel %vm789, %v2873, 0
      %v2909 = vsel %vm789, %v2874, 0
      %2911 = vmatprep.subr.mxu0 %v2864
      %2912 = vmatpush1.msra.mxu0 %v2863
      %2913 = vmatprep.subr.mxu0 %v2866
      %2914 = vmatpush1.msra.mxu0 %v2865
      %2915 = vmatprep.subr.mxu0 %v2868
      %2916 = vmatpush1.msra.mxu0 %v2867
      %2917 = vmatprep.subr.mxu0 %v2870
      %2918 = vmatpush1.msra.mxu0 %v2869
      %2919 = vmatprep.subr.mxu0 0.0
      %2920 = vmatpush1.msra.mxu0 0.0
      %2921 = vmatprep.subr.mxu0 0.0
      %2922 = vmatpush1.msra.mxu0 0.0
      %2923 = vmatprep.subr.mxu0 0.0
      %2924 = vmatpush1.msra.mxu0 0.0
      %2925 = vmatprep.subr.mxu0 0.0
      %2926 = vmatpush1.msra.mxu0 0.0
      %2927 = vmatprep.subr.mxu0 0.0
      %2928 = vmatpush1.msra.mxu0 0.0
      %2929 = vmatprep.subr.mxu0 0.0
      %2930 = vmatpush1.msra.mxu0 0.0
      %2931 = vmatprep.subr.mxu0 0.0
      %2932 = vmatpush1.msra.mxu0 0.0
      %2933 = vmatprep.subr.mxu0 0.0
      %2934 = vmatpush1.msra.mxu0 0.0
      %2935 = vmatprep.subr.mxu0 0.0
      %2936 = vmatpush1.msra.mxu0 0.0
      %2937 = vmatprep.subr.mxu0 0.0
      %2938 = vmatpush1.msra.mxu0 0.0
      %2939 = vmatprep.subr.mxu0 0.0
      %2940 = vmatpush1.msra.mxu0 0.0
      %2941 = vmatprep.subr.mxu0 0.0
      %2942 = vmatpush1.msra.mxu0 0.0
      %2943 = vmatprep.subr.mxu0 0.0
      %2944 = vmatpush1.msra.mxu0 0.0
      %2945 = vmatprep.subr.mxu0 0.0
      %2946 = vmatpush1.msra.mxu0 0.0
      %2947 = vmatprep.subr.mxu0 0.0
      %2948 = vmatpush1.msra.mxu0 0.0
      %2949 = vmatprep.subr.mxu0 0.0
      %2950 = vmatpush1.msra.mxu0 0.0
      %2951 = vmatprep.subr.mxu0 0.0
      %2952 = vmatpush1.msra.mxu0 0.0
      %2953 = vmatprep.subr.mxu0 0.0
      %2954 = vmatpush1.msra.mxu0 0.0
      %2955 = vmatprep.subr.mxu0 0.0
      %2956 = vmatpush1.msra.mxu0 0.0
      %2957 = vmatprep.subr.mxu0 0.0
      %2958 = vmatpush1.msra.mxu0 0.0
      %2959 = vmatprep.subr.mxu0 0.0
      %2960 = vmatpush1.msra.mxu0 0.0
      %2961 = vmatprep.subr.mxu0 0.0
      %2962 = vmatpush1.msra.mxu0 0.0
      %2963 = vmatprep.subr.mxu0 0.0
      %2964 = vmatpush1.msra.mxu0 0.0
      %2965 = vmatprep.subr.mxu0 0.0
      %2966 = vmatpush1.msra.mxu0 0.0
      %2967 = vmatprep.subr.mxu0 0.0
      %2968 = vmatpush1.msra.mxu0 0.0
      %2969 = vmatprep.subr.mxu0 0.0
      %2970 = vmatpush1.msra.mxu0 0.0
      %2971 = vmatprep.subr.mxu0 0.0
      %2972 = vmatpush1.msra.mxu0 0.0
      %2973 = vmatprep.subr.mxu0 0.0
      %2974 = vmatpush1.msra.mxu0 0.0
      %2975 = vmatprep.mubr.f32.mxu0 0.0
      %2976 = vmatmul.mubr.f32.gmra.mrb[0].mxu0 %v2900
      %v2977 = vpop.f32.mrb[0].mxu0
      %v2978 = vadd.f32 %v2882, %v2977
      %v2979 = vpop.f32.mrb[0].mxu0
      %v2980 = vadd.f32 %v2882, %v2979
      %2981 = vmatprep.mubr.f32.mxu0 0.0
      %2982 = vmatmul.mubr.f32.gmra.mrb[0].mxu0 %v2903
      %v2983 = vpop.f32.mrb[0].mxu0
      %v2984 = vadd.f32 %v2887, %v2983
      %v2985 = vpop.f32.mrb[0].mxu0
      %v2986 = vadd.f32 %v2887, %v2985
      %2987 = vmatprep.mubr.f32.mxu0 0.0
      %2988 = vmatmul.mubr.f32.gmra.mrb[0].mxu0 %v2906
      %v2989 = vpop.f32.mrb[0].mxu0
      %v2990 = vadd.f32 %v2892, %v2989
      %v2991 = vpop.f32.mrb[0].mxu0
      %v2992 = vadd.f32 %v2892, %v2991
      %2993 = vmatprep.mubr.f32.mxu0 0.0
      %2994 = vmatmul.mubr.f32.gmra.mrb[0].mxu0 %v2909
      %v2995 = vpop.f32.mrb[0].mxu0
      %v2996 = vadd.f32 %v2897, %v2995
      %v2997 = vpop.f32.mrb[0].mxu0
      %v2998 = vadd.f32 %v2897, %v2997
      %2999 = vdwg.mxu0
      %v3000 = vmax.f32 %v2978, 0.0
      %v3001 = vmax.f32 %v2980, 0.0
      %v3002 = vmax.f32 %v2984, 0.0
      %v3003 = vmax.f32 %v2986, 0.0
      %v3004 = vmax.f32 %v2990, 0.0
      %v3005 = vmax.f32 %v2992, 0.0
      %v3006 = vmax.f32 %v2996, 0.0
      %v3007 = vmax.f32 %v2998, 0.0
      %v3008 = vmin.f32 %v3000, 6.0
      %v3009 = vmin.f32 %v3001, 6.0
      %v3010 = vmin.f32 %v3002, 6.0
      %v3011 = vmin.f32 %v3003, 6.0
      %v3012 = vmin.f32 %v3004, 6.0
      %v3013 = vmin.f32 %v3005, 6.0
      %v3014 = vmin.f32 %v3006, 6.0
      %v3015 = vmin.f32 %v3007, 6.0
      %v3016 = vld [vmem:[%s907] sm:$0xff]
      %v3017 = vld [vmem:[%s907 + $0x8] sm:$0xff]
      %v3018 = vld [vmem:[%s907 + $0x10] sm:$0xff]
      %v3019 = vld [vmem:[%s907 + $0x18] sm:$0xff]
      %v3020 = vld [vmem:[%s907 + $0x20] sm:$0xff]
      %v3021 = vld [vmem:[%s907 + $0x28] sm:$0xff]
      %v3022 = vld [vmem:[%s907 + $0x30] sm:$0xff]
      %v3023 = vld [vmem:[%s907 + $0x38] sm:$0xff]
      %v3024 = vmul.f32 %v3008, %v3016
      %v3025 = vmul.f32 %v3009, %v3017
      %v3026 = vmul.f32 %v3010, %v3018
      %v3027 = vmul.f32 %v3011, %v3019
      %v3028 = vmul.f32 %v3012, %v3020
      %v3029 = vmul.f32 %v3013, %v3021
      %v3030 = vmul.f32 %v3014, %v3022
      %v3031 = vmul.f32 %v3015, %v3023
      %3032 = vrot.lane.b32.xlu0 %v3008, 17
      %v3033 = vpop.permute.xlu0 %3032
      %3034 = vrot.lane.b32.xlu0 %v3010, 17
      %v3035 = vpop.permute.xlu0 %3034
      %3036 = vrot.lane.b32.xlu0 %v3012, 17
      %v3037 = vpop.permute.xlu0 %3036
      %3038 = vrot.lane.b32.xlu0 %v3014, 17
      %v3039 = vpop.permute.xlu0 %3038
      %3040 = vrot.lane.b32.xlu0 %v3009, 17
      %v3041 = vpop.permute.xlu0 %3040
      %3042 = vrot.lane.b32.xlu0 %v3011, 17
      %v3043 = vpop.permute.xlu0 %3042
      %3044 = vrot.lane.b32.xlu0 %v3013, 17
      %v3045 = vpop.permute.xlu0 %3044
      %3046 = vrot.lane.b32.xlu0 %v3015, 17
      %v3047 = vpop.permute.xlu0 %3046
      %v3048 = vsel %vm330, %v3033, %v3041
      %v3049 = vsel %vm330, %v3035, %v3043
      %v3050 = vsel %vm330, %v3037, %v3045
      %v3051 = vsel %vm330, %v3039, %v3047
      %v3052 = vsel %vm330, %v3041, %v3033
      %v3053 = vsel %vm330, %v3043, %v3035
      %v3054 = vsel %vm330, %v3045, %v3037
      %v3055 = vsel %vm330, %v3047, %v3039
      %v3056 = vld [vmem:[%s5] sm:$0xff]
      %v3057 = vld [vmem:[%s5 + $0x8] sm:$0xff]
      %v3058 = vld [vmem:[%s5 + $0x10] sm:$0xff]
      %v3059 = vld [vmem:[%s5 + $0x18] sm:$0xff]
      %v3060 = vld [vmem:[%s5 + $0x20] sm:$0xff]
      %v3061 = vld [vmem:[%s5 + $0x28] sm:$0xff]
      %v3062 = vld [vmem:[%s5 + $0x30] sm:$0xff]
      %v3063 = vld [vmem:[%s5 + $0x38] sm:$0xff]
      %v3064 = vmul.f32 %v3052, %v3056
      %v3065 = vmul.f32 %v3048, %v3057
      %v3066 = vmul.f32 %v3053, %v3058
      %v3067 = vmul.f32 %v3049, %v3059
      %v3068 = vmul.f32 %v3054, %v3060
      %v3069 = vmul.f32 %v3050, %v3061
      %v3070 = vmul.f32 %v3055, %v3062
      %v3071 = vmul.f32 %v3051, %v3063
      %v3072 = vadd.f32 %v3024, %v3064
      %v3073 = vadd.f32 %v3025, %v3065
      %v3074 = vadd.f32 %v3026, %v3066
      %v3075 = vadd.f32 %v3027, %v3067
      %v3076 = vadd.f32 %v3028, %v3068
      %v3077 = vadd.f32 %v3029, %v3069
      %v3078 = vadd.f32 %v3030, %v3070
      %v3079 = vadd.f32 %v3031, %v3071
      %3080 = vrot.lane.b32.xlu0 %v3008, 16
      %v3081 = vpop.permute.xlu0 %3080
      %3082 = vrot.lane.b32.xlu0 %v3010, 16
      %v3083 = vpop.permute.xlu0 %3082
      %3084 = vrot.lane.b32.xlu0 %v3012, 16
      %v3085 = vpop.permute.xlu0 %3084
      %3086 = vrot.lane.b32.xlu0 %v3014, 16
      %v3087 = vpop.permute.xlu0 %3086
      %3088 = vrot.lane.b32.xlu0 %v3009, 16
      %v3089 = vpop.permute.xlu0 %3088
      %3090 = vrot.lane.b32.xlu0 %v3011, 16
      %v3091 = vpop.permute.xlu0 %3090
      %3092 = vrot.lane.b32.xlu0 %v3013, 16
      %v3093 = vpop.permute.xlu0 %3092
      %3094 = vrot.lane.b32.xlu0 %v3015, 16
      %v3095 = vpop.permute.xlu0 %3094
      %v3096 = vsel %vm379, %v3081, %v3089
      %v3097 = vsel %vm379, %v3083, %v3091
      %v3098 = vsel %vm379, %v3085, %v3093
      %v3099 = vsel %vm379, %v3087, %v3095
      %v3100 = vsel %vm379, %v3089, %v3081
      %v3101 = vsel %vm379, %v3091, %v3083
      %v3102 = vsel %vm379, %v3093, %v3085
      %v3103 = vsel %vm379, %v3095, %v3087
      %v3104 = vld [vmem:[%s996] sm:$0xff]
      %v3105 = vld [vmem:[%s996 + $0x8] sm:$0xff]
      %v3106 = vld [vmem:[%s996 + $0x10] sm:$0xff]
      %v3107 = vld [vmem:[%s996 + $0x18] sm:$0xff]
      %v3108 = vld [vmem:[%s996 + $0x20] sm:$0xff]
      %v3109 = vld [vmem:[%s996 + $0x28] sm:$0xff]
      %v3110 = vld [vmem:[%s996 + $0x30] sm:$0xff]
      %v3111 = vld [vmem:[%s996 + $0x38] sm:$0xff]
      %v3112 = vmul.f32 %v3100, %v3104
      %v3113 = vmul.f32 %v3096, %v3105
      %v3114 = vmul.f32 %v3101, %v3106
      %v3115 = vmul.f32 %v3097, %v3107
      %v3116 = vmul.f32 %v3102, %v3108
      %v3117 = vmul.f32 %v3098, %v3109
      %v3118 = vmul.f32 %v3103, %v3110
      %v3119 = vmul.f32 %v3099, %v3111
      %v3120 = vadd.f32 %v3072, %v3112
      %v3121 = vadd.f32 %v3073, %v3113
      %v3122 = vadd.f32 %v3074, %v3114
      %v3123 = vadd.f32 %v3075, %v3115
      %v3124 = vadd.f32 %v3076, %v3116
      %v3125 = vadd.f32 %v3077, %v3117
      %v3126 = vadd.f32 %v3078, %v3118
      %v3127 = vadd.f32 %v3079, %v3119
      %3128 = vrot.lane.b32.xlu0 %v3008, 15
      %v3129 = vpop.permute.xlu0 %3128
      %3130 = vrot.lane.b32.xlu0 %v3010, 15
      %v3131 = vpop.permute.xlu0 %3130
      %3132 = vrot.lane.b32.xlu0 %v3012, 15
      %v3133 = vpop.permute.xlu0 %3132
      %3134 = vrot.lane.b32.xlu0 %v3014, 15
      %v3135 = vpop.permute.xlu0 %3134
      %3136 = vrot.lane.b32.xlu0 %v3009, 15
      %v3137 = vpop.permute.xlu0 %3136
      %3138 = vrot.lane.b32.xlu0 %v3011, 15
      %v3139 = vpop.permute.xlu0 %3138
      %3140 = vrot.lane.b32.xlu0 %v3013, 15
      %v3141 = vpop.permute.xlu0 %3140
      %3142 = vrot.lane.b32.xlu0 %v3015, 15
      %v3143 = vpop.permute.xlu0 %3142
      %v3144 = vsel %vm429, %v3129, %v3137
      %v3145 = vsel %vm429, %v3131, %v3139
      %v3146 = vsel %vm429, %v3133, %v3141
      %v3147 = vsel %vm429, %v3135, %v3143
      %v3148 = vsel %vm429, %v3137, %v3129
      %v3149 = vsel %vm429, %v3139, %v3131
      %v3150 = vsel %vm429, %v3141, %v3133
      %v3151 = vsel %vm429, %v3143, %v3135
      %v3152 = vld [vmem:[%s1045] sm:$0xff]
      %v3153 = vld [vmem:[%s1045 + $0x8] sm:$0xff]
      %v3154 = vld [vmem:[%s1045 + $0x10] sm:$0xff]
      %v3155 = vld [vmem:[%s1045 + $0x18] sm:$0xff]
      %v3156 = vld [vmem:[%s1045 + $0x20] sm:$0xff]
      %v3157 = vld [vmem:[%s1045 + $0x28] sm:$0xff]
      %v3158 = vld [vmem:[%s1045 + $0x30] sm:$0xff]
      %v3159 = vld [vmem:[%s1045 + $0x38] sm:$0xff]
      %v3160 = vmul.f32 %v3148, %v3152
      %v3161 = vmul.f32 %v3144, %v3153
      %v3162 = vmul.f32 %v3149, %v3154
      %v3163 = vmul.f32 %v3145, %v3155
      %v3164 = vmul.f32 %v3150, %v3156
      %v3165 = vmul.f32 %v3146, %v3157
      %v3166 = vmul.f32 %v3151, %v3158
      %v3167 = vmul.f32 %v3147, %v3159
      %v3168 = vadd.f32 %v3120, %v3160
      %v3169 = vadd.f32 %v3121, %v3161
      %v3170 = vadd.f32 %v3122, %v3162
      %v3171 = vadd.f32 %v3123, %v3163
      %v3172 = vadd.f32 %v3124, %v3164
      %v3173 = vadd.f32 %v3125, %v3165
      %v3174 = vadd.f32 %v3126, %v3166
      %v3175 = vadd.f32 %v3127, %v3167
      %3176 = vrot.lane.b32.xlu0 %v3008, 1
      %v3177 = vpop.permute.xlu0 %3176
      %3178 = vrot.lane.b32.xlu0 %v3010, 1
      %v3179 = vpop.permute.xlu0 %3178
      %3180 = vrot.lane.b32.xlu0 %v3012, 1
      %v3181 = vpop.permute.xlu0 %3180
      %3182 = vrot.lane.b32.xlu0 %v3014, 1
      %v3183 = vpop.permute.xlu0 %3182
      %3184 = vrot.lane.b32.xlu0 %v3009, 1
      %v3185 = vpop.permute.xlu0 %3184
      %3186 = vrot.lane.b32.xlu0 %v3011, 1
      %v3187 = vpop.permute.xlu0 %3186
      %3188 = vrot.lane.b32.xlu0 %v3013, 1
      %v3189 = vpop.permute.xlu0 %3188
      %3190 = vrot.lane.b32.xlu0 %v3015, 1
      %v3191 = vpop.permute.xlu0 %3190
      %v3192 = vsel %vm479, %v3177, %v3185
      %v3193 = vsel %vm479, %v3179, %v3187
      %v3194 = vsel %vm479, %v3181, %v3189
      %v3195 = vsel %vm479, %v3183, %v3191
      %v3196 = vsel %vm479, %v3185, %v3177
      %v3197 = vsel %vm479, %v3187, %v3179
      %v3198 = vsel %vm479, %v3189, %v3181
      %v3199 = vsel %vm479, %v3191, %v3183
      %v3200 = vld [vmem:[%s1094] sm:$0xff]
      %v3201 = vld [vmem:[%s1094 + $0x8] sm:$0xff]
      %v3202 = vld [vmem:[%s1094 + $0x10] sm:$0xff]
      %v3203 = vld [vmem:[%s1094 + $0x18] sm:$0xff]
      %v3204 = vld [vmem:[%s1094 + $0x20] sm:$0xff]
      %v3205 = vld [vmem:[%s1094 + $0x28] sm:$0xff]
      %v3206 = vld [vmem:[%s1094 + $0x30] sm:$0xff]
      %v3207 = vld [vmem:[%s1094 + $0x38] sm:$0xff]
      %v3208 = vmul.f32 %v3196, %v3200
      %v3209 = vmul.f32 %v3192, %v3201
      %v3210 = vmul.f32 %v3197, %v3202
      %v3211 = vmul.f32 %v3193, %v3203
      %v3212 = vmul.f32 %v3198, %v3204
      %v3213 = vmul.f32 %v3194, %v3205
      %v3214 = vmul.f32 %v3199, %v3206
      %v3215 = vmul.f32 %v3195, %v3207
      %v3216 = vadd.f32 %v3168, %v3208
      %v3217 = vadd.f32 %v3169, %v3209
      %v3218 = vadd.f32 %v3170, %v3210
      %v3219 = vadd.f32 %v3171, %v3211
      %v3220 = vadd.f32 %v3172, %v3212
      %v3221 = vadd.f32 %v3173, %v3213
      %v3222 = vadd.f32 %v3174, %v3214
      %v3223 = vadd.f32 %v3175, %v3215
      %3224 = vrot.lane.b32.xlu0 %v3008, 127
      %v3225 = vpop.permute.xlu0 %3224
      %3226 = vrot.lane.b32.xlu0 %v3010, 127
      %v3227 = vpop.permute.xlu0 %3226
      %3228 = vrot.lane.b32.xlu0 %v3012, 127
      %v3229 = vpop.permute.xlu0 %3228
      %3230 = vrot.lane.b32.xlu0 %v3014, 127
      %v3231 = vpop.permute.xlu0 %3230
      %3232 = vrot.lane.b32.xlu0 %v3009, 127
      %v3233 = vpop.permute.xlu0 %3232
      %3234 = vrot.lane.b32.xlu0 %v3011, 127
      %v3235 = vpop.permute.xlu0 %3234
      %3236 = vrot.lane.b32.xlu0 %v3013, 127
      %v3237 = vpop.permute.xlu0 %3236
      %3238 = vrot.lane.b32.xlu0 %v3015, 127
      %v3239 = vpop.permute.xlu0 %3238
      %v3240 = vsel %vm529, %v3225, %v3233
      %v3241 = vsel %vm529, %v3227, %v3235
      %v3242 = vsel %vm529, %v3229, %v3237
      %v3243 = vsel %vm529, %v3231, %v3239
      %v3244 = vsel %vm529, %v3233, %v3225
      %v3245 = vsel %vm529, %v3235, %v3227
      %v3246 = vsel %vm529, %v3237, %v3229
      %v3247 = vsel %vm529, %v3239, %v3231
      %v3248 = vld [vmem:[%s1143] sm:$0xff]
      %v3249 = vld [vmem:[%s1143 + $0x8] sm:$0xff]
      %v3250 = vld [vmem:[%s1143 + $0x10] sm:$0xff]
      %v3251 = vld [vmem:[%s1143 + $0x18] sm:$0xff]
      %v3252 = vld [vmem:[%s1143 + $0x20] sm:$0xff]
      %v3253 = vld [vmem:[%s1143 + $0x28] sm:$0xff]
      %v3254 = vld [vmem:[%s1143 + $0x30] sm:$0xff]
      %v3255 = vld [vmem:[%s1143 + $0x38] sm:$0xff]
      %v3256 = vmul.f32 %v3240, %v3248
      %v3257 = vmul.f32 %v3244, %v3249
      %v3258 = vmul.f32 %v3241, %v3250
      %v3259 = vmul.f32 %v3245, %v3251
      %v3260 = vmul.f32 %v3242, %v3252
      %v3261 = vmul.f32 %v3246, %v3253
      %v3262 = vmul.f32 %v3243, %v3254
      %v3263 = vmul.f32 %v3247, %v3255
      %v3264 = vadd.f32 %v3216, %v3256
      %v3265 = vadd.f32 %v3217, %v3257
      %v3266 = vadd.f32 %v3218, %v3258
      %v3267 = vadd.f32 %v3219, %v3259
      %v3268 = vadd.f32 %v3220, %v3260
      %v3269 = vadd.f32 %v3221, %v3261
      %v3270 = vadd.f32 %v3222, %v3262
      %v3271 = vadd.f32 %v3223, %v3263
      %3272 = vrot.lane.b32.xlu0 %v3008, 113
      %v3273 = vpop.permute.xlu0 %3272
      %3274 = vrot.lane.b32.xlu0 %v3010, 113
      %v3275 = vpop.permute.xlu0 %3274
      %3276 = vrot.lane.b32.xlu0 %v3012, 113
      %v3277 = vpop.permute.xlu0 %3276
      %3278 = vrot.lane.b32.xlu0 %v3014, 113
      %v3279 = vpop.permute.xlu0 %3278
      %3280 = vrot.lane.b32.xlu0 %v3009, 113
      %v3281 = vpop.permute.xlu0 %3280
      %3282 = vrot.lane.b32.xlu0 %v3011, 113
      %v3283 = vpop.permute.xlu0 %3282
      %3284 = vrot.lane.b32.xlu0 %v3013, 113
      %v3285 = vpop.permute.xlu0 %3284
      %3286 = vrot.lane.b32.xlu0 %v3015, 113
      %v3287 = vpop.permute.xlu0 %3286
      %v3288 = vsel %vm579, %v3273, %v3281
      %v3289 = vsel %vm579, %v3275, %v3283
      %v3290 = vsel %vm579, %v3277, %v3285
      %v3291 = vsel %vm579, %v3279, %v3287
      %v3292 = vsel %vm579, %v3281, %v3273
      %v3293 = vsel %vm579, %v3283, %v3275
      %v3294 = vsel %vm579, %v3285, %v3277
      %v3295 = vsel %vm579, %v3287, %v3279
      %v3296 = vld [vmem:[%s1192] sm:$0xff]
      %v3297 = vld [vmem:[%s1192 + $0x8] sm:$0xff]
      %v3298 = vld [vmem:[%s1192 + $0x10] sm:$0xff]
      %v3299 = vld [vmem:[%s1192 + $0x18] sm:$0xff]
      %v3300 = vld [vmem:[%s1192 + $0x20] sm:$0xff]
      %v3301 = vld [vmem:[%s1192 + $0x28] sm:$0xff]
      %v3302 = vld [vmem:[%s1192 + $0x30] sm:$0xff]
      %v3303 = vld [vmem:[%s1192 + $0x38] sm:$0xff]
      %v3304 = vmul.f32 %v3288, %v3296
      %v3305 = vmul.f32 %v3292, %v3297
      %v3306 = vmul.f32 %v3289, %v3298
      %v3307 = vmul.f32 %v3293, %v3299
      %v3308 = vmul.f32 %v3290, %v3300
      %v3309 = vmul.f32 %v3294, %v3301
      %v3310 = vmul.f32 %v3291, %v3302
      %v3311 = vmul.f32 %v3295, %v3303
      %v3312 = vadd.f32 %v3264, %v3304
      %v3313 = vadd.f32 %v3265, %v3305
      %v3314 = vadd.f32 %v3266, %v3306
      %v3315 = vadd.f32 %v3267, %v3307
      %v3316 = vadd.f32 %v3268, %v3308
      %v3317 = vadd.f32 %v3269, %v3309
      %v3318 = vadd.f32 %v3270, %v3310
      %v3319 = vadd.f32 %v3271, %v3311
      %3320 = vrot.lane.b32.xlu0 %v3008, 112
      %v3321 = vpop.permute.xlu0 %3320
      %3322 = vrot.lane.b32.xlu0 %v3010, 112
      %v3323 = vpop.permute.xlu0 %3322
      %3324 = vrot.lane.b32.xlu0 %v3012, 112
      %v3325 = vpop.permute.xlu0 %3324
      %3326 = vrot.lane.b32.xlu0 %v3014, 112
      %v3327 = vpop.permute.xlu0 %3326
      %3328 = vrot.lane.b32.xlu0 %v3009, 112
      %v3329 = vpop.permute.xlu0 %3328
      %3330 = vrot.lane.b32.xlu0 %v3011, 112
      %v3331 = vpop.permute.xlu0 %3330
      %3332 = vrot.lane.b32.xlu0 %v3013, 112
      %v3333 = vpop.permute.xlu0 %3332
      %3334 = vrot.lane.b32.xlu0 %v3015, 112
      %v3335 = vpop.permute.xlu0 %3334
      %v3336 = vsel %vm629, %v3321, %v3329
      %v3337 = vsel %vm629, %v3323, %v3331
      %v3338 = vsel %vm629, %v3325, %v3333
      %v3339 = vsel %vm629, %v3327, %v3335
      %v3340 = vsel %vm629, %v3329, %v3321
      %v3341 = vsel %vm629, %v3331, %v3323
      %v3342 = vsel %vm629, %v3333, %v3325
      %v3343 = vsel %vm629, %v3335, %v3327
      %v3344 = vld [vmem:[%s1241] sm:$0xff]
      %v3345 = vld [vmem:[%s1241 + $0x8] sm:$0xff]
      %v3346 = vld [vmem:[%s1241 + $0x10] sm:$0xff]
      %v3347 = vld [vmem:[%s1241 + $0x18] sm:$0xff]
      %v3348 = vld [vmem:[%s1241 + $0x20] sm:$0xff]
      %v3349 = vld [vmem:[%s1241 + $0x28] sm:$0xff]
      %v3350 = vld [vmem:[%s1241 + $0x30] sm:$0xff]
      %v3351 = vld [vmem:[%s1241 + $0x38] sm:$0xff]
      %v3352 = vmul.f32 %v3336, %v3344
      %v3353 = vmul.f32 %v3340, %v3345
      %v3354 = vmul.f32 %v3337, %v3346
      %v3355 = vmul.f32 %v3341, %v3347
      %v3356 = vmul.f32 %v3338, %v3348
      %v3357 = vmul.f32 %v3342, %v3349
      %v3358 = vmul.f32 %v3339, %v3350
      %v3359 = vmul.f32 %v3343, %v3351
      %v3360 = vadd.f32 %v3312, %v3352
      %v3361 = vadd.f32 %v3313, %v3353
      %v3362 = vadd.f32 %v3314, %v3354
      %v3363 = vadd.f32 %v3315, %v3355
      %v3364 = vadd.f32 %v3316, %v3356
      %v3365 = vadd.f32 %v3317, %v3357
      %v3366 = vadd.f32 %v3318, %v3358
      %v3367 = vadd.f32 %v3319, %v3359
      %3368 = vrot.lane.b32.xlu0 %v3008, 111
      %v3369 = vpop.permute.xlu0 %3368
      %3370 = vrot.lane.b32.xlu0 %v3010, 111
      %v3371 = vpop.permute.xlu0 %3370
      %3372 = vrot.lane.b32.xlu0 %v3012, 111
      %v3373 = vpop.permute.xlu0 %3372
      %3374 = vrot.lane.b32.xlu0 %v3014, 111
      %v3375 = vpop.permute.xlu0 %3374
      %3376 = vrot.lane.b32.xlu0 %v3009, 111
      %v3377 = vpop.permute.xlu0 %3376
      %3378 = vrot.lane.b32.xlu0 %v3011, 111
      %v3379 = vpop.permute.xlu0 %3378
      %3380 = vrot.lane.b32.xlu0 %v3013, 111
      %v3381 = vpop.permute.xlu0 %3380
      %3382 = vrot.lane.b32.xlu0 %v3015, 111
      %v3383 = vpop.permute.xlu0 %3382
      %v3384 = vsel %vm679, %v3369, %v3377
      %v3385 = vsel %vm679, %v3371, %v3379
      %v3386 = vsel %vm679, %v3373, %v3381
      %v3387 = vsel %vm679, %v3375, %v3383
      %v3388 = vsel %vm679, %v3377, %v3369
      %v3389 = vsel %vm679, %v3379, %v3371
      %v3390 = vsel %vm679, %v3381, %v3373
      %v3391 = vsel %vm679, %v3383, %v3375
      %v3392 = vld [vmem:[%s1290] sm:$0xff]
      %v3393 = vld [vmem:[%s1290 + $0x8] sm:$0xff]
      %v3394 = vld [vmem:[%s1290 + $0x10] sm:$0xff]
      %v3395 = vld [vmem:[%s1290 + $0x18] sm:$0xff]
      %v3396 = vld [vmem:[%s1290 + $0x20] sm:$0xff]
      %v3397 = vld [vmem:[%s1290 + $0x28] sm:$0xff]
      %v3398 = vld [vmem:[%s1290 + $0x30] sm:$0xff]
      %v3399 = vld [vmem:[%s1290 + $0x38] sm:$0xff]
      %v3400 = vmul.f32 %v3384, %v3392
      %v3401 = vmul.f32 %v3388, %v3393
      %v3402 = vmul.f32 %v3385, %v3394
      %v3403 = vmul.f32 %v3389, %v3395
      %v3404 = vmul.f32 %v3386, %v3396
      %v3405 = vmul.f32 %v3390, %v3397
      %v3406 = vmul.f32 %v3387, %v3398
      %v3407 = vmul.f32 %v3391, %v3399
      %v3408 = vadd.f32 %v3360, %v3400
      %v3409 = vadd.f32 %v3361, %v3401
      %v3410 = vadd.f32 %v3362, %v3402
      %v3411 = vadd.f32 %v3363, %v3403
      %v3412 = vadd.f32 %v3364, %v3404
      %v3413 = vadd.f32 %v3365, %v3405
      %v3414 = vadd.f32 %v3366, %v3406
      %v3415 = vadd.f32 %v3367, %v3407
      %v3416 = vld [vmem:[%s6] sm:$0xff]
      %v3417 = vld [vmem:[%s6 + $0x8] sm:$0xff]
      %v3418 = vld [vmem:[%s6 + $0x10] sm:$0xff]
      %v3419 = vld [vmem:[%s6 + $0x18] sm:$0xff]
      %3421 = vset.pattern.permute.xlu0 0
      %3422 = vperm.xlu0 %3421, %v3416
      %v3423 = vpop.permute.xlu0 %3422
      %3426 = vset.pattern.permute.xlu0 0
      %3427 = vperm.xlu0 %3426, %v3417
      %v3428 = vpop.permute.xlu0 %3427
      %3431 = vset.pattern.permute.xlu0 0
      %3432 = vperm.xlu0 %3431, %v3418
      %v3433 = vpop.permute.xlu0 %3432
      %3436 = vset.pattern.permute.xlu0 0
      %3437 = vperm.xlu0 %3436, %v3419
      %v3438 = vpop.permute.xlu0 %3437
      %v3440 = vadd.f32 %v3408, %v3423
      %v3441 = vadd.f32 %v3409, %v3423
      %v3442 = vadd.f32 %v3410, %v3428
      %v3443 = vadd.f32 %v3411, %v3428
      %v3444 = vadd.f32 %v3412, %v3433
      %v3445 = vadd.f32 %v3413, %v3433
      %v3446 = vadd.f32 %v3414, %v3438
      %v3447 = vadd.f32 %v3415, %v3438
      %v3448 = vadd.f32 %v3440, %v2415
      %v3449 = vadd.f32 %v3441, %v2416
      %v3450 = vadd.f32 %v3442, %v2417
      %v3451 = vadd.f32 %v3443, %v2418
      %v3452 = vadd.f32 %v3444, %v2419
      %v3453 = vadd.f32 %v3445, %v2420
      %v3454 = vadd.f32 %v3446, %v2421
      %v3455 = vadd.f32 %v3447, %v2422
      %s3456 = scalar_lea.vmem %s285, 128
      %3457 = vst [vmem:[%s3456] sm:$0xff] %v3448
      %3458 = vst [vmem:[%s3456 + $0x8] sm:$0xff] %v3449
      %3459 = vst [vmem:[%s3456 + $0x10] sm:$0xff] %v3450
      %3460 = vst [vmem:[%s3456 + $0x18] sm:$0xff] %v3451
      %3461 = vst [vmem:[%s3456 + $0x20] sm:$0xff] %v3452
      %3462 = vst [vmem:[%s3456 + $0x28] sm:$0xff] %v3453
      %3463 = vst [vmem:[%s3456 + $0x30] sm:$0xff] %v3454
      %3464 = vst [vmem:[%s3456 + $0x38] sm:$0xff] %v3455
      %s3465 = scalar_lea.vmem %s278, 192
      %v3466 = vld [vmem:[%s3465] sm:$0xff]
      %v3467 = vld [vmem:[%s3465 + $0x8] sm:$0xff]
      %v3468 = vld [vmem:[%s3465 + $0x10] sm:$0xff]
      %v3469 = vld [vmem:[%s3465 + $0x18] sm:$0xff]
      %v3470 = vld [vmem:[%s3465 + $0x20] sm:$0xff]
      %v3471 = vld [vmem:[%s3465 + $0x28] sm:$0xff]
      %v3472 = vld [vmem:[%s3465 + $0x30] sm:$0xff]
      %v3473 = vld [vmem:[%s3465 + $0x38] sm:$0xff]
      %v3474 = vld [vmem:[%s295] sm:$0xff]
      %v3475 = vld [vmem:[%s295 + $0x8] sm:$0xff]
      %v3476 = vld [vmem:[%s295 + $0x10] sm:$0xff]
      %v3477 = vld [vmem:[%s295 + $0x18] sm:$0xff]
      %v3478 = vld [vmem:[%s295 + $0x20] sm:$0xff]
      %v3479 = vld [vmem:[%s295 + $0x28] sm:$0xff]
      %v3480 = vld [vmem:[%s295 + $0x30] sm:$0xff]
      %v3481 = vld [vmem:[%s295 + $0x38] sm:$0xff]
      %v3482 = vmul.f32 %v3466, %v3474
      %v3483 = vmul.f32 %v3467, %v3475
      %v3484 = vmul.f32 %v3468, %v3476
      %v3485 = vmul.f32 %v3469, %v3477
      %v3486 = vmul.f32 %v3470, %v3478
      %v3487 = vmul.f32 %v3471, %v3479
      %v3488 = vmul.f32 %v3472, %v3480
      %v3489 = vmul.f32 %v3473, %v3481
      %3490 = vrot.lane.b32.xlu0 %v3466, 17
      %v3491 = vpop.permute.xlu0 %3490
      %3492 = vrot.lane.b32.xlu0 %v3468, 17
      %v3493 = vpop.permute.xlu0 %3492
      %3494 = vrot.lane.b32.xlu0 %v3470, 17
      %v3495 = vpop.permute.xlu0 %3494
      %3496 = vrot.lane.b32.xlu0 %v3472, 17
      %v3497 = vpop.permute.xlu0 %3496
      %3498 = vrot.lane.b32.xlu0 %v3467, 17
      %v3499 = vpop.permute.xlu0 %3498
      %3500 = vrot.lane.b32.xlu0 %v3469, 17
      %v3501 = vpop.permute.xlu0 %3500
      %3502 = vrot.lane.b32.xlu0 %v3471, 17
      %v3503 = vpop.permute.xlu0 %3502
      %3504 = vrot.lane.b32.xlu0 %v3473, 17
      %v3505 = vpop.permute.xlu0 %3504
      %v3506 = vsel %vm330, %v3491, %v3499
      %v3507 = vsel %vm330, %v3493, %v3501
      %v3508 = vsel %vm330, %v3495, %v3503
      %v3509 = vsel %vm330, %v3497, %v3505
      %v3510 = vsel %vm330, %v3499, %v3491
      %v3511 = vsel %vm330, %v3501, %v3493
      %v3512 = vsel %vm330, %v3503, %v3495
      %v3513 = vsel %vm330, %v3505, %v3497
      %v3514 = vld [vmem:[%s1] sm:$0xff]
      %v3515 = vld [vmem:[%s1 + $0x8] sm:$0xff]
      %v3516 = vld [vmem:[%s1 + $0x10] sm:$0xff]
      %v3517 = vld [vmem:[%s1 + $0x18] sm:$0xff]
      %v3518 = vld [vmem:[%s1 + $0x20] sm:$0xff]
      %v3519 = vld [vmem:[%s1 + $0x28] sm:$0xff]
      %v3520 = vld [vmem:[%s1 + $0x30] sm:$0xff]
      %v3521 = vld [vmem:[%s1 + $0x38] sm:$0xff]
      %v3522 = vmul.f32 %v3510, %v3514
      %v3523 = vmul.f32 %v3506, %v3515
      %v3524 = vmul.f32 %v3511, %v3516
      %v3525 = vmul.f32 %v3507, %v3517
      %v3526 = vmul.f32 %v3512, %v3518
      %v3527 = vmul.f32 %v3508, %v3519
      %v3528 = vmul.f32 %v3513, %v3520
      %v3529 = vmul.f32 %v3509, %v3521
      %v3530 = vadd.f32 %v3482, %v3522
      %v3531 = vadd.f32 %v3483, %v3523
      %v3532 = vadd.f32 %v3484, %v3524
      %v3533 = vadd.f32 %v3485, %v3525
      %v3534 = vadd.f32 %v3486, %v3526
      %v3535 = vadd.f32 %v3487, %v3527
      %v3536 = vadd.f32 %v3488, %v3528
      %v3537 = vadd.f32 %v3489, %v3529
      %3538 = vrot.lane.b32.xlu0 %v3466, 16
      %v3539 = vpop.permute.xlu0 %3538
      %3540 = vrot.lane.b32.xlu0 %v3468, 16
      %v3541 = vpop.permute.xlu0 %3540
      %3542 = vrot.lane.b32.xlu0 %v3470, 16
      %v3543 = vpop.permute.xlu0 %3542
      %3544 = vrot.lane.b32.xlu0 %v3472, 16
      %v3545 = vpop.permute.xlu0 %3544
      %3546 = vrot.lane.b32.xlu0 %v3467, 16
      %v3547 = vpop.permute.xlu0 %3546
      %3548 = vrot.lane.b32.xlu0 %v3469, 16
      %v3549 = vpop.permute.xlu0 %3548
      %3550 = vrot.lane.b32.xlu0 %v3471, 16
      %v3551 = vpop.permute.xlu0 %3550
      %3552 = vrot.lane.b32.xlu0 %v3473, 16
      %v3553 = vpop.permute.xlu0 %3552
      %v3554 = vsel %vm379, %v3539, %v3547
      %v3555 = vsel %vm379, %v3541, %v3549
      %v3556 = vsel %vm379, %v3543, %v3551
      %v3557 = vsel %vm379, %v3545, %v3553
      %v3558 = vsel %vm379, %v3547, %v3539
      %v3559 = vsel %vm379, %v3549, %v3541
      %v3560 = vsel %vm379, %v3551, %v3543
      %v3561 = vsel %vm379, %v3553, %v3545
      %v3562 = vld [vmem:[%s388] sm:$0xff]
      %v3563 = vld [vmem:[%s388 + $0x8] sm:$0xff]
      %v3564 = vld [vmem:[%s388 + $0x10] sm:$0xff]
      %v3565 = vld [vmem:[%s388 + $0x18] sm:$0xff]
      %v3566 = vld [vmem:[%s388 + $0x20] sm:$0xff]
      %v3567 = vld [vmem:[%s388 + $0x28] sm:$0xff]
      %v3568 = vld [vmem:[%s388 + $0x30] sm:$0xff]
      %v3569 = vld [vmem:[%s388 + $0x38] sm:$0xff]
      %v3570 = vmul.f32 %v3558, %v3562
      %v3571 = vmul.f32 %v3554, %v3563
      %v3572 = vmul.f32 %v3559, %v3564
      %v3573 = vmul.f32 %v3555, %v3565
      %v3574 = vmul.f32 %v3560, %v3566
      %v3575 = vmul.f32 %v3556, %v3567
      %v3576 = vmul.f32 %v3561, %v3568
      %v3577 = vmul.f32 %v3557, %v3569
      %v3578 = vadd.f32 %v3530, %v3570
      %v3579 = vadd.f32 %v3531, %v3571
      %v3580 = vadd.f32 %v3532, %v3572
      %v3581 = vadd.f32 %v3533, %v3573
      %v3582 = vadd.f32 %v3534, %v3574
      %v3583 = vadd.f32 %v3535, %v3575
      %v3584 = vadd.f32 %v3536, %v3576
      %v3585 = vadd.f32 %v3537, %v3577
      %3586 = vrot.lane.b32.xlu0 %v3466, 15
      %v3587 = vpop.permute.xlu0 %3586
      %3588 = vrot.lane.b32.xlu0 %v3468, 15
      %v3589 = vpop.permute.xlu0 %3588
      %3590 = vrot.lane.b32.xlu0 %v3470, 15
      %v3591 = vpop.permute.xlu0 %3590
      %3592 = vrot.lane.b32.xlu0 %v3472, 15
      %v3593 = vpop.permute.xlu0 %3592
      %3594 = vrot.lane.b32.xlu0 %v3467, 15
      %v3595 = vpop.permute.xlu0 %3594
      %3596 = vrot.lane.b32.xlu0 %v3469, 15
      %v3597 = vpop.permute.xlu0 %3596
      %3598 = vrot.lane.b32.xlu0 %v3471, 15
      %v3599 = vpop.permute.xlu0 %3598
      %3600 = vrot.lane.b32.xlu0 %v3473, 15
      %v3601 = vpop.permute.xlu0 %3600
      %v3602 = vsel %vm429, %v3587, %v3595
      %v3603 = vsel %vm429, %v3589, %v3597
      %v3604 = vsel %vm429, %v3591, %v3599
      %v3605 = vsel %vm429, %v3593, %v3601
      %v3606 = vsel %vm429, %v3595, %v3587
      %v3607 = vsel %vm429, %v3597, %v3589
      %v3608 = vsel %vm429, %v3599, %v3591
      %v3609 = vsel %vm429, %v3601, %v3593
      %v3610 = vld [vmem:[%s438] sm:$0xff]
      %v3611 = vld [vmem:[%s438 + $0x8] sm:$0xff]
      %v3612 = vld [vmem:[%s438 + $0x10] sm:$0xff]
      %v3613 = vld [vmem:[%s438 + $0x18] sm:$0xff]
      %v3614 = vld [vmem:[%s438 + $0x20] sm:$0xff]
      %v3615 = vld [vmem:[%s438 + $0x28] sm:$0xff]
      %v3616 = vld [vmem:[%s438 + $0x30] sm:$0xff]
      %v3617 = vld [vmem:[%s438 + $0x38] sm:$0xff]
      %v3618 = vmul.f32 %v3606, %v3610
      %v3619 = vmul.f32 %v3602, %v3611
      %v3620 = vmul.f32 %v3607, %v3612
      %v3621 = vmul.f32 %v3603, %v3613
      %v3622 = vmul.f32 %v3608, %v3614
      %v3623 = vmul.f32 %v3604, %v3615
      %v3624 = vmul.f32 %v3609, %v3616
      %v3625 = vmul.f32 %v3605, %v3617
      %v3626 = vadd.f32 %v3578, %v3618
      %v3627 = vadd.f32 %v3579, %v3619
      %v3628 = vadd.f32 %v3580, %v3620
      %v3629 = vadd.f32 %v3581, %v3621
      %v3630 = vadd.f32 %v3582, %v3622
      %v3631 = vadd.f32 %v3583, %v3623
      %v3632 = vadd.f32 %v3584, %v3624
      %v3633 = vadd.f32 %v3585, %v3625
      %3634 = vrot.lane.b32.xlu0 %v3466, 1
      %v3635 = vpop.permute.xlu0 %3634
      %3636 = vrot.lane.b32.xlu0 %v3468, 1
      %v3637 = vpop.permute.xlu0 %3636
      %3638 = vrot.lane.b32.xlu0 %v3470, 1
      %v3639 = vpop.permute.xlu0 %3638
      %3640 = vrot.lane.b32.xlu0 %v3472, 1
      %v3641 = vpop.permute.xlu0 %3640
      %3642 = vrot.lane.b32.xlu0 %v3467, 1
      %v3643 = vpop.permute.xlu0 %3642
      %3644 = vrot.lane.b32.xlu0 %v3469, 1
      %v3645 = vpop.permute.xlu0 %3644
      %3646 = vrot.lane.b32.xlu0 %v3471, 1
      %v3647 = vpop.permute.xlu0 %3646
      %3648 = vrot.lane.b32.xlu0 %v3473, 1
      %v3649 = vpop.permute.xlu0 %3648
      %v3650 = vsel %vm479, %v3635, %v3643
      %v3651 = vsel %vm479, %v3637, %v3645
      %v3652 = vsel %vm479, %v3639, %v3647
      %v3653 = vsel %vm479, %v3641, %v3649
      %v3654 = vsel %vm479, %v3643, %v3635
      %v3655 = vsel %vm479, %v3645, %v3637
      %v3656 = vsel %vm479, %v3647, %v3639
      %v3657 = vsel %vm479, %v3649, %v3641
      %v3658 = vld [vmem:[%s488] sm:$0xff]
      %v3659 = vld [vmem:[%s488 + $0x8] sm:$0xff]
      %v3660 = vld [vmem:[%s488 + $0x10] sm:$0xff]
      %v3661 = vld [vmem:[%s488 + $0x18] sm:$0xff]
      %v3662 = vld [vmem:[%s488 + $0x20] sm:$0xff]
      %v3663 = vld [vmem:[%s488 + $0x28] sm:$0xff]
      %v3664 = vld [vmem:[%s488 + $0x30] sm:$0xff]
      %v3665 = vld [vmem:[%s488 + $0x38] sm:$0xff]
      %v3666 = vmul.f32 %v3654, %v3658
      %v3667 = vmul.f32 %v3650, %v3659
      %v3668 = vmul.f32 %v3655, %v3660
      %v3669 = vmul.f32 %v3651, %v3661
      %v3670 = vmul.f32 %v3656, %v3662
      %v3671 = vmul.f32 %v3652, %v3663
      %v3672 = vmul.f32 %v3657, %v3664
      %v3673 = vmul.f32 %v3653, %v3665
      %v3674 = vadd.f32 %v3626, %v3666
      %v3675 = vadd.f32 %v3627, %v3667
      %v3676 = vadd.f32 %v3628, %v3668
      %v3677 = vadd.f32 %v3629, %v3669
      %v3678 = vadd.f32 %v3630, %v3670
      %v3679 = vadd.f32 %v3631, %v3671
      %v3680 = vadd.f32 %v3632, %v3672
      %v3681 = vadd.f32 %v3633, %v3673
      %3682 = vrot.lane.b32.xlu0 %v3466, 127
      %v3683 = vpop.permute.xlu0 %3682
      %3684 = vrot.lane.b32.xlu0 %v3468, 127
      %v3685 = vpop.permute.xlu0 %3684
      %3686 = vrot.lane.b32.xlu0 %v3470, 127
      %v3687 = vpop.permute.xlu0 %3686
      %3688 = vrot.lane.b32.xlu0 %v3472, 127
      %v3689 = vpop.permute.xlu0 %3688
      %3690 = vrot.lane.b32.xlu0 %v3467, 127
      %v3691 = vpop.permute.xlu0 %3690
      %3692 = vrot.lane.b32.xlu0 %v3469, 127
      %v3693 = vpop.permute.xlu0 %3692
      %3694 = vrot.lane.b32.xlu0 %v3471, 127
      %v3695 = vpop.permute.xlu0 %3694
      %3696 = vrot.lane.b32.xlu0 %v3473, 127
      %v3697 = vpop.permute.xlu0 %3696
      %v3698 = vsel %vm529, %v3683, %v3691
      %v3699 = vsel %vm529, %v3685, %v3693
      %v3700 = vsel %vm529, %v3687, %v3695
      %v3701 = vsel %vm529, %v3689, %v3697
      %v3702 = vsel %vm529, %v3691, %v3683
      %v3703 = vsel %vm529, %v3693, %v3685
      %v3704 = vsel %vm529, %v3695, %v3687
      %v3705 = vsel %vm529, %v3697, %v3689
      %v3706 = vld [vmem:[%s538] sm:$0xff]
      %v3707 = vld [vmem:[%s538 + $0x8] sm:$0xff]
      %v3708 = vld [vmem:[%s538 + $0x10] sm:$0xff]
      %v3709 = vld [vmem:[%s538 + $0x18] sm:$0xff]
      %v3710 = vld [vmem:[%s538 + $0x20] sm:$0xff]
      %v3711 = vld [vmem:[%s538 + $0x28] sm:$0xff]
      %v3712 = vld [vmem:[%s538 + $0x30] sm:$0xff]
      %v3713 = vld [vmem:[%s538 + $0x38] sm:$0xff]
      %v3714 = vmul.f32 %v3698, %v3706
      %v3715 = vmul.f32 %v3702, %v3707
      %v3716 = vmul.f32 %v3699, %v3708
      %v3717 = vmul.f32 %v3703, %v3709
      %v3718 = vmul.f32 %v3700, %v3710
      %v3719 = vmul.f32 %v3704, %v3711
      %v3720 = vmul.f32 %v3701, %v3712
      %v3721 = vmul.f32 %v3705, %v3713
      %v3722 = vadd.f32 %v3674, %v3714
      %v3723 = vadd.f32 %v3675, %v3715
      %v3724 = vadd.f32 %v3676, %v3716
      %v3725 = vadd.f32 %v3677, %v3717
      %v3726 = vadd.f32 %v3678, %v3718
      %v3727 = vadd.f32 %v3679, %v3719
      %v3728 = vadd.f32 %v3680, %v3720
      %v3729 = vadd.f32 %v3681, %v3721
      %3730 = vrot.lane.b32.xlu0 %v3466, 113
      %v3731 = vpop.permute.xlu0 %3730
      %3732 = vrot.lane.b32.xlu0 %v3468, 113
      %v3733 = vpop.permute.xlu0 %3732
      %3734 = vrot.lane.b32.xlu0 %v3470, 113
      %v3735 = vpop.permute.xlu0 %3734
      %3736 = vrot.lane.b32.xlu0 %v3472, 113
      %v3737 = vpop.permute.xlu0 %3736
      %3738 = vrot.lane.b32.xlu0 %v3467, 113
      %v3739 = vpop.permute.xlu0 %3738
      %3740 = vrot.lane.b32.xlu0 %v3469, 113
      %v3741 = vpop.permute.xlu0 %3740
      %3742 = vrot.lane.b32.xlu0 %v3471, 113
      %v3743 = vpop.permute.xlu0 %3742
      %3744 = vrot.lane.b32.xlu0 %v3473, 113
      %v3745 = vpop.permute.xlu0 %3744
      %v3746 = vsel %vm579, %v3731, %v3739
      %v3747 = vsel %vm579, %v3733, %v3741
      %v3748 = vsel %vm579, %v3735, %v3743
      %v3749 = vsel %vm579, %v3737, %v3745
      %v3750 = vsel %vm579, %v3739, %v3731
      %v3751 = vsel %vm579, %v3741, %v3733
      %v3752 = vsel %vm579, %v3743, %v3735
      %v3753 = vsel %vm579, %v3745, %v3737
      %v3754 = vld [vmem:[%s588] sm:$0xff]
      %v3755 = vld [vmem:[%s588 + $0x8] sm:$0xff]
      %v3756 = vld [vmem:[%s588 + $0x10] sm:$0xff]
      %v3757 = vld [vmem:[%s588 + $0x18] sm:$0xff]
      %v3758 = vld [vmem:[%s588 + $0x20] sm:$0xff]
      %v3759 = vld [vmem:[%s588 + $0x28] sm:$0xff]
      %v3760 = vld [vmem:[%s588 + $0x30] sm:$0xff]
      %v3761 = vld [vmem:[%s588 + $0x38] sm:$0xff]
      %v3762 = vmul.f32 %v3746, %v3754
      %v3763 = vmul.f32 %v3750, %v3755
      %v3764 = vmul.f32 %v3747, %v3756
      %v3765 = vmul.f32 %v3751, %v3757
      %v3766 = vmul.f32 %v3748, %v3758
      %v3767 = vmul.f32 %v3752, %v3759
      %v3768 = vmul.f32 %v3749, %v3760
      %v3769 = vmul.f32 %v3753, %v3761
      %v3770 = vadd.f32 %v3722, %v3762
      %v3771 = vadd.f32 %v3723, %v3763
      %v3772 = vadd.f32 %v3724, %v3764
      %v3773 = vadd.f32 %v3725, %v3765
      %v3774 = vadd.f32 %v3726, %v3766
      %v3775 = vadd.f32 %v3727, %v3767
      %v3776 = vadd.f32 %v3728, %v3768
      %v3777 = vadd.f32 %v3729, %v3769
      %3778 = vrot.lane.b32.xlu0 %v3466, 112
      %v3779 = vpop.permute.xlu0 %3778
      %3780 = vrot.lane.b32.xlu0 %v3468, 112
      %v3781 = vpop.permute.xlu0 %3780
      %3782 = vrot.lane.b32.xlu0 %v3470, 112
      %v3783 = vpop.permute.xlu0 %3782
      %3784 = vrot.lane.b32.xlu0 %v3472, 112
      %v3785 = vpop.permute.xlu0 %3784
      %3786 = vrot.lane.b32.xlu0 %v3467, 112
      %v3787 = vpop.permute.xlu0 %3786
      %3788 = vrot.lane.b32.xlu0 %v3469, 112
      %v3789 = vpop.permute.xlu0 %3788
      %3790 = vrot.lane.b32.xlu0 %v3471, 112
      %v3791 = vpop.permute.xlu0 %3790
      %3792 = vrot.lane.b32.xlu0 %v3473, 112
      %v3793 = vpop.permute.xlu0 %3792
      %v3794 = vsel %vm629, %v3779, %v3787
      %v3795 = vsel %vm629, %v3781, %v3789
      %v3796 = vsel %vm629, %v3783, %v3791
      %v3797 = vsel %vm629, %v3785, %v3793
      %v3798 = vsel %vm629, %v3787, %v3779
      %v3799 = vsel %vm629, %v3789, %v3781
      %v3800 = vsel %vm629, %v3791, %v3783
      %v3801 = vsel %vm629, %v3793, %v3785
      %v3802 = vld [vmem:[%s638] sm:$0xff]
      %v3803 = vld [vmem:[%s638 + $0x8] sm:$0xff]
      %v3804 = vld [vmem:[%s638 + $0x10] sm:$0xff]
      %v3805 = vld [vmem:[%s638 + $0x18] sm:$0xff]
      %v3806 = vld [vmem:[%s638 + $0x20] sm:$0xff]
      %v3807 = vld [vmem:[%s638 + $0x28] sm:$0xff]
      %v3808 = vld [vmem:[%s638 + $0x30] sm:$0xff]
      %v3809 = vld [vmem:[%s638 + $0x38] sm:$0xff]
      %v3810 = vmul.f32 %v3794, %v3802
      %v3811 = vmul.f32 %v3798, %v3803
      %v3812 = vmul.f32 %v3795, %v3804
      %v3813 = vmul.f32 %v3799, %v3805
      %v3814 = vmul.f32 %v3796, %v3806
      %v3815 = vmul.f32 %v3800, %v3807
      %v3816 = vmul.f32 %v3797, %v3808
      %v3817 = vmul.f32 %v3801, %v3809
      %v3818 = vadd.f32 %v3770, %v3810
      %v3819 = vadd.f32 %v3771, %v3811
      %v3820 = vadd.f32 %v3772, %v3812
      %v3821 = vadd.f32 %v3773, %v3813
      %v3822 = vadd.f32 %v3774, %v3814
      %v3823 = vadd.f32 %v3775, %v3815
      %v3824 = vadd.f32 %v3776, %v3816
      %v3825 = vadd.f32 %v3777, %v3817
      %3826 = vrot.lane.b32.xlu0 %v3466, 111
      %v3827 = vpop.permute.xlu0 %3826
      %3828 = vrot.lane.b32.xlu0 %v3468, 111
      %v3829 = vpop.permute.xlu0 %3828
      %3830 = vrot.lane.b32.xlu0 %v3470, 111
      %v3831 = vpop.permute.xlu0 %3830
      %3832 = vrot.lane.b32.xlu0 %v3472, 111
      %v3833 = vpop.permute.xlu0 %3832
      %3834 = vrot.lane.b32.xlu0 %v3467, 111
      %v3835 = vpop.permute.xlu0 %3834
      %3836 = vrot.lane.b32.xlu0 %v3469, 111
      %v3837 = vpop.permute.xlu0 %3836
      %3838 = vrot.lane.b32.xlu0 %v3471, 111
      %v3839 = vpop.permute.xlu0 %3838
      %3840 = vrot.lane.b32.xlu0 %v3473, 111
      %v3841 = vpop.permute.xlu0 %3840
      %v3842 = vsel %vm679, %v3827, %v3835
      %v3843 = vsel %vm679, %v3829, %v3837
      %v3844 = vsel %vm679, %v3831, %v3839
      %v3845 = vsel %vm679, %v3833, %v3841
      %v3846 = vsel %vm679, %v3835, %v3827
      %v3847 = vsel %vm679, %v3837, %v3829
      %v3848 = vsel %vm679, %v3839, %v3831
      %v3849 = vsel %vm679, %v3841, %v3833
      %v3850 = vld [vmem:[%s688] sm:$0xff]
      %v3851 = vld [vmem:[%s688 + $0x8] sm:$0xff]
      %v3852 = vld [vmem:[%s688 + $0x10] sm:$0xff]
      %v3853 = vld [vmem:[%s688 + $0x18] sm:$0xff]
      %v3854 = vld [vmem:[%s688 + $0x20] sm:$0xff]
      %v3855 = vld [vmem:[%s688 + $0x28] sm:$0xff]
      %v3856 = vld [vmem:[%s688 + $0x30] sm:$0xff]
      %v3857 = vld [vmem:[%s688 + $0x38] sm:$0xff]
      %v3858 = vmul.f32 %v3842, %v3850
      %v3859 = vmul.f32 %v3846, %v3851
      %v3860 = vmul.f32 %v3843, %v3852
      %v3861 = vmul.f32 %v3847, %v3853
      %v3862 = vmul.f32 %v3844, %v3854
      %v3863 = vmul.f32 %v3848, %v3855
      %v3864 = vmul.f32 %v3845, %v3856
      %v3865 = vmul.f32 %v3849, %v3857
      %v3866 = vadd.f32 %v3818, %v3858
      %v3867 = vadd.f32 %v3819, %v3859
      %v3868 = vadd.f32 %v3820, %v3860
      %v3869 = vadd.f32 %v3821, %v3861
      %v3870 = vadd.f32 %v3822, %v3862
      %v3871 = vadd.f32 %v3823, %v3863
      %v3872 = vadd.f32 %v3824, %v3864
      %v3873 = vadd.f32 %v3825, %v3865
      %v3874 = vld [vmem:[%s2] sm:$0xff]
      %v3875 = vld [vmem:[%s2 + $0x8] sm:$0xff]
      %v3876 = vld [vmem:[%s2 + $0x10] sm:$0xff]
      %v3877 = vld [vmem:[%s2 + $0x18] sm:$0xff]
      %3879 = vset.pattern.permute.xlu0 0
      %3880 = vperm.xlu0 %3879, %v3874
      %v3881 = vpop.permute.xlu0 %3880
      %3884 = vset.pattern.permute.xlu0 0
      %3885 = vperm.xlu0 %3884, %v3875
      %v3886 = vpop.permute.xlu0 %3885
      %3889 = vset.pattern.permute.xlu0 0
      %3890 = vperm.xlu0 %3889, %v3876
      %v3891 = vpop.permute.xlu0 %3890
      %3894 = vset.pattern.permute.xlu0 0
      %3895 = vperm.xlu0 %3894, %v3877
      %v3896 = vpop.permute.xlu0 %3895
      %v3898 = vadd.f32 %v3866, %v3881
      %v3899 = vadd.f32 %v3867, %v3881
      %v3900 = vadd.f32 %v3868, %v3886
      %v3901 = vadd.f32 %v3869, %v3886
      %v3902 = vadd.f32 %v3870, %v3891
      %v3903 = vadd.f32 %v3871, %v3891
      %v3904 = vadd.f32 %v3872, %v3896
      %v3905 = vadd.f32 %v3873, %v3896
      %v3906 = vmax.f32 %v3898, 0.0
      %v3907 = vmax.f32 %v3899, 0.0
      %v3908 = vmax.f32 %v3900, 0.0
      %v3909 = vmax.f32 %v3901, 0.0
      %v3910 = vmax.f32 %v3902, 0.0
      %v3911 = vmax.f32 %v3903, 0.0
      %v3912 = vmax.f32 %v3904, 0.0
      %v3913 = vmax.f32 %v3905, 0.0
      %v3914 = vmin.f32 %v3906, 6.0
      %v3915 = vmin.f32 %v3907, 6.0
      %v3916 = vmin.f32 %v3908, 6.0
      %v3917 = vmin.f32 %v3909, 6.0
      %v3918 = vmin.f32 %v3910, 6.0
      %v3919 = vmin.f32 %v3911, 6.0
      %v3920 = vmin.f32 %v3912, 6.0
      %v3921 = vmin.f32 %v3913, 6.0
      %v3922 = vld [vmem:[%s3] sm:$0xff]
      %v3923 = vld [vmem:[%s3 + $0x8] sm:$0xff]
      %v3924 = vld [vmem:[%s3 + $0x10] sm:$0xff]
      %v3925 = vld [vmem:[%s3 + $0x18] sm:$0xff]
      %v3926 = vld [vmem:[%s4] sm:$0xff]
      %v3927 = vld [vmem:[%s4 + $0x8] sm:$0xff]
      %v3928 = vld [vmem:[%s4 + $0x10] sm:$0xff]
      %v3929 = vld [vmem:[%s4 + $0x18] sm:$0xff]
      %3931 = vset.pattern.permute.xlu0 0
      %3932 = vperm.xlu0 %3931, %v3926
      %v3933 = vpop.permute.xlu0 %3932
      %3936 = vset.pattern.permute.xlu0 0
      %3937 = vperm.xlu0 %3936, %v3927
      %v3938 = vpop.permute.xlu0 %3937
      %3941 = vset.pattern.permute.xlu0 0
      %3942 = vperm.xlu0 %3941, %v3928
      %v3943 = vpop.permute.xlu0 %3942
      %3946 = vset.pattern.permute.xlu0 0
      %3947 = vperm.xlu0 %3946, %v3929
      %v3948 = vpop.permute.xlu0 %3947
      %v3951 = vsel %vm789, %v3922, 0
      %v3954 = vsel %vm789, %v3923, 0
      %v3957 = vsel %vm789, %v3924, 0
      %v3960 = vsel %vm789, %v3925, 0
      %3962 = vmatprep.subr.mxu0 %v3915
      %3963 = vmatpush1.msra.mxu0 %v3914
      %3964 = vmatprep.subr.mxu0 %v3917
      %3965 = vmatpush1.msra.mxu0 %v3916
      %3966 = vmatprep.subr.mxu0 %v3919
      %3967 = vmatpush1.msra.mxu0 %v3918
      %3968 = vmatprep.subr.mxu0 %v3921
      %3969 = vmatpush1.msra.mxu0 %v3920
      %3970 = vmatprep.subr.mxu0 0.0
      %3971 = vmatpush1.msra.mxu0 0.0
      %3972 = vmatprep.subr.mxu0 0.0
      %3973 = vmatpush1.msra.mxu0 0.0
      %3974 = vmatprep.subr.mxu0 0.0
      %3975 = vmatpush1.msra.mxu0 0.0
      %3976 = vmatprep.subr.mxu0 0.0
      %3977 = vmatpush1.msra.mxu0 0.0
      %3978 = vmatprep.subr.mxu0 0.0
      %3979 = vmatpush1.msra.mxu0 0.0
      %3980 = vmatprep.subr.mxu0 0.0
      %3981 = vmatpush1.msra.mxu0 0.0
      %3982 = vmatprep.subr.mxu0 0.0
      %3983 = vmatpush1.msra.mxu0 0.0
      %3984 = vmatprep.subr.mxu0 0.0
      %3985 = vmatpush1.msra.mxu0 0.0
      %3986 = vmatprep.subr.mxu0 0.0
      %3987 = vmatpush1.msra.mxu0 0.0
      %3988 = vmatprep.subr.mxu0 0.0
      %3989 = vmatpush1.msra.mxu0 0.0
      %3990 = vmatprep.subr.mxu0 0.0
      %3991 = vmatpush1.msra.mxu0 0.0
      %3992 = vmatprep.subr.mxu0 0.0
      %3993 = vmatpush1.msra.mxu0 0.0
      %3994 = vmatprep.subr.mxu0 0.0
      %3995 = vmatpush1.msra.mxu0 0.0
      %3996 = vmatprep.subr.mxu0 0.0
      %3997 = vmatpush1.msra.mxu0 0.0
      %3998 = vmatprep.subr.mxu0 0.0
      %3999 = vmatpush1.msra.mxu0 0.0
      %4000 = vmatprep.subr.mxu0 0.0
      %4001 = vmatpush1.msra.mxu0 0.0
      %4002 = vmatprep.subr.mxu0 0.0
      %4003 = vmatpush1.msra.mxu0 0.0
      %4004 = vmatprep.subr.mxu0 0.0
      %4005 = vmatpush1.msra.mxu0 0.0
      %4006 = vmatprep.subr.mxu0 0.0
      %4007 = vmatpush1.msra.mxu0 0.0
      %4008 = vmatprep.subr.mxu0 0.0
      %4009 = vmatpush1.msra.mxu0 0.0
      %4010 = vmatprep.subr.mxu0 0.0
      %4011 = vmatpush1.msra.mxu0 0.0
      %4012 = vmatprep.subr.mxu0 0.0
      %4013 = vmatpush1.msra.mxu0 0.0
      %4014 = vmatprep.subr.mxu0 0.0
      %4015 = vmatpush1.msra.mxu0 0.0
      %4016 = vmatprep.subr.mxu0 0.0
      %4017 = vmatpush1.msra.mxu0 0.0
      %4018 = vmatprep.subr.mxu0 0.0
      %4019 = vmatpush1.msra.mxu0 0.0
      %4020 = vmatprep.subr.mxu0 0.0
      %4021 = vmatpush1.msra.mxu0 0.0
      %4022 = vmatprep.subr.mxu0 0.0
      %4023 = vmatpush1.msra.mxu0 0.0
      %4024 = vmatprep.subr.mxu0 0.0
      %4025 = vmatpush1.msra.mxu0 0.0
      %4026 = vmatprep.mubr.f32.mxu0 0.0
      %4027 = vmatmul.mubr.f32.gmra.mrb[0].mxu0 %v3951
      %v4028 = vpop.f32.mrb[0].mxu0
      %v4029 = vadd.f32 %v3933, %v4028
      %v4030 = vpop.f32.mrb[0].mxu0
      %v4031 = vadd.f32 %v3933, %v4030
      %4032 = vmatprep.mubr.f32.mxu0 0.0
      %4033 = vmatmul.mubr.f32.gmra.mrb[0].mxu0 %v3954
      %v4034 = vpop.f32.mrb[0].mxu0
      %v4035 = vadd.f32 %v3938, %v4034
      %v4036 = vpop.f32.mrb[0].mxu0
      %v4037 = vadd.f32 %v3938, %v4036
      %4038 = vmatprep.mubr.f32.mxu0 0.0
      %4039 = vmatmul.mubr.f32.gmra.mrb[0].mxu0 %v3957
      %v4040 = vpop.f32.mrb[0].mxu0
      %v4041 = vadd.f32 %v3943, %v4040
      %v4042 = vpop.f32.mrb[0].mxu0
      %v4043 = vadd.f32 %v3943, %v4042
      %4044 = vmatprep.mubr.f32.mxu0 0.0
      %4045 = vmatmul.mubr.f32.gmra.mrb[0].mxu0 %v3960
      %v4046 = vpop.f32.mrb[0].mxu0
      %v4047 = vadd.f32 %v3948, %v4046
      %v4048 = vpop.f32.mrb[0].mxu0
      %v4049 = vadd.f32 %v3948, %v4048
      %4050 = vdwg.mxu0
      %v4051 = vmax.f32 %v4029, 0.0
      %v4052 = vmax.f32 %v4031, 0.0
      %v4053 = vmax.f32 %v4035, 0.0
      %v4054 = vmax.f32 %v4037, 0.0
      %v4055 = vmax.f32 %v4041, 0.0
      %v4056 = vmax.f32 %v4043, 0.0
      %v4057 = vmax.f32 %v4047, 0.0
      %v4058 = vmax.f32 %v4049, 0.0
      %v4059 = vmin.f32 %v4051, 6.0
      %v4060 = vmin.f32 %v4052, 6.0
      %v4061 = vmin.f32 %v4053, 6.0
      %v4062 = vmin.f32 %v4054, 6.0
      %v4063 = vmin.f32 %v4055, 6.0
      %v4064 = vmin.f32 %v4056, 6.0
      %v4065 = vmin.f32 %v4057, 6.0
      %v4066 = vmin.f32 %v4058, 6.0
      %v4067 = vld [vmem:[%s907] sm:$0xff]
      %v4068 = vld [vmem:[%s907 + $0x8] sm:$0xff]
      %v4069 = vld [vmem:[%s907 + $0x10] sm:$0xff]
      %v4070 = vld [vmem:[%s907 + $0x18] sm:$0xff]
      %v4071 = vld [vmem:[%s907 + $0x20] sm:$0xff]
      %v4072 = vld [vmem:[%s907 + $0x28] sm:$0xff]
      %v4073 = vld [vmem:[%s907 + $0x30] sm:$0xff]
      %v4074 = vld [vmem:[%s907 + $0x38] sm:$0xff]
      %v4075 = vmul.f32 %v4059, %v4067
      %v4076 = vmul.f32 %v4060, %v4068
      %v4077 = vmul.f32 %v4061, %v4069
      %v4078 = vmul.f32 %v4062, %v4070
      %v4079 = vmul.f32 %v4063, %v4071
      %v4080 = vmul.f32 %v4064, %v4072
      %v4081 = vmul.f32 %v4065, %v4073
      %v4082 = vmul.f32 %v4066, %v4074
      %4083 = vrot.lane.b32.xlu0 %v4059, 17
      %v4084 = vpop.permute.xlu0 %4083
      %4085 = vrot.lane.b32.xlu0 %v4061, 17
      %v4086 = vpop.permute.xlu0 %4085
      %4087 = vrot.lane.b32.xlu0 %v4063, 17
      %v4088 = vpop.permute.xlu0 %4087
      %4089 = vrot.lane.b32.xlu0 %v4065, 17
      %v4090 = vpop.permute.xlu0 %4089
      %4091 = vrot.lane.b32.xlu0 %v4060, 17
      %v4092 = vpop.permute.xlu0 %4091
      %4093 = vrot.lane.b32.xlu0 %v4062, 17
      %v4094 = vpop.permute.xlu0 %4093
      %4095 = vrot.lane.b32.xlu0 %v4064, 17
      %v4096 = vpop.permute.xlu0 %4095
      %4097 = vrot.lane.b32.xlu0 %v4066, 17
      %v4098 = vpop.permute.xlu0 %4097
      %v4099 = vsel %vm330, %v4084, %v4092
      %v4100 = vsel %vm330, %v4086, %v4094
      %v4101 = vsel %vm330, %v4088, %v4096
      %v4102 = vsel %vm330, %v4090, %v4098
      %v4103 = vsel %vm330, %v4092, %v4084
      %v4104 = vsel %vm330, %v4094, %v4086
      %v4105 = vsel %vm330, %v4096, %v4088
      %v4106 = vsel %vm330, %v4098, %v4090
      %v4107 = vld [vmem:[%s5] sm:$0xff]
      %v4108 = vld [vmem:[%s5 + $0x8] sm:$0xff]
      %v4109 = vld [vmem:[%s5 + $0x10] sm:$0xff]
      %v4110 = vld [vmem:[%s5 + $0x18] sm:$0xff]
      %v4111 = vld [vmem:[%s5 + $0x20] sm:$0xff]
      %v4112 = vld [vmem:[%s5 + $0x28] sm:$0xff]
      %v4113 = vld [vmem:[%s5 + $0x30] sm:$0xff]
      %v4114 = vld [vmem:[%s5 + $0x38] sm:$0xff]
      %v4115 = vmul.f32 %v4103, %v4107
      %v4116 = vmul.f32 %v4099, %v4108
      %v4117 = vmul.f32 %v4104, %v4109
      %v4118 = vmul.f32 %v4100, %v4110
      %v4119 = vmul.f32 %v4105, %v4111
      %v4120 = vmul.f32 %v4101, %v4112
      %v4121 = vmul.f32 %v4106, %v4113
      %v4122 = vmul.f32 %v4102, %v4114
      %v4123 = vadd.f32 %v4075, %v4115
      %v4124 = vadd.f32 %v4076, %v4116
      %v4125 = vadd.f32 %v4077, %v4117
      %v4126 = vadd.f32 %v4078, %v4118
      %v4127 = vadd.f32 %v4079, %v4119
      %v4128 = vadd.f32 %v4080, %v4120
      %v4129 = vadd.f32 %v4081, %v4121
      %v4130 = vadd.f32 %v4082, %v4122
      %4131 = vrot.lane.b32.xlu0 %v4059, 16
      %v4132 = vpop.permute.xlu0 %4131
      %4133 = vrot.lane.b32.xlu0 %v4061, 16
      %v4134 = vpop.permute.xlu0 %4133
      %4135 = vrot.lane.b32.xlu0 %v4063, 16
      %v4136 = vpop.permute.xlu0 %4135
      %4137 = vrot.lane.b32.xlu0 %v4065, 16
      %v4138 = vpop.permute.xlu0 %4137
      %4139 = vrot.lane.b32.xlu0 %v4060, 16
      %v4140 = vpop.permute.xlu0 %4139
      %4141 = vrot.lane.b32.xlu0 %v4062, 16
      %v4142 = vpop.permute.xlu0 %4141
      %4143 = vrot.lane.b32.xlu0 %v4064, 16
      %v4144 = vpop.permute.xlu0 %4143
      %4145 = vrot.lane.b32.xlu0 %v4066, 16
      %v4146 = vpop.permute.xlu0 %4145
      %v4147 = vsel %vm379, %v4132, %v4140
      %v4148 = vsel %vm379, %v4134, %v4142
      %v4149 = vsel %vm379, %v4136, %v4144
      %v4150 = vsel %vm379, %v4138, %v4146
      %v4151 = vsel %vm379, %v4140, %v4132
      %v4152 = vsel %vm379, %v4142, %v4134
      %v4153 = vsel %vm379, %v4144, %v4136
      %v4154 = vsel %vm379, %v4146, %v4138
      %v4155 = vld [vmem:[%s996] sm:$0xff]
      %v4156 = vld [vmem:[%s996 + $0x8] sm:$0xff]
      %v4157 = vld [vmem:[%s996 + $0x10] sm:$0xff]
      %v4158 = vld [vmem:[%s996 + $0x18] sm:$0xff]
      %v4159 = vld [vmem:[%s996 + $0x20] sm:$0xff]
      %v4160 = vld [vmem:[%s996 + $0x28] sm:$0xff]
      %v4161 = vld [vmem:[%s996 + $0x30] sm:$0xff]
      %v4162 = vld [vmem:[%s996 + $0x38] sm:$0xff]
      %v4163 = vmul.f32 %v4151, %v4155
      %v4164 = vmul.f32 %v4147, %v4156
      %v4165 = vmul.f32 %v4152, %v4157
      %v4166 = vmul.f32 %v4148, %v4158
      %v4167 = vmul.f32 %v4153, %v4159
      %v4168 = vmul.f32 %v4149, %v4160
      %v4169 = vmul.f32 %v4154, %v4161
      %v4170 = vmul.f32 %v4150, %v4162
      %v4171 = vadd.f32 %v4123, %v4163
      %v4172 = vadd.f32 %v4124, %v4164
      %v4173 = vadd.f32 %v4125, %v4165
      %v4174 = vadd.f32 %v4126, %v4166
      %v4175 = vadd.f32 %v4127, %v4167
      %v4176 = vadd.f32 %v4128, %v4168
      %v4177 = vadd.f32 %v4129, %v4169
      %v4178 = vadd.f32 %v4130, %v4170
      %4179 = vrot.lane.b32.xlu0 %v4059, 15
      %v4180 = vpop.permute.xlu0 %4179
      %4181 = vrot.lane.b32.xlu0 %v4061, 15
      %v4182 = vpop.permute.xlu0 %4181
      %4183 = vrot.lane.b32.xlu0 %v4063, 15
      %v4184 = vpop.permute.xlu0 %4183
      %4185 = vrot.lane.b32.xlu0 %v4065, 15
      %v4186 = vpop.permute.xlu0 %4185
      %4187 = vrot.lane.b32.xlu0 %v4060, 15
      %v4188 = vpop.permute.xlu0 %4187
      %4189 = vrot.lane.b32.xlu0 %v4062, 15
      %v4190 = vpop.permute.xlu0 %4189
      %4191 = vrot.lane.b32.xlu0 %v4064, 15
      %v4192 = vpop.permute.xlu0 %4191
      %4193 = vrot.lane.b32.xlu0 %v4066, 15
      %v4194 = vpop.permute.xlu0 %4193
      %v4195 = vsel %vm429, %v4180, %v4188
      %v4196 = vsel %vm429, %v4182, %v4190
      %v4197 = vsel %vm429, %v4184, %v4192
      %v4198 = vsel %vm429, %v4186, %v4194
      %v4199 = vsel %vm429, %v4188, %v4180
      %v4200 = vsel %vm429, %v4190, %v4182
      %v4201 = vsel %vm429, %v4192, %v4184
      %v4202 = vsel %vm429, %v4194, %v4186
      %v4203 = vld [vmem:[%s1045] sm:$0xff]
      %v4204 = vld [vmem:[%s1045 + $0x8] sm:$0xff]
      %v4205 = vld [vmem:[%s1045 + $0x10] sm:$0xff]
      %v4206 = vld [vmem:[%s1045 + $0x18] sm:$0xff]
      %v4207 = vld [vmem:[%s1045 + $0x20] sm:$0xff]
      %v4208 = vld [vmem:[%s1045 + $0x28] sm:$0xff]
      %v4209 = vld [vmem:[%s1045 + $0x30] sm:$0xff]
      %v4210 = vld [vmem:[%s1045 + $0x38] sm:$0xff]
      %v4211 = vmul.f32 %v4199, %v4203
      %v4212 = vmul.f32 %v4195, %v4204
      %v4213 = vmul.f32 %v4200, %v4205
      %v4214 = vmul.f32 %v4196, %v4206
      %v4215 = vmul.f32 %v4201, %v4207
      %v4216 = vmul.f32 %v4197, %v4208
      %v4217 = vmul.f32 %v4202, %v4209
      %v4218 = vmul.f32 %v4198, %v4210
      %v4219 = vadd.f32 %v4171, %v4211
      %v4220 = vadd.f32 %v4172, %v4212
      %v4221 = vadd.f32 %v4173, %v4213
      %v4222 = vadd.f32 %v4174, %v4214
      %v4223 = vadd.f32 %v4175, %v4215
      %v4224 = vadd.f32 %v4176, %v4216
      %v4225 = vadd.f32 %v4177, %v4217
      %v4226 = vadd.f32 %v4178, %v4218
      %4227 = vrot.lane.b32.xlu0 %v4059, 1
      %v4228 = vpop.permute.xlu0 %4227
      %4229 = vrot.lane.b32.xlu0 %v4061, 1
      %v4230 = vpop.permute.xlu0 %4229
      %4231 = vrot.lane.b32.xlu0 %v4063, 1
      %v4232 = vpop.permute.xlu0 %4231
      %4233 = vrot.lane.b32.xlu0 %v4065, 1
      %v4234 = vpop.permute.xlu0 %4233
      %4235 = vrot.lane.b32.xlu0 %v4060, 1
      %v4236 = vpop.permute.xlu0 %4235
      %4237 = vrot.lane.b32.xlu0 %v4062, 1
      %v4238 = vpop.permute.xlu0 %4237
      %4239 = vrot.lane.b32.xlu0 %v4064, 1
      %v4240 = vpop.permute.xlu0 %4239
      %4241 = vrot.lane.b32.xlu0 %v4066, 1
      %v4242 = vpop.permute.xlu0 %4241
      %v4243 = vsel %vm479, %v4228, %v4236
      %v4244 = vsel %vm479, %v4230, %v4238
      %v4245 = vsel %vm479, %v4232, %v4240
      %v4246 = vsel %vm479, %v4234, %v4242
      %v4247 = vsel %vm479, %v4236, %v4228
      %v4248 = vsel %vm479, %v4238, %v4230
      %v4249 = vsel %vm479, %v4240, %v4232
      %v4250 = vsel %vm479, %v4242, %v4234
      %v4251 = vld [vmem:[%s1094] sm:$0xff]
      %v4252 = vld [vmem:[%s1094 + $0x8] sm:$0xff]
      %v4253 = vld [vmem:[%s1094 + $0x10] sm:$0xff]
      %v4254 = vld [vmem:[%s1094 + $0x18] sm:$0xff]
      %v4255 = vld [vmem:[%s1094 + $0x20] sm:$0xff]
      %v4256 = vld [vmem:[%s1094 + $0x28] sm:$0xff]
      %v4257 = vld [vmem:[%s1094 + $0x30] sm:$0xff]
      %v4258 = vld [vmem:[%s1094 + $0x38] sm:$0xff]
      %v4259 = vmul.f32 %v4247, %v4251
      %v4260 = vmul.f32 %v4243, %v4252
      %v4261 = vmul.f32 %v4248, %v4253
      %v4262 = vmul.f32 %v4244, %v4254
      %v4263 = vmul.f32 %v4249, %v4255
      %v4264 = vmul.f32 %v4245, %v4256
      %v4265 = vmul.f32 %v4250, %v4257
      %v4266 = vmul.f32 %v4246, %v4258
      %v4267 = vadd.f32 %v4219, %v4259
      %v4268 = vadd.f32 %v4220, %v4260
      %v4269 = vadd.f32 %v4221, %v4261
      %v4270 = vadd.f32 %v4222, %v4262
      %v4271 = vadd.f32 %v4223, %v4263
      %v4272 = vadd.f32 %v4224, %v4264
      %v4273 = vadd.f32 %v4225, %v4265
      %v4274 = vadd.f32 %v4226, %v4266
      %4275 = vrot.lane.b32.xlu0 %v4059, 127
      %v4276 = vpop.permute.xlu0 %4275
      %4277 = vrot.lane.b32.xlu0 %v4061, 127
      %v4278 = vpop.permute.xlu0 %4277
      %4279 = vrot.lane.b32.xlu0 %v4063, 127
      %v4280 = vpop.permute.xlu0 %4279
      %4281 = vrot.lane.b32.xlu0 %v4065, 127
      %v4282 = vpop.permute.xlu0 %4281
      %4283 = vrot.lane.b32.xlu0 %v4060, 127
      %v4284 = vpop.permute.xlu0 %4283
      %4285 = vrot.lane.b32.xlu0 %v4062, 127
      %v4286 = vpop.permute.xlu0 %4285
      %4287 = vrot.lane.b32.xlu0 %v4064, 127
      %v4288 = vpop.permute.xlu0 %4287
      %4289 = vrot.lane.b32.xlu0 %v4066, 127
      %v4290 = vpop.permute.xlu0 %4289
      %v4291 = vsel %vm529, %v4276, %v4284
      %v4292 = vsel %vm529, %v4278, %v4286
      %v4293 = vsel %vm529, %v4280, %v4288
      %v4294 = vsel %vm529, %v4282, %v4290
      %v4295 = vsel %vm529, %v4284, %v4276
      %v4296 = vsel %vm529, %v4286, %v4278
      %v4297 = vsel %vm529, %v4288, %v4280
      %v4298 = vsel %vm529, %v4290, %v4282
      %v4299 = vld [vmem:[%s1143] sm:$0xff]
      %v4300 = vld [vmem:[%s1143 + $0x8] sm:$0xff]
      %v4301 = vld [vmem:[%s1143 + $0x10] sm:$0xff]
      %v4302 = vld [vmem:[%s1143 + $0x18] sm:$0xff]
      %v4303 = vld [vmem:[%s1143 + $0x20] sm:$0xff]
      %v4304 = vld [vmem:[%s1143 + $0x28] sm:$0xff]
      %v4305 = vld [vmem:[%s1143 + $0x30] sm:$0xff]
      %v4306 = vld [vmem:[%s1143 + $0x38] sm:$0xff]
      %v4307 = vmul.f32 %v4291, %v4299
      %v4308 = vmul.f32 %v4295, %v4300
      %v4309 = vmul.f32 %v4292, %v4301
      %v4310 = vmul.f32 %v4296, %v4302
      %v4311 = vmul.f32 %v4293, %v4303
      %v4312 = vmul.f32 %v4297, %v4304
      %v4313 = vmul.f32 %v4294, %v4305
      %v4314 = vmul.f32 %v4298, %v4306
      %v4315 = vadd.f32 %v4267, %v4307
      %v4316 = vadd.f32 %v4268, %v4308
      %v4317 = vadd.f32 %v4269, %v4309
      %v4318 = vadd.f32 %v4270, %v4310
      %v4319 = vadd.f32 %v4271, %v4311
      %v4320 = vadd.f32 %v4272, %v4312
      %v4321 = vadd.f32 %v4273, %v4313
      %v4322 = vadd.f32 %v4274, %v4314
      %4323 = vrot.lane.b32.xlu0 %v4059, 113
      %v4324 = vpop.permute.xlu0 %4323
      %4325 = vrot.lane.b32.xlu0 %v4061, 113
      %v4326 = vpop.permute.xlu0 %4325
      %4327 = vrot.lane.b32.xlu0 %v4063, 113
      %v4328 = vpop.permute.xlu0 %4327
      %4329 = vrot.lane.b32.xlu0 %v4065, 113
      %v4330 = vpop.permute.xlu0 %4329
      %4331 = vrot.lane.b32.xlu0 %v4060, 113
      %v4332 = vpop.permute.xlu0 %4331
      %4333 = vrot.lane.b32.xlu0 %v4062, 113
      %v4334 = vpop.permute.xlu0 %4333
      %4335 = vrot.lane.b32.xlu0 %v4064, 113
      %v4336 = vpop.permute.xlu0 %4335
      %4337 = vrot.lane.b32.xlu0 %v4066, 113
      %v4338 = vpop.permute.xlu0 %4337
      %v4339 = vsel %vm579, %v4324, %v4332
      %v4340 = vsel %vm579, %v4326, %v4334
      %v4341 = vsel %vm579, %v4328, %v4336
      %v4342 = vsel %vm579, %v4330, %v4338
      %v4343 = vsel %vm579, %v4332, %v4324
      %v4344 = vsel %vm579, %v4334, %v4326
      %v4345 = vsel %vm579, %v4336, %v4328
      %v4346 = vsel %vm579, %v4338, %v4330
      %v4347 = vld [vmem:[%s1192] sm:$0xff]
      %v4348 = vld [vmem:[%s1192 + $0x8] sm:$0xff]
      %v4349 = vld [vmem:[%s1192 + $0x10] sm:$0xff]
      %v4350 = vld [vmem:[%s1192 + $0x18] sm:$0xff]
      %v4351 = vld [vmem:[%s1192 + $0x20] sm:$0xff]
      %v4352 = vld [vmem:[%s1192 + $0x28] sm:$0xff]
      %v4353 = vld [vmem:[%s1192 + $0x30] sm:$0xff]
      %v4354 = vld [vmem:[%s1192 + $0x38] sm:$0xff]
      %v4355 = vmul.f32 %v4339, %v4347
      %v4356 = vmul.f32 %v4343, %v4348
      %v4357 = vmul.f32 %v4340, %v4349
      %v4358 = vmul.f32 %v4344, %v4350
      %v4359 = vmul.f32 %v4341, %v4351
      %v4360 = vmul.f32 %v4345, %v4352
      %v4361 = vmul.f32 %v4342, %v4353
      %v4362 = vmul.f32 %v4346, %v4354
      %v4363 = vadd.f32 %v4315, %v4355
      %v4364 = vadd.f32 %v4316, %v4356
      %v4365 = vadd.f32 %v4317, %v4357
      %v4366 = vadd.f32 %v4318, %v4358
      %v4367 = vadd.f32 %v4319, %v4359
      %v4368 = vadd.f32 %v4320, %v4360
      %v4369 = vadd.f32 %v4321, %v4361
      %v4370 = vadd.f32 %v4322, %v4362
      %4371 = vrot.lane.b32.xlu0 %v4059, 112
      %v4372 = vpop.permute.xlu0 %4371
      %4373 = vrot.lane.b32.xlu0 %v4061, 112
      %v4374 = vpop.permute.xlu0 %4373
      %4375 = vrot.lane.b32.xlu0 %v4063, 112
      %v4376 = vpop.permute.xlu0 %4375
      %4377 = vrot.lane.b32.xlu0 %v4065, 112
      %v4378 = vpop.permute.xlu0 %4377
      %4379 = vrot.lane.b32.xlu0 %v4060, 112
      %v4380 = vpop.permute.xlu0 %4379
      %4381 = vrot.lane.b32.xlu0 %v4062, 112
      %v4382 = vpop.permute.xlu0 %4381
      %4383 = vrot.lane.b32.xlu0 %v4064, 112
      %v4384 = vpop.permute.xlu0 %4383
      %4385 = vrot.lane.b32.xlu0 %v4066, 112
      %v4386 = vpop.permute.xlu0 %4385
      %v4387 = vsel %vm629, %v4372, %v4380
      %v4388 = vsel %vm629, %v4374, %v4382
      %v4389 = vsel %vm629, %v4376, %v4384
      %v4390 = vsel %vm629, %v4378, %v4386
      %v4391 = vsel %vm629, %v4380, %v4372
      %v4392 = vsel %vm629, %v4382, %v4374
      %v4393 = vsel %vm629, %v4384, %v4376
      %v4394 = vsel %vm629, %v4386, %v4378
      %v4395 = vld [vmem:[%s1241] sm:$0xff]
      %v4396 = vld [vmem:[%s1241 + $0x8] sm:$0xff]
      %v4397 = vld [vmem:[%s1241 + $0x10] sm:$0xff]
      %v4398 = vld [vmem:[%s1241 + $0x18] sm:$0xff]
      %v4399 = vld [vmem:[%s1241 + $0x20] sm:$0xff]
      %v4400 = vld [vmem:[%s1241 + $0x28] sm:$0xff]
      %v4401 = vld [vmem:[%s1241 + $0x30] sm:$0xff]
      %v4402 = vld [vmem:[%s1241 + $0x38] sm:$0xff]
      %v4403 = vmul.f32 %v4387, %v4395
      %v4404 = vmul.f32 %v4391, %v4396
      %v4405 = vmul.f32 %v4388, %v4397
      %v4406 = vmul.f32 %v4392, %v4398
      %v4407 = vmul.f32 %v4389, %v4399
      %v4408 = vmul.f32 %v4393, %v4400
      %v4409 = vmul.f32 %v4390, %v4401
      %v4410 = vmul.f32 %v4394, %v4402
      %v4411 = vadd.f32 %v4363, %v4403
      %v4412 = vadd.f32 %v4364, %v4404
      %v4413 = vadd.f32 %v4365, %v4405
      %v4414 = vadd.f32 %v4366, %v4406
      %v4415 = vadd.f32 %v4367, %v4407
      %v4416 = vadd.f32 %v4368, %v4408
      %v4417 = vadd.f32 %v4369, %v4409
      %v4418 = vadd.f32 %v4370, %v4410
      %4419 = vrot.lane.b32.xlu0 %v4059, 111
      %v4420 = vpop.permute.xlu0 %4419
      %4421 = vrot.lane.b32.xlu0 %v4061, 111
      %v4422 = vpop.permute.xlu0 %4421
      %4423 = vrot.lane.b32.xlu0 %v4063, 111
      %v4424 = vpop.permute.xlu0 %4423
      %4425 = vrot.lane.b32.xlu0 %v4065, 111
      %v4426 = vpop.permute.xlu0 %4425
      %4427 = vrot.lane.b32.xlu0 %v4060, 111
      %v4428 = vpop.permute.xlu0 %4427
      %4429 = vrot.lane.b32.xlu0 %v4062, 111
      %v4430 = vpop.permute.xlu0 %4429
      %4431 = vrot.lane.b32.xlu0 %v4064, 111
      %v4432 = vpop.permute.xlu0 %4431
      %4433 = vrot.lane.b32.xlu0 %v4066, 111
      %v4434 = vpop.permute.xlu0 %4433
      %v4435 = vsel %vm679, %v4420, %v4428
      %v4436 = vsel %vm679, %v4422, %v4430
      %v4437 = vsel %vm679, %v4424, %v4432
      %v4438 = vsel %vm679, %v4426, %v4434
      %v4439 = vsel %vm679, %v4428, %v4420
      %v4440 = vsel %vm679, %v4430, %v4422
      %v4441 = vsel %vm679, %v4432, %v4424
      %v4442 = vsel %vm679, %v4434, %v4426
      %v4443 = vld [vmem:[%s1290] sm:$0xff]
      %v4444 = vld [vmem:[%s1290 + $0x8] sm:$0xff]
      %v4445 = vld [vmem:[%s1290 + $0x10] sm:$0xff]
      %v4446 = vld [vmem:[%s1290 + $0x18] sm:$0xff]
      %v4447 = vld [vmem:[%s1290 + $0x20] sm:$0xff]
      %v4448 = vld [vmem:[%s1290 + $0x28] sm:$0xff]
      %v4449 = vld [vmem:[%s1290 + $0x30] sm:$0xff]
      %v4450 = vld [vmem:[%s1290 + $0x38] sm:$0xff]
      %v4451 = vmul.f32 %v4435, %v4443
      %v4452 = vmul.f32 %v4439, %v4444
      %v4453 = vmul.f32 %v4436, %v4445
      %v4454 = vmul.f32 %v4440, %v4446
      %v4455 = vmul.f32 %v4437, %v4447
      %v4456 = vmul.f32 %v4441, %v4448
      %v4457 = vmul.f32 %v4438, %v4449
      %v4458 = vmul.f32 %v4442, %v4450
      %v4459 = vadd.f32 %v4411, %v4451
      %v4460 = vadd.f32 %v4412, %v4452
      %v4461 = vadd.f32 %v4413, %v4453
      %v4462 = vadd.f32 %v4414, %v4454
      %v4463 = vadd.f32 %v4415, %v4455
      %v4464 = vadd.f32 %v4416, %v4456
      %v4465 = vadd.f32 %v4417, %v4457
      %v4466 = vadd.f32 %v4418, %v4458
      %v4467 = vld [vmem:[%s6] sm:$0xff]
      %v4468 = vld [vmem:[%s6 + $0x8] sm:$0xff]
      %v4469 = vld [vmem:[%s6 + $0x10] sm:$0xff]
      %v4470 = vld [vmem:[%s6 + $0x18] sm:$0xff]
      %4472 = vset.pattern.permute.xlu0 0
      %4473 = vperm.xlu0 %4472, %v4467
      %v4474 = vpop.permute.xlu0 %4473
      %4477 = vset.pattern.permute.xlu0 0
      %4478 = vperm.xlu0 %4477, %v4468
      %v4479 = vpop.permute.xlu0 %4478
      %4482 = vset.pattern.permute.xlu0 0
      %4483 = vperm.xlu0 %4482, %v4469
      %v4484 = vpop.permute.xlu0 %4483
      %4487 = vset.pattern.permute.xlu0 0
      %4488 = vperm.xlu0 %4487, %v4470
      %v4489 = vpop.permute.xlu0 %4488
      %v4491 = vadd.f32 %v4459, %v4474
      %v4492 = vadd.f32 %v4460, %v4474
      %v4493 = vadd.f32 %v4461, %v4479
      %v4494 = vadd.f32 %v4462, %v4479
      %v4495 = vadd.f32 %v4463, %v4484
      %v4496 = vadd.f32 %v4464, %v4484
      %v4497 = vadd.f32 %v4465, %v4489
      %v4498 = vadd.f32 %v4466, %v4489
      %v4499 = vadd.f32 %v4491, %v3466
      %v4500 = vadd.f32 %v4492, %v3467
      %v4501 = vadd.f32 %v4493, %v3468
      %v4502 = vadd.f32 %v4494, %v3469
      %v4503 = vadd.f32 %v4495, %v3470
      %v4504 = vadd.f32 %v4496, %v3471
      %v4505 = vadd.f32 %v4497, %v3472
      %v4506 = vadd.f32 %v4498, %v3473
      %s4507 = scalar_lea.vmem %s285, 192
      %4508 = vst [vmem:[%s4507] sm:$0xff] %v4499
      %4509 = vst [vmem:[%s4507 + $0x8] sm:$0xff] %v4500
      %4510 = vst [vmem:[%s4507 + $0x10] sm:$0xff] %v4501
      %4511 = vst [vmem:[%s4507 + $0x18] sm:$0xff] %v4502
      %4512 = vst [vmem:[%s4507 + $0x20] sm:$0xff] %v4503
      %4513 = vst [vmem:[%s4507 + $0x28] sm:$0xff] %v4504
      %4514 = vst [vmem:[%s4507 + $0x30] sm:$0xff] %v4505
      %4515 = vst [vmem:[%s4507 + $0x38] sm:$0xff] %v4506
      %s4516 = smul.u32 4, %s18
      %p4517 = scmp.lt.s32.totalorder %s4516, 7
      %s4518 = scalar_select %p4517, %s4516, 7
      %s4519 = smul.addr %s4518, 8
      %s4520 = smul.addr %s4519, 8
      %s4521 = scalar_lea.vmem %s7, %s4520
      // Predicated region
      $region49: #{sgblock_forward.1} parent=47 // pred_check
        %p4522 = pneg %p188
      $region50: #{sgblock_forward.1} parent=47 // pred_check_branch
        %4524 = sbr.rel (%p4522) target = $region52
      $region51: #{sgblock_forward.1} parent=47 // pred_region
        %s4525 = smul.u32 4, %s18
      $region52: #{sgblock_forward.1} parent=47 // pred_fallthru
        _
    $region48: #{sgblock_forward.1} parent=5 // pred_fallthru
      _
    %p4526 = scmp.le.s32.totalorder 2, %s13
    // Predicated region
    $region53: #{sgblock_forward.1} parent=5 // pred_check
      %p4527 = pneg %p4526
    $region54: #{sgblock_forward.1} parent=5 // pred_check_branch
      %4529 = sbr.rel (%p4527) target = $region56
    $region55: #{sgblock_forward.1} parent=5 // pred_region
      %s4530 = ssub.s32 %s13, 2
      // Predicated region
      $region57: #{sgblock_forward.1} parent=55 // pred_check
        %p4531 = pneg %p194
      $region58: #{sgblock_forward.1} parent=55 // pred_check_branch
        %4533 = sbr.rel (%p4531) target = $region60
      $region59: #{sgblock_forward.1} parent=55 // pred_region
        %s4534 = smul.u32 4, %s19
        %p4535 = scmp.lt.s32.totalorder %s4534, 7
        %s4536 = scalar_select %p4535, %s4534, 7
        %s4537 = smul.addr %s4536, 8
        %s4538 = smul.addr %s4537, 8
        %s4539 = scalar_lea.vmem %s7, %s4538
      $region60: #{sgblock_forward.1} parent=55 // pred_fallthru
        _
    $region56: #{sgblock_forward.1} parent=5 // pred_fallthru
      _
  $region6: #{sgblock_forward.1} parent=0 // loop_footer
    %s17 = sadd.s32 1, %s13
  $region7: #{sgblock_forward.1} parent=0 // loop_footer_branch
    %12 = sbr.rel target = $region3
  $region8: #{sgblock_forward.1} parent=0 // loop_exit
    _

</llo_original>
